<compile_context>
chip_gen: v5e
topology: v5e:2x2
jax: 0.10.0
libtpu: 0.0.40
codegen_flags: <defaults>
</compile_context>

<pallas_src>
import functools
import math

import jax
import jax.numpy as jnp
from jax.experimental import pallas as pl
from jax.experimental.pallas import tpu as pltpu

LANE = 128
ACT_DTYPE = jnp.bfloat16          # activations & MXU operands (f32 accumulation)
VMEM_LIMIT = 64 * 1024 * 1024     # tiles below are sized well inside this
BN_EPS = 1e-5


# ----------------------------------------------------------------------------
# small helpers
# ----------------------------------------------------------------------------
def _rup(n, m=LANE):
    return ((n + m - 1) // m) * m


def _div_tile(n, cap):
    """Largest divisor of n that is <= cap (>= 1)."""
    t = max(1, min(n, cap))
    while n % t:
        t -= 1
    return t


def _row_tile(n, cap):
    """Largest divisor of n that is <= cap and a multiple of 8 (else n)."""
    if n <= cap:
        return n
    t = (min(n, cap) // 8) * 8
    while t >= 8:
        if n % t == 0:
            return t
        t -= 8
    return n


def _channel_tile(cop, cap):
    cap = max(LANE, (cap // LANE) * LANE)
    t = min(cop, cap)
    while cop % t:
        t -= LANE
    return t


def _pad_vec(v, n):
    return jnp.pad(v.astype(jnp.float32), (0, n - v.shape[0]))


def _pad_channels(x, cp):
    c = x.shape[-1]
    if c == cp:
        return x
    return jnp.pad(x, ((0, 0),) * (x.ndim - 1) + ((0, cp - c),))


# ----------------------------------------------------------------------------
# Pallas kernels
# ----------------------------------------------------------------------------
def _conv3x3_kernel(*refs, prologue, relu_prologue, residual):
    """Fused [scale/shift(+ReLU)] -> 3x3 conv (pad=1) -> [+ residual]."""
    it = iter(refs)
    x_ref, top_ref, bot_ref = next(it), next(it), next(it)
    if prologue:
        scale_ref, shift_ref = next(it), next(it)
    w_ref, b_ref = next(it), next(it)
    res_ref = next(it) if residual else None
    o_ref = next(it)
    xbuf = next(it)

    _, TH, W, TC = o_ref.shape
    Cp = xbuf.shape[-1]
    cdt = w_ref.dtype

    h_idx = pl.program_id(1)
    n_h = pl.num_programs(1)

    def prep(v):
        vf = v.astype(jnp.float32)
        if prologue:
            vf = vf * scale_ref[...] + shift_ref[...]
            if relu_prologue:
                vf = jnp.maximum(vf, 0.0)
        return vf

    # Assemble the zero-padded, prologued input tile in VMEM.  The one-row
    # top/bottom halos arrive as separate size-1 blocks; at image boundaries
    # they are masked to zero (the conv's zero padding applies to the already
    # normalized activation, matching the reference ordering).
    top = prep(top_ref[0]) * jnp.where(h_idx > 0, 1.0, 0.0)
    bot = prep(bot_ref[0]) * jnp.where(h_idx + 1 < n_h, 1.0, 0.0)
    xbuf[0:1, 1:W + 1, :] = top
    xbuf[TH + 1:TH + 2, 1:W + 1, :] = bot
    xbuf[1:TH + 1, 1:W + 1, :] = prep(x_ref[0])
    zcol = jnp.zeros((TH + 2, 1, Cp), jnp.float32)
    xbuf[:, 0:1, :] = zcol
    xbuf[:, W + 1:W + 2, :] = zcol

    # 3x3 conv as 3 MXU matmuls: the three dw taps are folded into the
    # contraction (K = 3*Cp) instead of 9 tiny-K matmuls.
    acc = jnp.zeros((TH * W, TC), jnp.float32)
    for dh in range(3):
        slab = xbuf[dh:dh + TH, :, :]                       # (TH, W+2, Cp) f32
        patch = jnp.concatenate(
            [slab[:, dw:dw + W, :].astype(cdt) for dw in range(3)], axis=-1)
        acc += jnp.dot(patch.reshape(TH * W, 3 * Cp), w_ref[dh],
                       preferred_element_type=jnp.float32)
    acc += b_ref[...]                                       # bias once, after taps
    if residual:
        acc += res_ref[0].reshape(TH * W, TC).astype(jnp.float32)
    o_ref[...] = acc.reshape(1, TH, W, TC).astype(o_ref.dtype)


def _dense_kernel(*refs, prologue, relu_prologue, residual):
    """Fused [scale/shift(+ReLU)] -> matmul + bias -> [+ residual]."""
    it = iter(refs)
    x_ref = next(it)
    if prologue:
        scale_ref, shift_ref = next(it), next(it)
    w_ref, b_ref = next(it), next(it)
    res_ref = next(it) if residual else None
    o_ref = next(it)

    x = x_ref[...]
    if prologue:
        xf = x.astype(jnp.float32) * scale_ref[...] + shift_ref[...]
        if relu_prologue:
            xf = jnp.maximum(xf, 0.0)
        x = xf.astype(w_ref.dtype)
    y = jnp.dot(x, w_ref[...], preferred_element_type=jnp.float32) + b_ref[...]
    if residual:
        y += res_ref[...].astype(jnp.float32)
    o_ref[...] = y.astype(o_ref.dtype)


def _attn_kernel(q_ref, k_ref, v_ref, o_ref):
    # q was pre-scaled by 1/sqrt(C) (folded into the fused QKV weights).
    q, k, v = q_ref[0], k_ref[0], v_ref[0]
    s = jax.lax.dot_general(q, k, (((1,), (1,)), ((), ())),
                            preferred_element_type=jnp.float32)
    s -= jnp.max(s, axis=-1, keepdims=True)
    p = jnp.exp(s)
    p *= pl.reciprocal(jnp.sum(p, axis=-1, keepdims=True), approx=True)
    o = jnp.dot(p.astype(v.dtype), v, preferred_element_type=jnp.float32)
    o_ref[...] = o[None].astype(o_ref.dtype)


# ----------------------------------------------------------------------------
# Pallas wrappers
# ----------------------------------------------------------------------------
def conv3x3(x, w, b, *, scale_shift=None, relu_prologue=False, residual=None,
            row_cap=512, cout_cap=256):
    """x: (N,H,W,Cp) lane-padded; w: (3,3,cin,cout) HWIO (true sizes); b: (cout,).

    Returns (N, H, W, rup(cout)) in ACT_DTYPE with zero padded lanes.
    """
    N, H, W, Cp = x.shape
    _, _, cin, cout = w.shape
    assert Cp == _rup(cin), (Cp, cin)
    cop = _rup(cout)

    wp = jnp.pad(w, ((0, 0), (0, 0), (0, Cp - cin), (0, cop - cout)))
    wp = wp.astype(ACT_DTYPE).reshape(3, 3 * Cp, cop)
    bp = _pad_vec(b, cop).reshape(1, cop)

    TH = _div_tile(H, max(1, row_cap // W))
    TC = _channel_tile(cop, cout_cap)
    grid = (N, H // TH, cop // TC)
    prologue = scale_shift is not None

    in_specs = [
        pl.BlockSpec((1, TH, W, Cp), lambda n, h, co: (n, h, 0, 0)),
        pl.BlockSpec((1, 1, W, Cp),
                     lambda n, h, co: (n, jnp.maximum(h * TH - 1, 0), 0, 0)),
        pl.BlockSpec((1, 1, W, Cp),
                     lambda n, h, co: (n, jnp.minimum((h + 1) * TH, H - 1), 0, 0)),
    ]
    args = [x, x, x]
    if prologue:
        in_specs += [pl.BlockSpec((1, Cp), lambda n, h, co: (0, 0))] * 2
        args += [scale_shift[0], scale_shift[1]]
    in_specs += [pl.BlockSpec((3, 3 * Cp, TC), lambda n, h, co: (0, 0, co)),
                 pl.BlockSpec((1, TC), lambda n, h, co: (0, co))]
    args += [wp, bp]
    if residual is not None:
        in_specs.append(pl.BlockSpec((1, TH, W, TC), lambda n, h, co: (n, h, 0, co)))
        args.append(residual)

    return pl.pallas_call(
        functools.partial(_conv3x3_kernel, prologue=prologue,
                          relu_prologue=relu_prologue,
                          residual=residual is not None),
        out_shape=jax.ShapeDtypeStruct((N, H, W, cop), ACT_DTYPE),
        grid=grid,
        in_specs=in_specs,
        out_specs=pl.BlockSpec((1, TH, W, TC), lambda n, h, co: (n, h, 0, co)),
        scratch_shapes=[pltpu.VMEM((TH + 2, W + 2, Cp), jnp.float32)],
        compiler_params=pltpu.CompilerParams(
            dimension_semantics=("parallel", "parallel", "parallel"),
            vmem_limit_bytes=VMEM_LIMIT),
    )(*args)


def dense(x2d, wp, bp, *, scale_shift=None, relu_prologue=False, residual=None,
          row_cap=1024, cout_cap=512):
    """x2d: (M, Cp); wp: (Cp, cop) padded bf16; bp: (1, cop) f32."""
    M, Cp = x2d.shape
    _, cop = wp.shape
    TM = _row_tile(M, row_cap)
    TC = _channel_tile(cop, cout_cap)
    grid = (M // TM, cop // TC)
    prologue = scale_shift is not None

    in_specs = [pl.BlockSpec((TM, Cp), lambda m, co: (m, 0))]
    args = [x2d]
    if prologue:
        in_specs += [pl.BlockSpec((1, Cp), lambda m, co: (0, 0))] * 2
        args += [scale_shift[0], scale_shift[1]]
    in_specs += [pl.BlockSpec((Cp, TC), lambda m, co: (0, co)),
                 pl.BlockSpec((1, TC), lambda m, co: (0, co))]
    args += [wp, bp]
    if residual is not None:
        in_specs.append(pl.BlockSpec((TM, TC), lambda m, co: (m, co)))
        args.append(residual)

    return pl.pallas_call(
        functools.partial(_dense_kernel, prologue=prologue,
                          relu_prologue=relu_prologue,
                          residual=residual is not None),
        out_shape=jax.ShapeDtypeStruct((M, cop), ACT_DTYPE),
        grid=grid,
        in_specs=in_specs,
        out_specs=pl.BlockSpec((TM, TC), lambda m, co: (m, co)),
        compiler_params=pltpu.CompilerParams(
            dimension_semantics=("parallel", "parallel"),
            vmem_limit_bytes=VMEM_LIMIT),
    )(*args)


def spatial_attention(qkv, cp):
    """qkv: (N, L, 3*cp) fused projections -> (N, L, cp)."""
    # TODO(synk): switch to a flash-style (KV-tiled online-softmax) kernel when
    # L = H*W grows past ~1-2K so the LxL score matrix stays out of VMEM (v7x).
    N, L, _ = qkv.shape
    return pl.pallas_call(
        _attn_kernel,
        out_shape=jax.ShapeDtypeStruct((N, L, cp), ACT_DTYPE),
        grid=(N,),
        in_specs=[pl.BlockSpec((1, L, cp), lambda n: (n, 0, 0)),
                  pl.BlockSpec((1, L, cp), lambda n: (n, 0, 1)),
                  pl.BlockSpec((1, L, cp), lambda n: (n, 0, 2))],
        out_specs=pl.BlockSpec((1, L, cp), lambda n: (n, 0, 0)),
        compiler_params=pltpu.CompilerParams(
            dimension_semantics=("parallel",), vmem_limit_bytes=VMEM_LIMIT),
    )(qkv, qkv, qkv)


# ----------------------------------------------------------------------------
# BatchNorm folding and parameter prep
# ----------------------------------------------------------------------------
def _bn_scale_shift(x, bn):
    """Training-mode BatchNorm2d folded to per-channel f32 (scale, shift).

    # TODO(synk): eval-mode running_mean/running_var buffers were not part of
    # the provided spec; batch statistics (global over N*H*W) are used.
    """
    cp = x.shape[-1]
    xf = x.astype(jnp.float32)
    mean = jnp.mean(xf, axis=(0, 1, 2))
    var = jnp.maximum(jnp.mean(xf * xf, axis=(0, 1, 2)) - mean * mean, 0.0)
    scale = _pad_vec(bn["gamma"], cp) * jax.lax.rsqrt(var + BN_EPS)
    shift = _pad_vec(bn["beta"], cp) - mean * scale
    return scale.reshape(1, cp), shift.reshape(1, cp)


def _prep_1x1(p):
    w = p["w"].reshape(p["w"].shape[-2], p["w"].shape[-1])
    cin, cout = w.shape
    cip, cop = _rup(cin), _rup(cout)
    wp = jnp.pad(w, ((0, cip - cin), (0, cop - cout))).astype(ACT_DTYPE)
    bp = _pad_vec(p["b"], cop).reshape(1, cop)
    return wp, bp


def _prep_qkv(p):
    c_true = p["q"]["w"].shape[-2]
    wq, bq = _prep_1x1(p["q"])
    wk, bk = _prep_1x1(p["k"])
    wv, bv = _prep_1x1(p["v"])
    s = 1.0 / math.sqrt(float(c_true))              # fold softmax scale into q
    wq = (wq.astype(jnp.float32) * s).astype(ACT_DTYPE)
    bq = bq * s
    return (jnp.concatenate([wq, wk, wv], axis=1),
            jnp.concatenate([bq, bk, bv], axis=1))


# ----------------------------------------------------------------------------
# Parameter init (deterministic, PyTorch-like uniform fan-in init, true sizes)
# ----------------------------------------------------------------------------
def _init_conv(key, kh, kw, cin, cout):
    wk, bk = jax.random.split(key)
    bound = 1.0 / math.sqrt(cin * kh * kw)
    w = jax.random.uniform(wk, (kh, kw, cin, cout), jnp.float32, -bound, bound)
    b = jax.random.uniform(bk, (cout,), jnp.float32, -bound, bound)
    return {"w": w, "b": b}


def _init_bn(c):
    return {"gamma": jnp.ones((c,), jnp.float32),
            "beta": jnp.zeros((c,), jnp.float32)}


def _init_resblock(key, cin, cout):
    k1, k2, k3 = jax.random.split(key, 3)
    p = {"norm1": _init_bn(cin), "conv1": _init_conv(k1, 3, 3, cin, cout),
         "norm2": _init_bn(cout), "conv2": _init_conv(k2, 3, 3, cout, cout)}
    if cin != cout:
        p["skip"] = _init_conv(k3, 1, 1, cin, cout)
    return p


def _init_attn(key, c):
    k1, k2, k3, k4 = jax.random.split(key, 4)
    return {"norm": _init_bn(c),
            "q": _init_conv(k1, 1, 1, c, c), "k": _init_conv(k2, 1, 1, c, c),
            "v": _init_conv(k3, 1, 1, c, c), "proj": _init_conv(k4, 1, 1, c, c)}


def init_decoder(key, ch, out_channels, num_resblocks, attn_resolutions,
                 in_channels, resolution, ch_mult):
    def keys():
        i = 0
        while True:
            yield jax.random.fold_in(key, i)
            i += 1
    kit = keys()

    num_res = len(ch_mult)
    block_in = ch * ch_mult[num_res - 1]
    curr_res = resolution // 2 ** (num_res - 1)

    params = {"conv_in": _init_conv(next(kit), 3, 3, in_channels, block_in),
              "mid": {"block_1": _init_resblock(next(kit), block_in, block_in),
                      "attn_1": _init_attn(next(kit), block_in),
                      "block_2": _init_resblock(next(kit), block_in, block_in)}}

    up = [None] * num_res
    for i_level in reversed(range(num_res)):
        block_out = ch * ch_mult[i_level]
        blocks, attns = [], []
        for _ in range(num_resblocks + 1):
            blocks.append(_init_resblock(next(kit), block_in, block_out))
            block_in = block_out
            if curr_res in attn_resolutions:
                attns.append(_init_attn(next(kit), block_in))
        lvl = {"block": blocks, "attn": attns}
        if i_level != 0:
            lvl["upsample"] = _init_conv(next(kit), 3, 3, block_in, block_in)
            curr_res *= 2
        up[i_level] = lvl
    params["up"] = up
    params["norm_out"] = _init_bn(block_in)
    params["conv_out"] = _init_conv(next(kit), 3, 3, block_in, out_channels)
    return params


# ----------------------------------------------------------------------------
# Forward blocks
# ----------------------------------------------------------------------------
def resblock_fwd(p, x):
    # TODO(synk): ResBlock source not provided; standard norm->ReLU->conv x2
    # with a 1x1 shortcut when channel counts differ.
    N, H, W, Cp = x.shape
    ss1 = _bn_scale_shift(x, p["norm1"])
    h = conv3x3(x, p["conv1"]["w"], p["conv1"]["b"],
                scale_shift=ss1, relu_prologue=True)
    ss2 = _bn_scale_shift(h, p["norm2"])
    if "skip" in p:
        wp, bp = _prep_1x1(p["skip"])
        skip = dense(x.reshape(N * H * W, Cp), wp, bp).reshape(N, H, W, -1)
    else:
        skip = x
    # second conv fuses norm2+ReLU prologue and the residual-add epilogue
    return conv3x3(h, p["conv2"]["w"], p["conv2"]["b"],
                   scale_shift=ss2, relu_prologue=True, residual=skip)


def attnblock_fwd(p, x):
    # TODO(synk): AttnBlock source not provided; standard single-head spatial
    # self-attention with residual.  The reference `_, h = attn(x)` keeps only
    # this residual output.
    N, H, W, Cp = x.shape
    L = H * W
    ss = _bn_scale_shift(x, p["norm"])
    x2d = x.reshape(N * L, Cp)
    wqkv, bqkv = _prep_qkv(p)
    qkv = dense(x2d, wqkv, bqkv, scale_shift=ss)            # fused norm + QKV matmul
    attn = spatial_attention(qkv.reshape(N, L, 3 * Cp), Cp)
    wp, bp = _prep_1x1(p["proj"])
    out = dense(attn.reshape(N * L, Cp), wp, bp, residual=x2d)
    return out.reshape(N, H, W, Cp)


def upsample_fwd(p, x):
    h = conv3x3(x, p["w"], p["b"])
    # TODO(synk): the 2x nearest-neighbour repeat could be fused into the conv
    # output store; kept in plain JAX for lowering robustness.
    return jnp.repeat(jnp.repeat(h, 2, axis=1), 2, axis=2)


def decoder_forward(params, z_nchw):
    # External NCHW; internal NHWC with channels padded to a multiple of 128
    # (padded lanes stay exactly zero) so every Pallas store is lane-dense.
    z = jnp.transpose(z_nchw, (0, 2, 3, 1))
    z = _pad_channels(z, _rup(z.shape[-1])).astype(ACT_DTYPE)

    h = conv3x3(z, params["conv_in"]["w"], params["conv_in"]["b"])
    h = resblock_fwd(params["mid"]["block_1"], h)
    h = attnblock_fwd(params["mid"]["attn_1"], h)
    h = resblock_fwd(params["mid"]["block_2"], h)

    for i_level in reversed(range(len(params["up"]))):
        lvl = params["up"][i_level]
        for i_block in range(len(lvl["block"])):
            h = resblock_fwd(lvl["block"][i_block], h)
            if len(lvl["attn"]) > 0:
                h = attnblock_fwd(lvl["attn"][i_block], h)
        if i_level != 0:
            h = upsample_fwd(lvl["upsample"], h)

    ss = _bn_scale_shift(h, params["norm_out"])
    out_ch = params["conv_out"]["w"].shape[-1]
    h = conv3x3(h, params["conv_out"]["w"], params["conv_out"]["b"],
                scale_shift=ss, relu_prologue=True)
    h = h[..., :out_ch].astype(jnp.float32)
    return jnp.transpose(h, (0, 3, 1, 2))


# ----------------------------------------------------------------------------
if __name__ == "__main__":
    key = jax.random.PRNGKey(0)
    pkey, zkey, ckey = jax.random.split(key, 3)

    # Standalone check of the fused conv3x3 kernel (exercises the multi-H-tile
    # halo path and multiple Cout tiles) against lax.conv on the same
    # bf16-quantized inputs.
    kx, kw2, kb2 = jax.random.split(ckey, 3)
    n, hh, ww, ci, co = 1, 64, 16, 40, 200
    xc = jax.random.normal(kx, (n, hh, ww, ci), jnp.float32)
    wc = jax.random.normal(kw2, (3, 3, ci, co), jnp.float32) * 0.05
    bc = jax.random.normal(kb2, (co,), jnp.float32) * 0.05
    xp = _pad_channels(xc, _rup(ci)).astype(ACT_DTYPE)
    got = conv3x3(xp, wc, bc, cout_cap=128)[..., :co].astype(jnp.float32)
    ref = jax.lax.conv_general_dilated(
        xp[..., :ci].astype(jnp.float32),
        wc.astype(ACT_DTYPE).astype(jnp.float32),
        (1, 1), "SAME", dimension_numbers=("NHWC", "HWIO", "NHWC")) + bc
    err = float(jnp.max(jnp.abs(got - ref)))
    assert jnp.allclose(got, ref, atol=3e-2, rtol=3e-2), err

    # Full decoder forward.  ch=8, ch_mult=(1,2) -> latent at 32//2 = 16x16
    # with 4 channels; attention at resolution 16; output 3x32x32.
    params = init_decoder(pkey, ch=8, out_channels=3, num_resblocks=1,
                          attn_resolutions=(16,), in_channels=4,
                          resolution=32, ch_mult=(1, 2))
    z = jax.random.normal(zkey, (2, 4, 16, 16), jnp.float32)  # NCHW
    out = jax.block_until_ready(jax.jit(decoder_forward)(params, z))
    assert out.shape == (2, 3, 32, 32), out.shape
    assert bool(jnp.all(jnp.isfinite(out)))
    print("KERNEL_OK")
</pallas_src>

<mosaic_0001>
module attributes {stable_mosaic.version = 11 : i64} {
  func.func @_conv3x3_kernel(%arg0: i32, %arg1: i32, %arg2: i32, %arg3: memref<1x32x16x128xbf16, #tpu.memory_space<vmem>>, %arg4: memref<1x1x16x128xbf16, #tpu.memory_space<vmem>>, %arg5: memref<1x1x16x128xbf16, #tpu.memory_space<vmem>>, %arg6: memref<3x384x128xbf16, #tpu.memory_space<vmem>>, %arg7: memref<1x128xf32, #tpu.memory_space<vmem>>, %arg8: memref<1x32x16x128xbf16, #tpu.memory_space<vmem>>, %arg9: memref<34x18x128xf32, #tpu.memory_space<vmem>>) attributes {dimension_semantics = [#tpu.dimension_semantics<parallel>, #tpu.dimension_semantics<parallel>, #tpu.dimension_semantics<parallel>], iteration_bounds = array<i64: 1, 2, 2>, scalar_prefetch = 0 : i64, scratch_operands = 1 : i64, tpu.core_type = #tpu.core_type<tc>, window_params = [{transform_indices = @transform_0, window_bounds = array<i64: 1, 32, 16, 128>}, {transform_indices = @transform_1, window_bounds = array<i64: 1, 1, 16, 128>}, {transform_indices = @transform_2, window_bounds = array<i64: 1, 1, 16, 128>}, {transform_indices = @transform_3, window_bounds = array<i64: 3, 384, 128>}, {transform_indices = @transform_4, window_bounds = array<i64: 1, 128>}, {transform_indices = @transform_5, window_bounds = array<i64: 1, 32, 16, 128>}]} {
    %c0 = arith.constant 0 : index
    %c0_0 = arith.constant 0 : index
    %c0_1 = arith.constant 0 : index
    %c0_2 = arith.constant 0 : index
    %0 = vector.load %arg4[%c0, %c0_0, %c0_1, %c0_2] : memref<1x1x16x128xbf16, #tpu.memory_space<vmem>>, vector<1x1x16x128xbf16>
    %1 = vector.shape_cast %0 : vector<1x1x16x128xbf16> to vector<1x16x128xbf16>
    %2 = arith.extf %1 : vector<1x16x128xbf16> to vector<1x16x128xf32>
    %c0_i32 = arith.constant 0 : i32
    %3 = arith.cmpi sgt, %arg1, %c0_i32 : i32
    %cst = arith.constant 1.000000e+00 : f32
    %cst_3 = arith.constant 0.000000e+00 : f32
    %4 = arith.select %3, %cst, %cst_3 : f32
    %5 = vector.broadcast %4 : f32 to vector<1x16x128xf32>
    %6 = arith.mulf %2, %5 : vector<1x16x128xf32>
    %c0_4 = arith.constant 0 : index
    %c0_5 = arith.constant 0 : index
    %c0_6 = arith.constant 0 : index
    %c0_7 = arith.constant 0 : index
    %7 = vector.load %arg5[%c0_4, %c0_5, %c0_6, %c0_7] : memref<1x1x16x128xbf16, #tpu.memory_space<vmem>>, vector<1x1x16x128xbf16>
    %8 = vector.shape_cast %7 : vector<1x1x16x128xbf16> to vector<1x16x128xbf16>
    %9 = arith.extf %8 : vector<1x16x128xbf16> to vector<1x16x128xf32>
    %c1_i32 = arith.constant 1 : i32
    %10 = arith.addi %arg1, %c1_i32 : i32
    %c2_i32 = arith.constant 2 : i32
    %11 = arith.cmpi slt, %10, %c2_i32 : i32
    %cst_8 = arith.constant 1.000000e+00 : f32
    %cst_9 = arith.constant 0.000000e+00 : f32
    %12 = arith.select %11, %cst_8, %cst_9 : f32
    %13 = vector.broadcast %12 : f32 to vector<1x16x128xf32>
    %14 = arith.mulf %9, %13 : vector<1x16x128xf32>
    %c0_10 = arith.constant 0 : index
    %c1 = arith.constant 1 : index
    %c0_11 = arith.constant 0 : index
    %15 = vector.load %arg9[%c0_10, %c1, %c0_11] : memref<34x18x128xf32, #tpu.memory_space<vmem>>, vector<1x16x128xf32>
    tpu.vector_store %arg9[%c0_10, %c1, %c0_11], %6 {strides = array<i32>} : memref<34x18x128xf32, #tpu.memory_space<vmem>>, vector<1x16x128xf32>,
    %c33 = arith.constant 33 : index
    %c1_12 = arith.constant 1 : index
    %c0_13 = arith.constant 0 : index
    %16 = vector.load %arg9[%c33, %c1_12, %c0_13] : memref<34x18x128xf32, #tpu.memory_space<vmem>>, vector<1x16x128xf32>
    tpu.vector_store %arg9[%c33, %c1_12, %c0_13], %14 {strides = array<i32>} : memref<34x18x128xf32, #tpu.memory_space<vmem>>, vector<1x16x128xf32>,
    %c0_14 = arith.constant 0 : index
    %c0_15 = arith.constant 0 : index
    %c0_16 = arith.constant 0 : index
    %c0_17 = arith.constant 0 : index
    %17 = vector.load %arg3[%c0_14, %c0_15, %c0_16, %c0_17] : memref<1x32x16x128xbf16, #tpu.memory_space<vmem>>, vector<1x32x16x128xbf16>
    %18 = vector.shape_cast %17 : vector<1x32x16x128xbf16> to vector<32x16x128xbf16>
    %19 = arith.extf %18 : vector<32x16x128xbf16> to vector<32x16x128xf32>
    %c1_18 = arith.constant 1 : index
    %c1_19 = arith.constant 1 : index
    %c0_20 = arith.constant 0 : index
    %20 = vector.load %arg9[%c1_18, %c1_19, %c0_20] : memref<34x18x128xf32, #tpu.memory_space<vmem>>, vector<32x16x128xf32>
    tpu.vector_store %arg9[%c1_18, %c1_19, %c0_20], %19 {strides = array<i32>} : memref<34x18x128xf32, #tpu.memory_space<vmem>>, vector<32x16x128xf32>,
    %cst_21 = arith.constant 0.000000e+00 : f32
    %21 = vector.broadcast %cst_21 : f32 to vector<34x1x128xf32>
    %c0_22 = arith.constant 0 : index
    %c0_23 = arith.constant 0 : index
    %c0_24 = arith.constant 0 : index
    %22 = vector.load %arg9[%c0_22, %c0_23, %c0_24] : memref<34x18x128xf32, #tpu.memory_space<vmem>>, vector<34x1x128xf32>
    tpu.vector_store %arg9[%c0_22, %c0_23, %c0_24], %21 {strides = array<i32>} : memref<34x18x128xf32, #tpu.memory_space<vmem>>, vector<34x1x128xf32>,
    %c0_25 = arith.constant 0 : index
    %c17 = arith.constant 17 : index
    %c0_26 = arith.constant 0 : index
    %23 = vector.load %arg9[%c0_25, %c17, %c0_26] : memref<34x18x128xf32, #tpu.memory_space<vmem>>, vector<34x1x128xf32>
    tpu.vector_store %arg9[%c0_25, %c17, %c0_26], %21 {strides = array<i32>} : memref<34x18x128xf32, #tpu.memory_space<vmem>>, vector<34x1x128xf32>,
    %cst_27 = arith.constant 0.000000e+00 : f32
    %24 = vector.broadcast %cst_27 : f32 to vector<512x128xf32>
    %c0_28 = arith.constant 0 : index
    %c0_29 = arith.constant 0 : index
    %c0_30 = arith.constant 0 : index
    %25 = vector.load %arg9[%c0_28, %c0_29, %c0_30] : memref<34x18x128xf32, #tpu.memory_space<vmem>>, vector<32x18x128xf32>
    %26 = vector.extract_strided_slice %25 {offsets = [0, 0, 0], sizes = [32, 16, 128], strides = [1, 1, 1]} : vector<32x18x128xf32> to vector<32x16x128xf32>
    %27 = arith.truncf %26 : vector<32x16x128xf32> to vector<32x16x128xbf16>
    %28 = vector.extract_strided_slice %25 {offsets = [0, 1, 0], sizes = [32, 16, 128], strides = [1, 1, 1]} : vector<32x18x128xf32> to vector<32x16x128xf32>
    %29 = arith.truncf %28 : vector<32x16x128xf32> to vector<32x16x128xbf16>
    %30 = vector.extract_strided_slice %25 {offsets = [0, 2, 0], sizes = [32, 16, 128], strides = [1, 1, 1]} : vector<32x18x128xf32> to vector<32x16x128xf32>
    %31 = arith.truncf %30 : vector<32x16x128xf32> to vector<32x16x128xbf16>
    %32 = tpu.concatenate %27, %29, %31 in 2 : vector<32x16x128xbf16>, vector<32x16x128xbf16>, vector<32x16x128xbf16> -> vector<32x16x384xbf16>
    %33 = vector.shape_cast %32 : vector<32x16x384xbf16> to vector<512x384xbf16>
    %c0_31 = arith.constant 0 : index
    %c0_32 = arith.constant 0 : index
    %c0_33 = arith.constant 0 : index
    %34 = vector.load %arg6[%c0_31, %c0_32, %c0_33] : memref<3x384x128xbf16, #tpu.memory_space<vmem>>, vector<1x384x128xbf16>
    %35 = vector.shape_cast %34 : vector<1x384x128xbf16> to vector<384x128xbf16>
    %cst_34 = arith.constant dense<0.000000e+00> : vector<512x128xf32>
    %36 = tpu.matmul %33, %35, %cst_34 {dimension_numbers = #tpu.dot_dimension_numbers<[1], [0], [0], [1], [0, 0, 1, 1], [], []>} : vector<512x384xbf16>, vector<384x128xbf16>, vector<512x128xf32> -> vector<512x128xf32>
    %37 = arith.addf %24, %36 : vector<512x128xf32>
    %c1_35 = arith.constant 1 : index
    %c0_36 = arith.constant 0 : index
    %c0_37 = arith.constant 0 : index
    %38 = vector.load %arg9[%c1_35, %c0_36, %c0_37] : memref<34x18x128xf32, #tpu.memory_space<vmem>>, vector<32x18x128xf32>
    %39 = vector.extract_strided_slice %38 {offsets = [0, 0, 0], sizes = [32, 16, 128], strides = [1, 1, 1]} : vector<32x18x128xf32> to vector<32x16x128xf32>
    %40 = arith.truncf %39 : vector<32x16x128xf32> to vector<32x16x128xbf16>
    %41 = vector.extract_strided_slice %38 {offsets = [0, 1, 0], sizes = [32, 16, 128], strides = [1, 1, 1]} : vector<32x18x128xf32> to vector<32x16x128xf32>
    %42 = arith.truncf %41 : vector<32x16x128xf32> to vector<32x16x128xbf16>
    %43 = vector.extract_strided_slice %38 {offsets = [0, 2, 0], sizes = [32, 16, 128], strides = [1, 1, 1]} : vector<32x18x128xf32> to vector<32x16x128xf32>
    %44 = arith.truncf %43 : vector<32x16x128xf32> to vector<32x16x128xbf16>
    %45 = tpu.concatenate %40, %42, %44 in 2 : vector<32x16x128xbf16>, vector<32x16x128xbf16>, vector<32x16x128xbf16> -> vector<32x16x384xbf16>
    %46 = vector.shape_cast %45 : vector<32x16x384xbf16> to vector<512x384xbf16>
    %c1_38 = arith.constant 1 : index
    %c0_39 = arith.constant 0 : index
    %c0_40 = arith.constant 0 : index
    %47 = vector.load %arg6[%c1_38, %c0_39, %c0_40] : memref<3x384x128xbf16, #tpu.memory_space<vmem>>, vector<1x384x128xbf16>
    %48 = vector.shape_cast %47 : vector<1x384x128xbf16> to vector<384x128xbf16>
    %cst_41 = arith.constant dense<0.000000e+00> : vector<512x128xf32>
    %49 = tpu.matmul %46, %48, %cst_41 {dimension_numbers = #tpu.dot_dimension_numbers<[1], [0], [0], [1], [0, 0, 1, 1], [], []>} : vector<512x384xbf16>, vector<384x128xbf16>, vector<512x128xf32> -> vector<512x128xf32>
    %50 = arith.addf %37, %49 : vector<512x128xf32>
    %c2 = arith.constant 2 : index
    %c0_42 = arith.constant 0 : index
    %c0_43 = arith.constant 0 : index
    %51 = vector.load %arg9[%c2, %c0_42, %c0_43] : memref<34x18x128xf32, #tpu.memory_space<vmem>>, vector<32x18x128xf32>
    %52 = vector.extract_strided_slice %51 {offsets = [0, 0, 0], sizes = [32, 16, 128], strides = [1, 1, 1]} : vector<32x18x128xf32> to vector<32x16x128xf32>
    %53 = arith.truncf %52 : vector<32x16x128xf32> to vector<32x16x128xbf16>
    %54 = vector.extract_strided_slice %51 {offsets = [0, 1, 0], sizes = [32, 16, 128], strides = [1, 1, 1]} : vector<32x18x128xf32> to vector<32x16x128xf32>
    %55 = arith.truncf %54 : vector<32x16x128xf32> to vector<32x16x128xbf16>
    %56 = vector.extract_strided_slice %51 {offsets = [0, 2, 0], sizes = [32, 16, 128], strides = [1, 1, 1]} : vector<32x18x128xf32> to vector<32x16x128xf32>
    %57 = arith.truncf %56 : vector<32x16x128xf32> to vector<32x16x128xbf16>
    %58 = tpu.concatenate %53, %55, %57 in 2 : vector<32x16x128xbf16>, vector<32x16x128xbf16>, vector<32x16x128xbf16> -> vector<32x16x384xbf16>
    %59 = vector.shape_cast %58 : vector<32x16x384xbf16> to vector<512x384xbf16>
    %c2_44 = arith.constant 2 : index
    %c0_45 = arith.constant 0 : index
    %c0_46 = arith.constant 0 : index
    %60 = vector.load %arg6[%c2_44, %c0_45, %c0_46] : memref<3x384x128xbf16, #tpu.memory_space<vmem>>, vector<1x384x128xbf16>
    %61 = vector.shape_cast %60 : vector<1x384x128xbf16> to vector<384x128xbf16>
    %cst_47 = arith.constant dense<0.000000e+00> : vector<512x128xf32>
    %62 = tpu.matmul %59, %61, %cst_47 {dimension_numbers = #tpu.dot_dimension_numbers<[1], [0], [0], [1], [0, 0, 1, 1], [], []>} : vector<512x384xbf16>, vector<384x128xbf16>, vector<512x128xf32> -> vector<512x128xf32>
    %63 = arith.addf %50, %62 : vector<512x128xf32>
    %c0_48 = arith.constant 0 : index
    %c0_49 = arith.constant 0 : index
    %64 = vector.load %arg7[%c0_48, %c0_49] : memref<1x128xf32, #tpu.memory_space<vmem>>, vector<1x128xf32>
    %65 = vector.broadcast %64 : vector<1x128xf32> to vector<512x128xf32>
    %66 = arith.addf %63, %65 : vector<512x128xf32>
    %67 = vector.shape_cast %66 : vector<512x128xf32> to vector<1x32x16x128xf32>
    %68 = arith.truncf %67 : vector<1x32x16x128xf32> to vector<1x32x16x128xbf16>
    %c0_50 = arith.constant 0 : index
    %c0_51 = arith.constant 0 : index
    %c0_52 = arith.constant 0 : index
    %c0_53 = arith.constant 0 : index
    %69 = vector.load %arg8[%c0_50, %c0_51, %c0_52, %c0_53] : memref<1x32x16x128xbf16, #tpu.memory_space<vmem>>, vector<1x32x16x128xbf16>
    tpu.vector_store %arg8[%c0_50, %c0_51, %c0_52, %c0_53], %68 {strides = array<i32>} : memref<1x32x16x128xbf16, #tpu.memory_space<vmem>>, vector<1x32x16x128xbf16>,
    return
  }
  func.func @transform_0(%arg0: i32, %arg1: i32, %arg2: i32) -> (i32, i32, i32, i32) {
    %c0_i32 = arith.constant 0 : i32
    %c0_i32_0 = arith.constant 0 : i32
    %c0_i32_1 = arith.constant 0 : i32
    return %arg0, %arg1, %c0_i32, %c0_i32_0 : i32, i32, i32, i32
  }
  func.func @transform_1(%arg0: i32, %arg1: i32, %arg2: i32) -> (i32, i32, i32, i32) {
    %c32_i32 = arith.constant 32 : i32
    %0 = arith.muli %arg1, %c32_i32 : i32
    %c1_i32 = arith.constant 1 : i32
    %1 = arith.subi %0, %c1_i32 : i32
    %c0_i32 = arith.constant 0 : i32
    %2 = arith.maxsi %1, %c0_i32 : i32
    %c0_i32_0 = arith.constant 0 : i32
    %c0_i32_1 = arith.constant 0 : i32
    %c0_i32_2 = arith.constant 0 : i32
    return %arg0, %2, %c0_i32_0, %c0_i32_1 : i32, i32, i32, i32
  }
  func.func @transform_2(%arg0: i32, %arg1: i32, %arg2: i32) -> (i32, i32, i32, i32) {
    %c1_i32 = arith.constant 1 : i32
    %0 = arith.addi %arg1, %c1_i32 : i32
    %c32_i32 = arith.constant 32 : i32
    %1 = arith.muli %0, %c32_i32 : i32
    %c63_i32 = arith.constant 63 : i32
    %2 = arith.minsi %1, %c63_i32 : i32
    %c0_i32 = arith.constant 0 : i32
    %c0_i32_0 = arith.constant 0 : i32
    %c0_i32_1 = arith.constant 0 : i32
    return %arg0, %2, %c0_i32, %c0_i32_0 : i32, i32, i32, i32
  }
  func.func @transform_3(%arg0: i32, %arg1: i32, %arg2: i32) -> (i32, i32, i32) {
    %c0_i32 = arith.constant 0 : i32
    %c0_i32_0 = arith.constant 0 : i32
    %c0_i32_1 = arith.constant 0 : i32
    return %c0_i32, %c0_i32_0, %arg2 : i32, i32, i32
  }
  func.func @transform_4(%arg0: i32, %arg1: i32, %arg2: i32) -> (i32, i32) {
    %c0_i32 = arith.constant 0 : i32
    %c0_i32_0 = arith.constant 0 : i32
    return %c0_i32, %arg2 : i32, i32
  }
  func.func @transform_5(%arg0: i32, %arg1: i32, %arg2: i32) -> (i32, i32, i32, i32) {
    %c0_i32 = arith.constant 0 : i32
    %c0_i32_0 = arith.constant 0 : i32
    return %arg0, %arg1, %c0_i32, %arg2 : i32, i32, i32, i32
  }
}

</mosaic_0001>

<llo_original>
// kernel: tpu_custom_call.1
$region0: #{tpu_custom_call.1}
  #allocation0 [shape = 'u32[]', space=smem, size = 0x4, offset = 0x4, fixed_abs, tag = 'smem constant byte address 0x4 - core index']
  #allocation1 [shape = 'u32[72,128]{1,0:T(1,128)}', space=vmem, size = 0x9000, scoped, tag = 'internal scratch']
  #allocation2 [shape = 'f32[34,18,128]{2,1,0:T(8,128)}', space=vmem, size = 0x66000, scoped, tag = 'scratch operand']
  %s0 = inlined_call_operand.hbm [shape: bf16[1,64,16,128], index: 0, kind: input, shape index: {}]
  %s1 = inlined_call_operand.hbm [shape: bf16[1,64,16,128], index: 1, kind: input, shape index: {}]
  %s2 = inlined_call_operand.hbm [shape: bf16[1,64,16,128], index: 2, kind: input, shape index: {}]
  %s3 = inlined_call_operand.hbm [shape: bf16[3,384,256], index: 3, kind: input, shape index: {}]
  %s4 = inlined_call_operand.vmem [shape: f32[1,256], index: 4, kind: input, shape index: {}]
  %s5 = inlined_call_operand.hbm [shape: bf16[1,64,16,256], index: 5, kind: output, shape index: {}]
  %s6 = sld [smem:[#allocation0]]
  $region69: #{tpu_custom_call.1} parent=0
    _
  %s8 = ssub.s32 1, %s6
  %s9 = scalar_select 0, %s8, %s6
  $region1: #{tpu_custom_call.1} parent=0
    #allocation3 [shape = 'u8[262144]{0}', space=vmem, size = 0x40000, scoped, tag = 'input window, operand 0']
    #allocation4 [shape = 's32[2]{0}', space=sflag, size = 0x8, scoped, tag = 'scoped memory for tpu_custom_call.1']
    #allocation5 [shape = 's32[2]{0}', space=sflag, size = 0x8, scoped, tag = 'scoped memory for tpu_custom_call.1']
    #allocation6 [shape = 'u8[8192]{0}', space=vmem, size = 0x2000, scoped, tag = 'input window, operand 1']
    #allocation7 [shape = 's32[2]{0}', space=sflag, size = 0x8, scoped, tag = 'scoped memory for tpu_custom_call.1']
    #allocation8 [shape = 'u8[8192]{0}', space=vmem, size = 0x2000, scoped, tag = 'input window, operand 2']
    #allocation9 [shape = 'u8[589824]{0}', space=vmem, size = 0x90000, scoped, tag = 'input window, operand 3']
    #allocation10 [shape = 's32[2]{0}', space=sflag, size = 0x8, scoped, tag = 'scoped memory for tpu_custom_call.1']
    #allocation11 [shape = 'u8[262144]{0}', space=vmem, size = 0x40000, scoped, tag = 'output window, operand 0']
    %10 = vsyncpa [#allocation4], 0
    %s11 = scalar_lea.sflag [#allocation4], 1
    %12 = vsyncpa %s11, 0
    %13 = vsyncpa [#allocation7], 0
    %s14 = scalar_lea.sflag [#allocation7], 1
    %15 = vsyncpa %s14, 0
    %16 = vsyncpa [#allocation10], 0
    %s17 = scalar_lea.sflag [#allocation10], 1
    %18 = vsyncpa %s17, 0
    %19 = vsyncpa [#allocation5], 0
    %s20 = scalar_lea.sflag [#allocation5], 1
    %21 = vsyncpa %s20, 0
    loop: start=0, step=1, limit=6
    $region2: #{tpu_custom_call.1} parent=1 // loop_pre_header
      _
    $region3: #{tpu_custom_call.1} parent=1 // loop_header
      %s23 = sphi 0, %s27
      %p24 = scmp.ge.s32.totalorder %s23, 6
      %s30 = sphi 0, %s49
      %s31 = sphi 0, %s45
      %s32 = sphi 0, %s41
      %s33 = sphi 0, %s30
      %s34 = sphi 0, %s31
      %s35 = sphi 0, %s32
      %s36 = sphi 0, %s33
      %s37 = sphi 0, %s34
      %s38 = sphi 0, %s35
      %s54 = sphi 0, %s56
      %s57 = sphi 0, %s54
      %s58 = sphi 0, %s57
      %s74 = sphi 0, %s58
      %s90 = sphi 0, %s92
      %s93 = sphi 0, %s90
      %s94 = sphi 0, %s93
      %s110 = sphi 0, %s94
      %s126 = sphi 0, %s128
      %s129 = sphi 0, %s126
      %s130 = sphi 0, %s129
      %s146 = sphi 0, %s130
      %s152 = sphi 0, %s154
      %s155 = sphi 0, %s152
      %s156 = sphi 0, %s155
      %s172 = sphi 0, %s156
      %s178 = sphi 0, %s180
      %s181 = sphi 0, %s178
      %s182 = sphi 0, %s181
      %s198 = sphi 0, %s182
      %s208 = sphi 0, %s210
      %s211 = sphi 0, %s208
      %s212 = sphi 0, %s211
      %s228 = sphi 0, %s212
    $region4: #{tpu_custom_call.1} parent=1 // loop_header_branch
      %26 = sbr.rel (%p24) target = $region8
    $region5: #{tpu_custom_call.1} parent=1 // loop_body
      %s28 = ssub.s32 %s23, 1
      %s29 = ssub.s32 %s23, 2
      %s39 = sadd.s32 1, %s32
      %p40 = scmp.ge.s32.totalorder %s39, 2
      %s41 = scalar_select %p40, 0, %s39
      %s42 = sadd.s32 1, %s31
      %s43 = scalar_select %p40, %s42, %s31
      %p44 = scmp.ge.s32.totalorder %s43, 2
      %s45 = scalar_select %p44, 0, %s43
      %s46 = sadd.s32 1, %s30
      %s47 = scalar_select %p44, %s46, %s30
      %p48 = scmp.ge.s32.totalorder %s47, 1
      %s49 = scalar_select %p48, 0, %s47
      %s50 = ssub.s32 %s30, %s49
      %s51 = ssub.s32 %s31, %s45
      %s52 = sor.u32 %s50, %s51
      %p53 = scmp.eq.s32.totalorder %s52, 0
      %s55 = sadd.s32 %s54, 1
      %s56 = scalar_select %p53, %s54, %s55
      %p59 = pneg %p53
      %p60 = scmp.eq.s32.totalorder %s23, 3
      %p61 = por %p59, %p60
      %p62 = scmp.ne.s32.totalorder %s54, %s57
      %p63 = scmp.eq.s32.totalorder %s23, 0
      %p64 = por %p62, %p63
      %p65 = scmp.ne.s32.totalorder %s54, %s57
      %p66 = scmp.eq.s32.totalorder %s28, 3
      %p67 = por %p65, %p66
      %p68 = scmp.ne.s32.totalorder %s57, %s58
      %p69 = scmp.eq.s32.totalorder %s28, 0
      %p70 = por %p68, %p69
      %p71 = scmp.ne.s32.totalorder %s57, %s58
      %p72 = scmp.eq.s32.totalorder %s29, 3
      %p73 = por %p71, %p72
      %p75 = scmp.ne.s32.totalorder %s58, %s74
      %p76 = scmp.eq.s32.totalorder %s29, 0
      %p77 = por %p75, %p76
      %s78 = smul.u32 %s31, 32
      %s79 = ssub.s32 %s78, 1
      %p80 = scmp.gt.s32.totalorder %s79, 0
      %s81 = scalar_select %p80, %s79, 0
      %s82 = smul.u32 %s45, 32
      %s83 = ssub.s32 %s82, 1
      %p84 = scmp.gt.s32.totalorder %s83, 0
      %s85 = scalar_select %p84, %s83, 0
      %s86 = ssub.s32 %s30, %s49
      %s87 = ssub.s32 %s81, %s85
      %s88 = sor.u32 %s86, %s87
      %p89 = scmp.eq.s32.totalorder %s88, 0
      %s91 = sadd.s32 %s90, 1
      %s92 = scalar_select %p89, %s90, %s91
      %p95 = pneg %p89
      %p96 = scmp.eq.s32.totalorder %s23, 3
      %p97 = por %p95, %p96
      %p98 = scmp.ne.s32.totalorder %s90, %s93
      %p99 = scmp.eq.s32.totalorder %s23, 0
      %p100 = por %p98, %p99
      %p101 = scmp.ne.s32.totalorder %s90, %s93
      %p102 = scmp.eq.s32.totalorder %s28, 3
      %p103 = por %p101, %p102
      %p104 = scmp.ne.s32.totalorder %s93, %s94
      %p105 = scmp.eq.s32.totalorder %s28, 0
      %p106 = por %p104, %p105
      %p107 = scmp.ne.s32.totalorder %s93, %s94
      %p108 = scmp.eq.s32.totalorder %s29, 3
      %p109 = por %p107, %p108
      %p111 = scmp.ne.s32.totalorder %s94, %s110
      %p112 = scmp.eq.s32.totalorder %s29, 0
      %p113 = por %p111, %p112
      %s114 = sadd.s32 %s31, 1
      %s115 = smul.u32 %s114, 32
      %p116 = scmp.lt.s32.totalorder %s115, 63
      %s117 = scalar_select %p116, %s115, 63
      %s118 = sadd.s32 %s45, 1
      %s119 = smul.u32 %s118, 32
      %p120 = scmp.lt.s32.totalorder %s119, 63
      %s121 = scalar_select %p120, %s119, 63
      %s122 = ssub.s32 %s30, %s49
      %s123 = ssub.s32 %s117, %s121
      %s124 = sor.u32 %s122, %s123
      %p125 = scmp.eq.s32.totalorder %s124, 0
      %s127 = sadd.s32 %s126, 1
      %s128 = scalar_select %p125, %s126, %s127
      %p131 = pneg %p125
      %p132 = scmp.eq.s32.totalorder %s23, 3
      %p133 = por %p131, %p132
      %p134 = scmp.ne.s32.totalorder %s126, %s129
      %p135 = scmp.eq.s32.totalorder %s23, 0
      %p136 = por %p134, %p135
      %p137 = scmp.ne.s32.totalorder %s126, %s129
      %p138 = scmp.eq.s32.totalorder %s28, 3
      %p139 = por %p137, %p138
      %p140 = scmp.ne.s32.totalorder %s129, %s130
      %p141 = scmp.eq.s32.totalorder %s28, 0
      %p142 = por %p140, %p141
      %p143 = scmp.ne.s32.totalorder %s129, %s130
      %p144 = scmp.eq.s32.totalorder %s29, 3
      %p145 = por %p143, %p144
      %p147 = scmp.ne.s32.totalorder %s130, %s146
      %p148 = scmp.eq.s32.totalorder %s29, 0
      %p149 = por %p147, %p148
      %s150 = ssub.s32 %s32, %s41
      %p151 = scmp.eq.s32.totalorder %s150, 0
      %s153 = sadd.s32 %s152, 1
      %s154 = scalar_select %p151, %s152, %s153
      %p157 = pneg %p151
      %p158 = scmp.eq.s32.totalorder %s23, 3
      %p159 = por %p157, %p158
      %p160 = scmp.ne.s32.totalorder %s152, %s155
      %p161 = scmp.eq.s32.totalorder %s23, 0
      %p162 = por %p160, %p161
      %p163 = scmp.ne.s32.totalorder %s152, %s155
      %p164 = scmp.eq.s32.totalorder %s28, 3
      %p165 = por %p163, %p164
      %p166 = scmp.ne.s32.totalorder %s155, %s156
      %p167 = scmp.eq.s32.totalorder %s28, 0
      %p168 = por %p166, %p167
      %p169 = scmp.ne.s32.totalorder %s155, %s156
      %p170 = scmp.eq.s32.totalorder %s29, 3
      %p171 = por %p169, %p170
      %p173 = scmp.ne.s32.totalorder %s156, %s172
      %p174 = scmp.eq.s32.totalorder %s29, 0
      %p175 = por %p173, %p174
      %s176 = ssub.s32 %s32, %s41
      %p177 = scmp.eq.s32.totalorder %s176, 0
      %s179 = sadd.s32 %s178, 1
      %s180 = scalar_select %p177, %s178, %s179
      %p183 = pneg %p177
      %p184 = scmp.eq.s32.totalorder %s23, 3
      %p185 = por %p183, %p184
      %p186 = scmp.ne.s32.totalorder %s178, %s181
      %p187 = scmp.eq.s32.totalorder %s23, 0
      %p188 = por %p186, %p187
      %p189 = scmp.ne.s32.totalorder %s178, %s181
      %p190 = scmp.eq.s32.totalorder %s28, 3
      %p191 = por %p189, %p190
      %p192 = scmp.ne.s32.totalorder %s181, %s182
      %p193 = scmp.eq.s32.totalorder %s28, 0
      %p194 = por %p192, %p193
      %p195 = scmp.ne.s32.totalorder %s181, %s182
      %p196 = scmp.eq.s32.totalorder %s29, 3
      %p197 = por %p195, %p196
      %p199 = scmp.ne.s32.totalorder %s182, %s198
      %p200 = scmp.eq.s32.totalorder %s29, 0
      %p201 = por %p199, %p200
      %s202 = ssub.s32 %s30, %s49
      %s203 = ssub.s32 %s31, %s45
      %s204 = sor.u32 %s202, %s203
      %s205 = ssub.s32 %s32, %s41
      %s206 = sor.u32 %s204, %s205
      %p207 = scmp.eq.s32.totalorder %s206, 0
      %s209 = sadd.s32 %s208, 1
      %s210 = scalar_select %p207, %s208, %s209
      %p213 = pneg %p207
      %p214 = scmp.eq.s32.totalorder %s23, 3
      %p215 = por %p213, %p214
      %p216 = scmp.ne.s32.totalorder %s208, %s211
      %p217 = scmp.eq.s32.totalorder %s23, 0
      %p218 = por %p216, %p217
      %p219 = scmp.ne.s32.totalorder %s208, %s211
      %p220 = scmp.eq.s32.totalorder %s28, 3
      %p221 = por %p219, %p220
      %p222 = scmp.ne.s32.totalorder %s211, %s212
      %p223 = scmp.eq.s32.totalorder %s28, 0
      %p224 = por %p222, %p223
      %p225 = scmp.ne.s32.totalorder %s211, %s212
      %p226 = scmp.eq.s32.totalorder %s29, 3
      %p227 = por %p225, %p226
      %p229 = scmp.ne.s32.totalorder %s212, %s228
      %p230 = scmp.eq.s32.totalorder %s29, 0
      %p231 = por %p229, %p230
      %p232 = scmp.le.s32.totalorder 1, %s23
      %p233 = scmp.lt.s32.totalorder %s23, 5
      %p234 = pnand %p232, %p233
      %p235 = pneg %p234
      // Predicated region
      $region9: #{tpu_custom_call.1} parent=5 // pred_check
        _
      $region10: #{tpu_custom_call.1} parent=5 // pred_check_branch
        %237 = sbr.rel (%p234) target = $region12
      $region11: #{tpu_custom_call.1} parent=5 // pred_region
        %s238 = ssub.s32 %s23, 1
      $region12: #{tpu_custom_call.1} parent=5 // pred_fallthru
        _
      %p239 = scmp.lt.s32.totalorder %s23, 4
      // Predicated region
      $region13: #{tpu_custom_call.1} parent=5 // pred_check
        %p240 = pneg %p239
      $region14: #{tpu_custom_call.1} parent=5 // pred_check_branch
        %242 = sbr.rel (%p240) target = $region16
      $region15: #{tpu_custom_call.1} parent=5 // pred_region
        // Predicated region
        $region17: #{tpu_custom_call.1} parent=15 // pred_check
          %p243 = pneg %p64
        $region18: #{tpu_custom_call.1} parent=15 // pred_check_branch
          %245 = sbr.rel (%p243) target = $region20
        $region19: #{tpu_custom_call.1} parent=15 // pred_region
          %s246 = sand.u32 %s54, 1
          %s247 = scalar_lea.sflag [#allocation4], %s246
          %s248 = sand.u32 %s54, 1
          %s249 = smul.addr %s248, 256
          %s250 = scalar_lea.vmem [#allocation3], %s249
          %s251 = smul.u32 32, %s31
          %253 = vsyncadd %s247, 0
          %s254 = smul.addr %s251, 2
          %s255 = smul.addr %s30, 128
          %s256 = sadd.s32 %s254, %s255
          %s257 = smul.addr %s256, 4
          %s258 = scalar_lea.hbm %s0, %s257
          %s259 = sshll.u32 %s258, 4
          %s260 = int_to_ptr.hbm [resolvable:$true] %s259
          %s261 = sshll.u32 %s250, 4
          %s262 = int_to_ptr.vmem [resolvable:$true] %s261
          %267 = dma.hbm_to_vmem [thread:$0]  %s260, 4096, %s262, %s247, 64, 64, 4
        $region20: #{tpu_custom_call.1} parent=15 // pred_fallthru
          _
        // Predicated region
        $region21: #{tpu_custom_call.1} parent=15 // pred_check
          %p268 = pneg %p100
        $region22: #{tpu_custom_call.1} parent=15 // pred_check_branch
          %270 = sbr.rel (%p268) target = $region24
        $region23: #{tpu_custom_call.1} parent=15 // pred_region
          %s271 = sand.u32 %s23, 1
          %s272 = scalar_lea.sflag [#allocation7], %s271
          %s273 = sand.u32 %s90, 1
          %s274 = smul.addr %s273, 8
          %s275 = scalar_lea.vmem [#allocation6], %s274
          %s276 = smul.u32 %s31, 32
          %s277 = ssub.s32 %s276, 1
          %p278 = scmp.gt.s32.totalorder %s277, 0
          %s279 = scalar_select %p278, %s277, 0
          %281 = vsyncadd %s272, 0
          %s282 = smul.addr %s279, 2
          %s283 = smul.addr %s30, 128
          %s284 = sadd.s32 %s282, %s283
          %s285 = smul.addr %s284, 4
          %s286 = scalar_lea.hbm %s1, %s285
          %s287 = sshll.u32 %s286, 4
          %s288 = int_to_ptr.hbm [resolvable:$true] %s287
          %s289 = sshll.u32 %s275, 4
          %s290 = int_to_ptr.vmem [resolvable:$true] %s289
          %295 = dma.hbm_to_vmem [thread:$0]  %s288, 128, %s290, %s272, 64, 64, 4
        $region24: #{tpu_custom_call.1} parent=15 // pred_fallthru
          _
        // Predicated region
        $region25: #{tpu_custom_call.1} parent=15 // pred_check
          %p296 = pneg %p136
        $region26: #{tpu_custom_call.1} parent=15 // pred_check_branch
          %298 = sbr.rel (%p296) target = $region28
        $region27: #{tpu_custom_call.1} parent=15 // pred_region
          %s299 = sand.u32 %s23, 1
          %s300 = scalar_lea.sflag [#allocation7], %s299
          %s301 = sand.u32 %s126, 1
          %s302 = smul.addr %s301, 8
          %s303 = scalar_lea.vmem [#allocation8], %s302
          %s304 = sadd.s32 %s31, 1
          %s305 = smul.u32 %s304, 32
          %p306 = scmp.lt.s32.totalorder %s305, 63
          %s307 = scalar_select %p306, %s305, 63
          %309 = vsyncadd %s300, 0
          %s310 = smul.addr %s307, 2
          %s311 = smul.addr %s30, 128
          %s312 = sadd.s32 %s310, %s311
          %s313 = smul.addr %s312, 4
          %s314 = scalar_lea.hbm %s2, %s313
          %s315 = sshll.u32 %s314, 4
          %s316 = int_to_ptr.hbm [resolvable:$true] %s315
          %s317 = sshll.u32 %s303, 4
          %s318 = int_to_ptr.vmem [resolvable:$true] %s317
          %323 = dma.hbm_to_vmem [thread:$0]  %s316, 128, %s318, %s300, 64, 64, 4
        $region28: #{tpu_custom_call.1} parent=15 // pred_fallthru
          _
        // Predicated region
        $region29: #{tpu_custom_call.1} parent=15 // pred_check
          %p324 = pneg %p162
        $region30: #{tpu_custom_call.1} parent=15 // pred_check_branch
          %326 = sbr.rel (%p324) target = $region32
        $region31: #{tpu_custom_call.1} parent=15 // pred_region
          %s327 = sand.u32 %s152, 1
          %s328 = scalar_lea.sflag [#allocation10], %s327
          %s329 = sand.u32 %s152, 1
          %s330 = smul.addr %s329, 576
          %s331 = scalar_lea.vmem [#allocation9], %s330
          %333 = vsyncadd %s328, 0
          %s334 = smul.addr %s32, 4
          %s335 = scalar_lea.hbm %s3, %s334
          %s336 = sshll.u32 %s335, 4
          %s337 = int_to_ptr.hbm [resolvable:$true] %s336
          %s338 = sshll.u32 %s331, 4
          %s339 = int_to_ptr.vmem [resolvable:$true] %s338
          %344 = dma.hbm_to_vmem [thread:$0]  %s337, 9216, %s339, %s328, 128, 64, 4
        $region32: #{tpu_custom_call.1} parent=15 // pred_fallthru
          _
        // Predicated region
        $region33: #{tpu_custom_call.1} parent=15 // pred_check
          %p345 = pneg %p188
        $region34: #{tpu_custom_call.1} parent=15 // pred_check_branch
          %347 = sbr.rel (%p345) target = $region36
        $region35: #{tpu_custom_call.1} parent=15 // pred_region
          %p348 = scmp.lt.s32.totalorder %s32, 1
          %s349 = scalar_select %p348, %s32, 1
          %s350 = scalar_lea.vmem %s4, %s349
        $region36: #{tpu_custom_call.1} parent=15 // pred_fallthru
          _
      $region16: #{tpu_custom_call.1} parent=5 // pred_fallthru
        _
      %p351 = scmp.le.s32.totalorder 1, %s23
      %p352 = scmp.lt.s32.totalorder %s23, 5
      %p353 = pnand %p351, %p352
      %p354 = pneg %p353
      // Predicated region
      $region37: #{tpu_custom_call.1} parent=5 // pred_check
        _
      $region38: #{tpu_custom_call.1} parent=5 // pred_check_branch
        %356 = sbr.rel (%p353) target = $region40
      $region39: #{tpu_custom_call.1} parent=5 // pred_region
        %s357 = ssub.s32 %s23, 1
        %s358 = sand.u32 %s57, 1
        %s359 = scalar_lea.sflag [#allocation4], %s358
        %s360 = sand.u32 %s57, 1
        %s361 = smul.addr %s360, 256
        %s362 = scalar_lea.vmem [#allocation3], %s361
        // Predicated region
        $region41: #{tpu_custom_call.1} parent=39 // pred_check
          %p363 = pneg %p70
        $region42: #{tpu_custom_call.1} parent=39 // pred_check_branch
          %365 = sbr.rel (%p363) target = $region44
        $region43: #{tpu_custom_call.1} parent=39 // pred_region
          %367 = dma.done %s359, 4096
        $region44: #{tpu_custom_call.1} parent=39 // pred_fallthru
          _
        %s368 = sand.u32 %s28, 1
        %s369 = scalar_lea.sflag [#allocation7], %s368
        %s370 = sand.u32 %s93, 1
        %s371 = smul.addr %s370, 8
        %s372 = scalar_lea.vmem [#allocation6], %s371
        // Predicated region
        $region45: #{tpu_custom_call.1} parent=39 // pred_check
          %p373 = pneg %p106
        $region46: #{tpu_custom_call.1} parent=39 // pred_check_branch
          %375 = sbr.rel (%p373) target = $region48
        $region47: #{tpu_custom_call.1} parent=39 // pred_region
          %377 = dma.done %s369, 128
        $region48: #{tpu_custom_call.1} parent=39 // pred_fallthru
          _
        %s378 = sand.u32 %s28, 1
        %s379 = scalar_lea.sflag [#allocation7], %s378
        %s380 = sand.u32 %s129, 1
        %s381 = smul.addr %s380, 8
        %s382 = scalar_lea.vmem [#allocation8], %s381
        // Predicated region
        $region49: #{tpu_custom_call.1} parent=39 // pred_check
          %p383 = pneg %p142
        $region50: #{tpu_custom_call.1} parent=39 // pred_check_branch
          %385 = sbr.rel (%p383) target = $region52
        $region51: #{tpu_custom_call.1} parent=39 // pred_region
          %387 = dma.done %s379, 128
        $region52: #{tpu_custom_call.1} parent=39 // pred_fallthru
          _
        %s388 = sand.u32 %s155, 1
        %s389 = scalar_lea.sflag [#allocation10], %s388
        %s390 = sand.u32 %s155, 1
        %s391 = smul.addr %s390, 576
        %s392 = scalar_lea.vmem [#allocation9], %s391
        // Predicated region
        $region53: #{tpu_custom_call.1} parent=39 // pred_check
          %p393 = pneg %p168
        $region54: #{tpu_custom_call.1} parent=39 // pred_check_branch
          %395 = sbr.rel (%p393) target = $region56
        $region55: #{tpu_custom_call.1} parent=39 // pred_region
          %397 = dma.done %s389, 9216
        $region56: #{tpu_custom_call.1} parent=39 // pred_fallthru
          _
        %s398 = sand.u32 %s57, 1
        %s399 = scalar_lea.sflag [#allocation4], %s398
        %s400 = sand.u32 %s57, 1
        %s401 = smul.addr %s400, 256
        %s402 = scalar_lea.vmem [#allocation3], %s401
        %p403 = pneg %p70
        %p404 = pneg %p67
        %s405 = sand.u32 %s28, 1
        %s406 = scalar_lea.sflag [#allocation7], %s405
        %s407 = sand.u32 %s93, 1
        %s408 = smul.addr %s407, 8
        %s409 = scalar_lea.vmem [#allocation6], %s408
        %p410 = pneg %p106
        %p411 = pneg %p103
        %s412 = sand.u32 %s28, 1
        %s413 = scalar_lea.sflag [#allocation7], %s412
        %s414 = sand.u32 %s129, 1
        %s415 = smul.addr %s414, 8
        %s416 = scalar_lea.vmem [#allocation8], %s415
        %p417 = pneg %p142
        %p418 = pneg %p139
        %s419 = sand.u32 %s155, 1
        %s420 = scalar_lea.sflag [#allocation10], %s419
        %s421 = sand.u32 %s155, 1
        %s422 = smul.addr %s421, 576
        %s423 = scalar_lea.vmem [#allocation9], %s422
        %p424 = pneg %p168
        %p425 = pneg %p165
        %p426 = scmp.lt.s32.totalorder %s35, 1
        %s427 = scalar_select %p426, %s35, 1
        %s428 = scalar_lea.vmem %s4, %s427
        %p429 = pneg %p194
        %p430 = pneg %p191
        %p431 = pneg %p224
        %p432 = pneg %p221
        %s433 = sand.u32 %s211, 1
        %s434 = scalar_lea.sflag [#allocation5], %s433
        %s435 = sand.u32 %s211, 1
        %s436 = smul.addr %s435, 256
        %s437 = scalar_lea.vmem [#allocation11], %s436
        %s438 = smul.u32 32, %s34
        %s439 = smul.u32 %s34, 32
        %s440 = ssub.s32 %s439, 1
        %p441 = scmp.gt.s32.totalorder %s440, 0
        %s442 = scalar_select %p441, %s440, 0
        %s443 = sadd.s32 %s34, 1
        %s444 = smul.u32 %s443, 32
        %p445 = scmp.lt.s32.totalorder %s444, 63
        %s446 = scalar_select %p445, %s444, 63
        %p447 = scmp.lt.s32.totalorder %s35, 1
        %s448 = scalar_select %p447, %s35, 1
        %s449 = scalar_lea.vmem %s4, %s448
        %s450 = smul.u32 32, %s34
        %v451 = vld [vmem:[%s372] sm:$0xf]
        %v452 = vld [vmem:[%s372 + $0x4] sm:$0xf]
        %v453 = vunpack.c.l.bf16 %v451
        %v454 = vunpack.c.l.bf16 %v452
        %p455 = scmp.gt.s32.totalorder %s34, 0
        %s456 = scalar_select %p455, 1.0, 0.0
        %v457 = vstv %s456
        %v458 = vmul.f32 %v453, %v457
        %v459 = vmul.f32 %v454, %v457
        %v460 = vld [vmem:[%s382] sm:$0xf]
        %v461 = vld [vmem:[%s382 + $0x4] sm:$0xf]
        %v462 = vunpack.c.l.bf16 %v460
        %v463 = vunpack.c.l.bf16 %v461
        %s464 = sadd.s32 %s34, 1
        %p465 = scmp.lt.s32.totalorder %s464, 2
        %s466 = scalar_select %p465, 1.0, 0.0
        %v467 = vstv %s466
        %v468 = vmul.f32 %v462, %v467
        %v469 = vmul.f32 %v463, %v467
        %470 = vst [vmem:[#allocation2 + $0x1] sm:$0xff] %v458
        %471 = vst [vmem:[#allocation2 + $0x9] sm:$0xff] %v459
        %s472 = scalar_lea.vmem [#allocation2], 792
        %473 = vst [vmem:[%s472 + $0x1] sm:$0xff] %v468
        %474 = vst [vmem:[%s472 + $0x9] sm:$0xff] %v469
        %v475 = vld [vmem:[%s362] sm:$0xf]
        %v476 = vld [vmem:[%s362 + $0x4] sm:$0xf]
        %v477 = vld [vmem:[%s362 + $0x8] sm:$0xf]
        %v478 = vld [vmem:[%s362 + $0xc] sm:$0xf]
        %v479 = vld [vmem:[%s362 + $0x10] sm:$0xf]
        %v480 = vld [vmem:[%s362 + $0x14] sm:$0xf]
        %v481 = vld [vmem:[%s362 + $0x18] sm:$0xf]
        %v482 = vld [vmem:[%s362 + $0x1c] sm:$0xf]
        %v483 = vld [vmem:[%s362 + $0x20] sm:$0xf]
        %v484 = vld [vmem:[%s362 + $0x24] sm:$0xf]
        %v485 = vld [vmem:[%s362 + $0x28] sm:$0xf]
        %v486 = vld [vmem:[%s362 + $0x2c] sm:$0xf]
        %v487 = vld [vmem:[%s362 + $0x30] sm:$0xf]
        %v488 = vld [vmem:[%s362 + $0x34] sm:$0xf]
        %v489 = vld [vmem:[%s362 + $0x38] sm:$0xf]
        %v490 = vld [vmem:[%s362 + $0x3c] sm:$0xf]
        %v491 = vld [vmem:[%s362 + $0x40] sm:$0xf]
        %v492 = vld [vmem:[%s362 + $0x44] sm:$0xf]
        %v493 = vld [vmem:[%s362 + $0x48] sm:$0xf]
        %v494 = vld [vmem:[%s362 + $0x4c] sm:$0xf]
        %v495 = vld [vmem:[%s362 + $0x50] sm:$0xf]
        %v496 = vld [vmem:[%s362 + $0x54] sm:$0xf]
        %v497 = vld [vmem:[%s362 + $0x58] sm:$0xf]
        %v498 = vld [vmem:[%s362 + $0x5c] sm:$0xf]
        %v499 = vld [vmem:[%s362 + $0x60] sm:$0xf]
        %v500 = vld [vmem:[%s362 + $0x64] sm:$0xf]
        %v501 = vld [vmem:[%s362 + $0x68] sm:$0xf]
        %v502 = vld [vmem:[%s362 + $0x6c] sm:$0xf]
        %v503 = vld [vmem:[%s362 + $0x70] sm:$0xf]
        %v504 = vld [vmem:[%s362 + $0x74] sm:$0xf]
        %v505 = vld [vmem:[%s362 + $0x78] sm:$0xf]
        %v506 = vld [vmem:[%s362 + $0x7c] sm:$0xf]
        %v507 = vld [vmem:[%s362 + $0x80] sm:$0xf]
        %v508 = vld [vmem:[%s362 + $0x84] sm:$0xf]
        %v509 = vld [vmem:[%s362 + $0x88] sm:$0xf]
        %v510 = vld [vmem:[%s362 + $0x8c] sm:$0xf]
        %v511 = vld [vmem:[%s362 + $0x90] sm:$0xf]
        %v512 = vld [vmem:[%s362 + $0x94] sm:$0xf]
        %v513 = vld [vmem:[%s362 + $0x98] sm:$0xf]
        %v514 = vld [vmem:[%s362 + $0x9c] sm:$0xf]
        %v515 = vld [vmem:[%s362 + $0xa0] sm:$0xf]
        %v516 = vld [vmem:[%s362 + $0xa4] sm:$0xf]
        %v517 = vld [vmem:[%s362 + $0xa8] sm:$0xf]
        %v518 = vld [vmem:[%s362 + $0xac] sm:$0xf]
        %v519 = vld [vmem:[%s362 + $0xb0] sm:$0xf]
        %v520 = vld [vmem:[%s362 + $0xb4] sm:$0xf]
        %v521 = vld [vmem:[%s362 + $0xb8] sm:$0xf]
        %v522 = vld [vmem:[%s362 + $0xbc] sm:$0xf]
        %v523 = vld [vmem:[%s362 + $0xc0] sm:$0xf]
        %v524 = vld [vmem:[%s362 + $0xc4] sm:$0xf]
        %v525 = vld [vmem:[%s362 + $0xc8] sm:$0xf]
        %v526 = vld [vmem:[%s362 + $0xcc] sm:$0xf]
        %v527 = vld [vmem:[%s362 + $0xd0] sm:$0xf]
        %v528 = vld [vmem:[%s362 + $0xd4] sm:$0xf]
        %v529 = vld [vmem:[%s362 + $0xd8] sm:$0xf]
        %v530 = vld [vmem:[%s362 + $0xdc] sm:$0xf]
        %v531 = vld [vmem:[%s362 + $0xe0] sm:$0xf]
        %v532 = vld [vmem:[%s362 + $0xe4] sm:$0xf]
        %v533 = vld [vmem:[%s362 + $0xe8] sm:$0xf]
        %v534 = vld [vmem:[%s362 + $0xec] sm:$0xf]
        %v535 = vld [vmem:[%s362 + $0xf0] sm:$0xf]
        %v536 = vld [vmem:[%s362 + $0xf4] sm:$0xf]
        %v537 = vld [vmem:[%s362 + $0xf8] sm:$0xf]
        %v538 = vld [vmem:[%s362 + $0xfc] sm:$0xf]
        %v539 = vunpack.c.l.bf16 %v475
        %v540 = vunpack.c.l.bf16 %v476
        %v541 = vunpack.c.l.bf16 %v477
        %v542 = vunpack.c.l.bf16 %v478
        %v543 = vunpack.c.l.bf16 %v479
        %v544 = vunpack.c.l.bf16 %v480
        %v545 = vunpack.c.l.bf16 %v481
        %v546 = vunpack.c.l.bf16 %v482
        %v547 = vunpack.c.l.bf16 %v483
        %v548 = vunpack.c.l.bf16 %v484
        %v549 = vunpack.c.l.bf16 %v485
        %v550 = vunpack.c.l.bf16 %v486
        %v551 = vunpack.c.l.bf16 %v487
        %v552 = vunpack.c.l.bf16 %v488
        %v553 = vunpack.c.l.bf16 %v489
        %v554 = vunpack.c.l.bf16 %v490
        %v555 = vunpack.c.l.bf16 %v491
        %v556 = vunpack.c.l.bf16 %v492
        %v557 = vunpack.c.l.bf16 %v493
        %v558 = vunpack.c.l.bf16 %v494
        %v559 = vunpack.c.l.bf16 %v495
        %v560 = vunpack.c.l.bf16 %v496
        %v561 = vunpack.c.l.bf16 %v497
        %v562 = vunpack.c.l.bf16 %v498
        %v563 = vunpack.c.l.bf16 %v499
        %v564 = vunpack.c.l.bf16 %v500
        %v565 = vunpack.c.l.bf16 %v501
        %v566 = vunpack.c.l.bf16 %v502
        %v567 = vunpack.c.l.bf16 %v503
        %v568 = vunpack.c.l.bf16 %v504
        %v569 = vunpack.c.l.bf16 %v505
        %v570 = vunpack.c.l.bf16 %v506
        %v571 = vunpack.c.l.bf16 %v507
        %v572 = vunpack.c.l.bf16 %v508
        %v573 = vunpack.c.l.bf16 %v509
        %v574 = vunpack.c.l.bf16 %v510
        %v575 = vunpack.c.l.bf16 %v511
        %v576 = vunpack.c.l.bf16 %v512
        %v577 = vunpack.c.l.bf16 %v513
        %v578 = vunpack.c.l.bf16 %v514
        %v579 = vunpack.c.l.bf16 %v515
        %v580 = vunpack.c.l.bf16 %v516
        %v581 = vunpack.c.l.bf16 %v517
        %v582 = vunpack.c.l.bf16 %v518
        %v583 = vunpack.c.l.bf16 %v519
        %v584 = vunpack.c.l.bf16 %v520
        %v585 = vunpack.c.l.bf16 %v521
        %v586 = vunpack.c.l.bf16 %v522
        %v587 = vunpack.c.l.bf16 %v523
        %v588 = vunpack.c.l.bf16 %v524
        %v589 = vunpack.c.l.bf16 %v525
        %v590 = vunpack.c.l.bf16 %v526
        %v591 = vunpack.c.l.bf16 %v527
        %v592 = vunpack.c.l.bf16 %v528
        %v593 = vunpack.c.l.bf16 %v529
        %v594 = vunpack.c.l.bf16 %v530
        %v595 = vunpack.c.l.bf16 %v531
        %v596 = vunpack.c.l.bf16 %v532
        %v597 = vunpack.c.l.bf16 %v533
        %v598 = vunpack.c.l.bf16 %v534
        %v599 = vunpack.c.l.bf16 %v535
        %v600 = vunpack.c.l.bf16 %v536
        %v601 = vunpack.c.l.bf16 %v537
        %v602 = vunpack.c.l.bf16 %v538
        %s603 = scalar_lea.vmem [#allocation2], 24
        %604 = vst [vmem:[%s603 + $0x1] sm:$0xff] %v539
        %605 = vst [vmem:[%s603 + $0x9] sm:$0xff] %v540
        %606 = vst [vmem:[%s603 + $0x19] sm:$0xff] %v541
        %607 = vst [vmem:[%s603 + $0x21] sm:$0xff] %v542
        %608 = vst [vmem:[%s603 + $0x31] sm:$0xff] %v543
        %609 = vst [vmem:[%s603 + $0x39] sm:$0xff] %v544
        %610 = vst [vmem:[%s603 + $0x49] sm:$0xff] %v545
        %611 = vst [vmem:[%s603 + $0x51] sm:$0xff] %v546
        %612 = vst [vmem:[%s603 + $0x61] sm:$0xff] %v547
        %613 = vst [vmem:[%s603 + $0x69] sm:$0xff] %v548
        %614 = vst [vmem:[%s603 + $0x79] sm:$0xff] %v549
        %615 = vst [vmem:[%s603 + $0x81] sm:$0xff] %v550
        %616 = vst [vmem:[%s603 + $0x91] sm:$0xff] %v551
        %617 = vst [vmem:[%s603 + $0x99] sm:$0xff] %v552
        %618 = vst [vmem:[%s603 + $0xa9] sm:$0xff] %v553
        %619 = vst [vmem:[%s603 + $0xb1] sm:$0xff] %v554
        %620 = vst [vmem:[%s603 + $0xc1] sm:$0xff] %v555
        %621 = vst [vmem:[%s603 + $0xc9] sm:$0xff] %v556
        %622 = vst [vmem:[%s603 + $0xd9] sm:$0xff] %v557
        %623 = vst [vmem:[%s603 + $0xe1] sm:$0xff] %v558
        %624 = vst [vmem:[%s603 + $0xf1] sm:$0xff] %v559
        %625 = vst [vmem:[%s603 + $0xf9] sm:$0xff] %v560
        %626 = vst [vmem:[%s603 + $0x109] sm:$0xff] %v561
        %627 = vst [vmem:[%s603 + $0x111] sm:$0xff] %v562
        %628 = vst [vmem:[%s603 + $0x121] sm:$0xff] %v563
        %629 = vst [vmem:[%s603 + $0x129] sm:$0xff] %v564
        %630 = vst [vmem:[%s603 + $0x139] sm:$0xff] %v565
        %631 = vst [vmem:[%s603 + $0x141] sm:$0xff] %v566
        %632 = vst [vmem:[%s603 + $0x151] sm:$0xff] %v567
        %633 = vst [vmem:[%s603 + $0x159] sm:$0xff] %v568
        %634 = vst [vmem:[%s603 + $0x169] sm:$0xff] %v569
        %635 = vst [vmem:[%s603 + $0x171] sm:$0xff] %v570
        %636 = vst [vmem:[%s603 + $0x181] sm:$0xff] %v571
        %637 = vst [vmem:[%s603 + $0x189] sm:$0xff] %v572
        %638 = vst [vmem:[%s603 + $0x199] sm:$0xff] %v573
        %639 = vst [vmem:[%s603 + $0x1a1] sm:$0xff] %v574
        %640 = vst [vmem:[%s603 + $0x1b1] sm:$0xff] %v575
        %641 = vst [vmem:[%s603 + $0x1b9] sm:$0xff] %v576
        %642 = vst [vmem:[%s603 + $0x1c9] sm:$0xff] %v577
        %643 = vst [vmem:[%s603 + $0x1d1] sm:$0xff] %v578
        %644 = vst [vmem:[%s603 + $0x1e1] sm:$0xff] %v579
        %645 = vst [vmem:[%s603 + $0x1e9] sm:$0xff] %v580
        %646 = vst [vmem:[%s603 + $0x1f9] sm:$0xff] %v581
        %647 = vst [vmem:[%s603 + $0x201] sm:$0xff] %v582
        %648 = vst [vmem:[%s603 + $0x211] sm:$0xff] %v583
        %649 = vst [vmem:[%s603 + $0x219] sm:$0xff] %v584
        %650 = vst [vmem:[%s603 + $0x229] sm:$0xff] %v585
        %651 = vst [vmem:[%s603 + $0x231] sm:$0xff] %v586
        %652 = vst [vmem:[%s603 + $0x241] sm:$0xff] %v587
        %653 = vst [vmem:[%s603 + $0x249] sm:$0xff] %v588
        %654 = vst [vmem:[%s603 + $0x259] sm:$0xff] %v589
        %655 = vst [vmem:[%s603 + $0x261] sm:$0xff] %v590
        %656 = vst [vmem:[%s603 + $0x271] sm:$0xff] %v591
        %657 = vst [vmem:[%s603 + $0x279] sm:$0xff] %v592
        %658 = vst [vmem:[%s603 + $0x289] sm:$0xff] %v593
        %659 = vst [vmem:[%s603 + $0x291] sm:$0xff] %v594
        %660 = vst [vmem:[%s603 + $0x2a1] sm:$0xff] %v595
        %661 = vst [vmem:[%s603 + $0x2a9] sm:$0xff] %v596
        %662 = vst [vmem:[%s603 + $0x2b9] sm:$0xff] %v597
        %663 = vst [vmem:[%s603 + $0x2c1] sm:$0xff] %v598
        %664 = vst [vmem:[%s603 + $0x2d1] sm:$0xff] %v599
        %665 = vst [vmem:[%s603 + $0x2d9] sm:$0xff] %v600
        %666 = vst [vmem:[%s603 + $0x2e9] sm:$0xff] %v601
        %667 = vst [vmem:[%s603 + $0x2f1] sm:$0xff] %v602
        %668 = vst [vmem:[#allocation2] sm:$0x1] 0.0
        %669 = vst [vmem:[#allocation2 + $0x18] sm:$0x1] 0.0
        %670 = vst [vmem:[#allocation2 + $0x30] sm:$0x1] 0.0
        %671 = vst [vmem:[#allocation2 + $0x48] sm:$0x1] 0.0
        %672 = vst [vmem:[#allocation2 + $0x60] sm:$0x1] 0.0
        %673 = vst [vmem:[#allocation2 + $0x78] sm:$0x1] 0.0
        %674 = vst [vmem:[#allocation2 + $0x90] sm:$0x1] 0.0
        %675 = vst [vmem:[#allocation2 + $0xa8] sm:$0x1] 0.0
        %676 = vst [vmem:[#allocation2 + $0xc0] sm:$0x1] 0.0
        %677 = vst [vmem:[#allocation2 + $0xd8] sm:$0x1] 0.0
        %678 = vst [vmem:[#allocation2 + $0xf0] sm:$0x1] 0.0
        %679 = vst [vmem:[#allocation2 + $0x108] sm:$0x1] 0.0
        %680 = vst [vmem:[#allocation2 + $0x120] sm:$0x1] 0.0
        %681 = vst [vmem:[#allocation2 + $0x138] sm:$0x1] 0.0
        %682 = vst [vmem:[#allocation2 + $0x150] sm:$0x1] 0.0
        %683 = vst [vmem:[#allocation2 + $0x168] sm:$0x1] 0.0
        %684 = vst [vmem:[#allocation2 + $0x180] sm:$0x1] 0.0
        %685 = vst [vmem:[#allocation2 + $0x198] sm:$0x1] 0.0
        %686 = vst [vmem:[#allocation2 + $0x1b0] sm:$0x1] 0.0
        %687 = vst [vmem:[#allocation2 + $0x1c8] sm:$0x1] 0.0
        %688 = vst [vmem:[#allocation2 + $0x1e0] sm:$0x1] 0.0
        %689 = vst [vmem:[#allocation2 + $0x1f8] sm:$0x1] 0.0
        %690 = vst [vmem:[#allocation2 + $0x210] sm:$0x1] 0.0
        %691 = vst [vmem:[#allocation2 + $0x228] sm:$0x1] 0.0
        %692 = vst [vmem:[#allocation2 + $0x240] sm:$0x1] 0.0
        %693 = vst [vmem:[#allocation2 + $0x258] sm:$0x1] 0.0
        %694 = vst [vmem:[#allocation2 + $0x270] sm:$0x1] 0.0
        %695 = vst [vmem:[#allocation2 + $0x288] sm:$0x1] 0.0
        %696 = vst [vmem:[#allocation2 + $0x2a0] sm:$0x1] 0.0
        %697 = vst [vmem:[#allocation2 + $0x2b8] sm:$0x1] 0.0
        %698 = vst [vmem:[#allocation2 + $0x2d0] sm:$0x1] 0.0
        %699 = vst [vmem:[#allocation2 + $0x2e8] sm:$0x1] 0.0
        %700 = vst [vmem:[#allocation2 + $0x300] sm:$0x1] 0.0
        %701 = vst [vmem:[#allocation2 + $0x318] sm:$0x1] 0.0
        %702 = vst [vmem:[#allocation2 + $0x11] sm:$0x1] 0.0
        %703 = vst [vmem:[#allocation2 + $0x29] sm:$0x1] 0.0
        %704 = vst [vmem:[#allocation2 + $0x41] sm:$0x1] 0.0
        %705 = vst [vmem:[#allocation2 + $0x59] sm:$0x1] 0.0
        %706 = vst [vmem:[#allocation2 + $0x71] sm:$0x1] 0.0
        %707 = vst [vmem:[#allocation2 + $0x89] sm:$0x1] 0.0
        %708 = vst [vmem:[#allocation2 + $0xa1] sm:$0x1] 0.0
        %709 = vst [vmem:[#allocation2 + $0xb9] sm:$0x1] 0.0
        %710 = vst [vmem:[#allocation2 + $0xd1] sm:$0x1] 0.0
        %711 = vst [vmem:[#allocation2 + $0xe9] sm:$0x1] 0.0
        %712 = vst [vmem:[#allocation2 + $0x101] sm:$0x1] 0.0
        %713 = vst [vmem:[#allocation2 + $0x119] sm:$0x1] 0.0
        %714 = vst [vmem:[#allocation2 + $0x131] sm:$0x1] 0.0
        %715 = vst [vmem:[#allocation2 + $0x149] sm:$0x1] 0.0
        %716 = vst [vmem:[#allocation2 + $0x161] sm:$0x1] 0.0
        %717 = vst [vmem:[#allocation2 + $0x179] sm:$0x1] 0.0
        %718 = vst [vmem:[#allocation2 + $0x191] sm:$0x1] 0.0
        %719 = vst [vmem:[#allocation2 + $0x1a9] sm:$0x1] 0.0
        %720 = vst [vmem:[#allocation2 + $0x1c1] sm:$0x1] 0.0
        %721 = vst [vmem:[#allocation2 + $0x1d9] sm:$0x1] 0.0
        %722 = vst [vmem:[#allocation2 + $0x1f1] sm:$0x1] 0.0
        %723 = vst [vmem:[#allocation2 + $0x209] sm:$0x1] 0.0
        %724 = vst [vmem:[#allocation2 + $0x221] sm:$0x1] 0.0
        %725 = vst [vmem:[#allocation2 + $0x239] sm:$0x1] 0.0
        %726 = vst [vmem:[#allocation2 + $0x251] sm:$0x1] 0.0
        %727 = vst [vmem:[#allocation2 + $0x269] sm:$0x1] 0.0
        %728 = vst [vmem:[#allocation2 + $0x281] sm:$0x1] 0.0
        %729 = vst [vmem:[#allocation2 + $0x299] sm:$0x1] 0.0
        %730 = vst [vmem:[#allocation2 + $0x2b1] sm:$0x1] 0.0
        %731 = vst [vmem:[#allocation2 + $0x2c9] sm:$0x1] 0.0
        %732 = vst [vmem:[#allocation2 + $0x2e1] sm:$0x1] 0.0
        %733 = vst [vmem:[#allocation2 + $0x2f9] sm:$0x1] 0.0
        %734 = vst [vmem:[#allocation2 + $0x311] sm:$0x1] 0.0
        %735 = vst [vmem:[#allocation2 + $0x329] sm:$0x1] 0.0
        %v736 = vld [vmem:[#allocation2] sm:$0xff]
        %v737 = vld [vmem:[#allocation2 + $0x8] sm:$0xff]
        %v738 = vld [vmem:[#allocation2 + $0x10] sm:$0x3]
        %v739 = vld [vmem:[#allocation2 + $0x18] sm:$0xff]
        %v740 = vld [vmem:[#allocation2 + $0x20] sm:$0xff]
        %v741 = vld [vmem:[#allocation2 + $0x28] sm:$0x3]
        %v742 = vld [vmem:[#allocation2 + $0x30] sm:$0xff]
        %v743 = vld [vmem:[#allocation2 + $0x38] sm:$0xff]
        %v744 = vld [vmem:[#allocation2 + $0x40] sm:$0x3]
        %v745 = vld [vmem:[#allocation2 + $0x48] sm:$0xff]
        %v746 = vld [vmem:[#allocation2 + $0x50] sm:$0xff]
        %v747 = vld [vmem:[#allocation2 + $0x58] sm:$0x3]
        %v748 = vld [vmem:[#allocation2 + $0x60] sm:$0xff]
        %v749 = vld [vmem:[#allocation2 + $0x68] sm:$0xff]
        %v750 = vld [vmem:[#allocation2 + $0x70] sm:$0x3]
        %v751 = vld [vmem:[#allocation2 + $0x78] sm:$0xff]
        %v752 = vld [vmem:[#allocation2 + $0x80] sm:$0xff]
        %v753 = vld [vmem:[#allocation2 + $0x88] sm:$0x3]
        %v754 = vld [vmem:[#allocation2 + $0x90] sm:$0xff]
        %v755 = vld [vmem:[#allocation2 + $0x98] sm:$0xff]
        %v756 = vld [vmem:[#allocation2 + $0xa0] sm:$0x3]
        %v757 = vld [vmem:[#allocation2 + $0xa8] sm:$0xff]
        %v758 = vld [vmem:[#allocation2 + $0xb0] sm:$0xff]
        %v759 = vld [vmem:[#allocation2 + $0xb8] sm:$0x3]
        %v760 = vld [vmem:[#allocation2 + $0xc0] sm:$0xff]
        %v761 = vld [vmem:[#allocation2 + $0xc8] sm:$0xff]
        %v762 = vld [vmem:[#allocation2 + $0xd0] sm:$0x3]
        %v763 = vld [vmem:[#allocation2 + $0xd8] sm:$0xff]
        %v764 = vld [vmem:[#allocation2 + $0xe0] sm:$0xff]
        %v765 = vld [vmem:[#allocation2 + $0xe8] sm:$0x3]
        %v766 = vld [vmem:[#allocation2 + $0xf0] sm:$0xff]
        %v767 = vld [vmem:[#allocation2 + $0xf8] sm:$0xff]
        %v768 = vld [vmem:[#allocation2 + $0x100] sm:$0x3]
        %v769 = vld [vmem:[#allocation2 + $0x108] sm:$0xff]
        %v770 = vld [vmem:[#allocation2 + $0x110] sm:$0xff]
        %v771 = vld [vmem:[#allocation2 + $0x118] sm:$0x3]
        %v772 = vld [vmem:[#allocation2 + $0x120] sm:$0xff]
        %v773 = vld [vmem:[#allocation2 + $0x128] sm:$0xff]
        %v774 = vld [vmem:[#allocation2 + $0x130] sm:$0x3]
        %v775 = vld [vmem:[#allocation2 + $0x138] sm:$0xff]
        %v776 = vld [vmem:[#allocation2 + $0x140] sm:$0xff]
        %v777 = vld [vmem:[#allocation2 + $0x148] sm:$0x3]
        %v778 = vld [vmem:[#allocation2 + $0x150] sm:$0xff]
        %v779 = vld [vmem:[#allocation2 + $0x158] sm:$0xff]
        %v780 = vld [vmem:[#allocation2 + $0x160] sm:$0x3]
        %v781 = vld [vmem:[#allocation2 + $0x168] sm:$0xff]
        %v782 = vld [vmem:[#allocation2 + $0x170] sm:$0xff]
        %v783 = vld [vmem:[#allocation2 + $0x178] sm:$0x3]
        %v784 = vld [vmem:[#allocation2 + $0x180] sm:$0xff]
        %v785 = vld [vmem:[#allocation2 + $0x188] sm:$0xff]
        %v786 = vld [vmem:[#allocation2 + $0x190] sm:$0x3]
        %v787 = vld [vmem:[#allocation2 + $0x198] sm:$0xff]
        %v788 = vld [vmem:[#allocation2 + $0x1a0] sm:$0xff]
        %v789 = vld [vmem:[#allocation2 + $0x1a8] sm:$0x3]
        %v790 = vld [vmem:[#allocation2 + $0x1b0] sm:$0xff]
        %v791 = vld [vmem:[#allocation2 + $0x1b8] sm:$0xff]
        %v792 = vld [vmem:[#allocation2 + $0x1c0] sm:$0x3]
        %v793 = vld [vmem:[#allocation2 + $0x1c8] sm:$0xff]
        %v794 = vld [vmem:[#allocation2 + $0x1d0] sm:$0xff]
        %v795 = vld [vmem:[#allocation2 + $0x1d8] sm:$0x3]
        %v796 = vld [vmem:[#allocation2 + $0x1e0] sm:$0xff]
        %v797 = vld [vmem:[#allocation2 + $0x1e8] sm:$0xff]
        %v798 = vld [vmem:[#allocation2 + $0x1f0] sm:$0x3]
        %v799 = vld [vmem:[#allocation2 + $0x1f8] sm:$0xff]
        %v800 = vld [vmem:[#allocation2 + $0x200] sm:$0xff]
        %v801 = vld [vmem:[#allocation2 + $0x208] sm:$0x3]
        %v802 = vld [vmem:[#allocation2 + $0x210] sm:$0xff]
        %v803 = vld [vmem:[#allocation2 + $0x218] sm:$0xff]
        %v804 = vld [vmem:[#allocation2 + $0x220] sm:$0x3]
        %v805 = vld [vmem:[#allocation2 + $0x228] sm:$0xff]
        %v806 = vld [vmem:[#allocation2 + $0x230] sm:$0xff]
        %v807 = vld [vmem:[#allocation2 + $0x238] sm:$0x3]
        %v808 = vld [vmem:[#allocation2 + $0x240] sm:$0xff]
        %v809 = vld [vmem:[#allocation2 + $0x248] sm:$0xff]
        %v810 = vld [vmem:[#allocation2 + $0x250] sm:$0x3]
        %v811 = vld [vmem:[#allocation2 + $0x258] sm:$0xff]
        %v812 = vld [vmem:[#allocation2 + $0x260] sm:$0xff]
        %v813 = vld [vmem:[#allocation2 + $0x268] sm:$0x3]
        %v814 = vld [vmem:[#allocation2 + $0x270] sm:$0xff]
        %v815 = vld [vmem:[#allocation2 + $0x278] sm:$0xff]
        %v816 = vld [vmem:[#allocation2 + $0x280] sm:$0x3]
        %v817 = vld [vmem:[#allocation2 + $0x288] sm:$0xff]
        %v818 = vld [vmem:[#allocation2 + $0x290] sm:$0xff]
        %v819 = vld [vmem:[#allocation2 + $0x298] sm:$0x3]
        %v820 = vld [vmem:[#allocation2 + $0x2a0] sm:$0xff]
        %v821 = vld [vmem:[#allocation2 + $0x2a8] sm:$0xff]
        %v822 = vld [vmem:[#allocation2 + $0x2b0] sm:$0x3]
        %v823 = vld [vmem:[#allocation2 + $0x2b8] sm:$0xff]
        %v824 = vld [vmem:[#allocation2 + $0x2c0] sm:$0xff]
        %v825 = vld [vmem:[#allocation2 + $0x2c8] sm:$0x3]
        %v826 = vld [vmem:[#allocation2 + $0x2d0] sm:$0xff]
        %v827 = vld [vmem:[#allocation2 + $0x2d8] sm:$0xff]
        %v828 = vld [vmem:[#allocation2 + $0x2e0] sm:$0x3]
        %v829 = vld [vmem:[#allocation2 + $0x2e8] sm:$0xff]
        %v830 = vld [vmem:[#allocation2 + $0x2f0] sm:$0xff]
        %v831 = vld [vmem:[#allocation2 + $0x2f8] sm:$0x3]
        %v832 = vpack.c.bf16 %v736, %v736
        %v833 = vpack.c.bf16 %v737, %v737
        %v834 = vpack.c.bf16 %v739, %v739
        %v835 = vpack.c.bf16 %v740, %v740
        %v836 = vpack.c.bf16 %v742, %v742
        %v837 = vpack.c.bf16 %v743, %v743
        %v838 = vpack.c.bf16 %v745, %v745
        %v839 = vpack.c.bf16 %v746, %v746
        %v840 = vpack.c.bf16 %v748, %v748
        %v841 = vpack.c.bf16 %v749, %v749
        %v842 = vpack.c.bf16 %v751, %v751
        %v843 = vpack.c.bf16 %v752, %v752
        %v844 = vpack.c.bf16 %v754, %v754
        %v845 = vpack.c.bf16 %v755, %v755
        %v846 = vpack.c.bf16 %v757, %v757
        %v847 = vpack.c.bf16 %v758, %v758
        %v848 = vpack.c.bf16 %v760, %v760
        %v849 = vpack.c.bf16 %v761, %v761
        %v850 = vpack.c.bf16 %v763, %v763
        %v851 = vpack.c.bf16 %v764, %v764
        %v852 = vpack.c.bf16 %v766, %v766
        %v853 = vpack.c.bf16 %v767, %v767
        %v854 = vpack.c.bf16 %v769, %v769
        %v855 = vpack.c.bf16 %v770, %v770
        %v856 = vpack.c.bf16 %v772, %v772
        %v857 = vpack.c.bf16 %v773, %v773
        %v858 = vpack.c.bf16 %v775, %v775
        %v859 = vpack.c.bf16 %v776, %v776
        %v860 = vpack.c.bf16 %v778, %v778
        %v861 = vpack.c.bf16 %v779, %v779
        %v862 = vpack.c.bf16 %v781, %v781
        %v863 = vpack.c.bf16 %v782, %v782
        %v864 = vpack.c.bf16 %v784, %v784
        %v865 = vpack.c.bf16 %v785, %v785
        %v866 = vpack.c.bf16 %v787, %v787
        %v867 = vpack.c.bf16 %v788, %v788
        %v868 = vpack.c.bf16 %v790, %v790
        %v869 = vpack.c.bf16 %v791, %v791
        %v870 = vpack.c.bf16 %v793, %v793
        %v871 = vpack.c.bf16 %v794, %v794
        %v872 = vpack.c.bf16 %v796, %v796
        %v873 = vpack.c.bf16 %v797, %v797
        %v874 = vpack.c.bf16 %v799, %v799
        %v875 = vpack.c.bf16 %v800, %v800
        %v876 = vpack.c.bf16 %v802, %v802
        %v877 = vpack.c.bf16 %v803, %v803
        %v878 = vpack.c.bf16 %v805, %v805
        %v879 = vpack.c.bf16 %v806, %v806
        %v880 = vpack.c.bf16 %v808, %v808
        %v881 = vpack.c.bf16 %v809, %v809
        %v882 = vpack.c.bf16 %v811, %v811
        %v883 = vpack.c.bf16 %v812, %v812
        %v884 = vpack.c.bf16 %v814, %v814
        %v885 = vpack.c.bf16 %v815, %v815
        %v886 = vpack.c.bf16 %v817, %v817
        %v887 = vpack.c.bf16 %v818, %v818
        %v888 = vpack.c.bf16 %v820, %v820
        %v889 = vpack.c.bf16 %v821, %v821
        %v890 = vpack.c.bf16 %v823, %v823
        %v891 = vpack.c.bf16 %v824, %v824
        %v892 = vpack.c.bf16 %v826, %v826
        %v893 = vpack.c.bf16 %v827, %v827
        %v894 = vpack.c.bf16 %v829, %v829
        %v895 = vpack.c.bf16 %v830, %v830
        %v896 = vpack.c.bf16 %v738, %v738
        %v897 = vpack.c.bf16 %v741, %v741
        %v898 = vpack.c.bf16 %v744, %v744
        %v899 = vpack.c.bf16 %v747, %v747
        %v900 = vpack.c.bf16 %v750, %v750
        %v901 = vpack.c.bf16 %v753, %v753
        %v902 = vpack.c.bf16 %v756, %v756
        %v903 = vpack.c.bf16 %v759, %v759
        %v904 = vpack.c.bf16 %v762, %v762
        %v905 = vpack.c.bf16 %v765, %v765
        %v906 = vpack.c.bf16 %v768, %v768
        %v907 = vpack.c.bf16 %v771, %v771
        %v908 = vpack.c.bf16 %v774, %v774
        %v909 = vpack.c.bf16 %v777, %v777
        %v910 = vpack.c.bf16 %v780, %v780
        %v911 = vpack.c.bf16 %v783, %v783
        %v912 = vpack.c.bf16 %v786, %v786
        %v913 = vpack.c.bf16 %v789, %v789
        %v914 = vpack.c.bf16 %v792, %v792
        %v915 = vpack.c.bf16 %v795, %v795
        %v916 = vpack.c.bf16 %v798, %v798
        %v917 = vpack.c.bf16 %v801, %v801
        %v918 = vpack.c.bf16 %v804, %v804
        %v919 = vpack.c.bf16 %v807, %v807
        %v920 = vpack.c.bf16 %v810, %v810
        %v921 = vpack.c.bf16 %v813, %v813
        %v922 = vpack.c.bf16 %v816, %v816
        %v923 = vpack.c.bf16 %v819, %v819
        %v924 = vpack.c.bf16 %v822, %v822
        %v925 = vpack.c.bf16 %v825, %v825
        %v926 = vpack.c.bf16 %v828, %v828
        %v927 = vpack.c.bf16 %v831, %v831
        %v992 = vunpack.c.l.b16 %v832
        %v993 = vunpack.c.l.b16 %v833
        %v994 = vunpack.c.l.b16 %v834
        %v995 = vunpack.c.l.b16 %v835
        %v996 = vunpack.c.l.b16 %v836
        %v997 = vunpack.c.l.b16 %v837
        %v998 = vunpack.c.l.b16 %v838
        %v999 = vunpack.c.l.b16 %v839
        %v1000 = vunpack.c.l.b16 %v840
        %v1001 = vunpack.c.l.b16 %v841
        %v1002 = vunpack.c.l.b16 %v842
        %v1003 = vunpack.c.l.b16 %v843
        %v1004 = vunpack.c.l.b16 %v844
        %v1005 = vunpack.c.l.b16 %v845
        %v1006 = vunpack.c.l.b16 %v846
        %v1007 = vunpack.c.l.b16 %v847
        %v1008 = vunpack.c.l.b16 %v848
        %v1009 = vunpack.c.l.b16 %v849
        %v1010 = vunpack.c.l.b16 %v850
        %v1011 = vunpack.c.l.b16 %v851
        %v1012 = vunpack.c.l.b16 %v852
        %v1013 = vunpack.c.l.b16 %v853
        %v1014 = vunpack.c.l.b16 %v854
        %v1015 = vunpack.c.l.b16 %v855
        %v1016 = vunpack.c.l.b16 %v856
        %v1017 = vunpack.c.l.b16 %v857
        %v1018 = vunpack.c.l.b16 %v858
        %v1019 = vunpack.c.l.b16 %v859
        %v1020 = vunpack.c.l.b16 %v860
        %v1021 = vunpack.c.l.b16 %v861
        %v1022 = vunpack.c.l.b16 %v862
        %v1023 = vunpack.c.l.b16 %v863
        %v1024 = vunpack.c.l.b16 %v864
        %v1025 = vunpack.c.l.b16 %v865
        %v1026 = vunpack.c.l.b16 %v866
        %v1027 = vunpack.c.l.b16 %v867
        %v1028 = vunpack.c.l.b16 %v868
        %v1029 = vunpack.c.l.b16 %v869
        %v1030 = vunpack.c.l.b16 %v870
        %v1031 = vunpack.c.l.b16 %v871
        %v1032 = vunpack.c.l.b16 %v872
        %v1033 = vunpack.c.l.b16 %v873
        %v1034 = vunpack.c.l.b16 %v874
        %v1035 = vunpack.c.l.b16 %v875
        %v1036 = vunpack.c.l.b16 %v876
        %v1037 = vunpack.c.l.b16 %v877
        %v1038 = vunpack.c.l.b16 %v878
        %v1039 = vunpack.c.l.b16 %v879
        %v1040 = vunpack.c.l.b16 %v880
        %v1041 = vunpack.c.l.b16 %v881
        %v1042 = vunpack.c.l.b16 %v882
        %v1043 = vunpack.c.l.b16 %v883
        %v1044 = vunpack.c.l.b16 %v884
        %v1045 = vunpack.c.l.b16 %v885
        %v1046 = vunpack.c.l.b16 %v886
        %v1047 = vunpack.c.l.b16 %v887
        %v1048 = vunpack.c.l.b16 %v888
        %v1049 = vunpack.c.l.b16 %v889
        %v1050 = vunpack.c.l.b16 %v890
        %v1051 = vunpack.c.l.b16 %v891
        %v1052 = vunpack.c.l.b16 %v892
        %v1053 = vunpack.c.l.b16 %v893
        %v1054 = vunpack.c.l.b16 %v894
        %v1055 = vunpack.c.l.b16 %v895
        %v1056 = vpack.c.b16 %v993, %v992
        %v1057 = vpack.c.b16 %v995, %v994
        %v1058 = vpack.c.b16 %v997, %v996
        %v1059 = vpack.c.b16 %v999, %v998
        %v1060 = vpack.c.b16 %v1001, %v1000
        %v1061 = vpack.c.b16 %v1003, %v1002
        %v1062 = vpack.c.b16 %v1005, %v1004
        %v1063 = vpack.c.b16 %v1007, %v1006
        %v1064 = vpack.c.b16 %v1009, %v1008
        %v1065 = vpack.c.b16 %v1011, %v1010
        %v1066 = vpack.c.b16 %v1013, %v1012
        %v1067 = vpack.c.b16 %v1015, %v1014
        %v1068 = vpack.c.b16 %v1017, %v1016
        %v1069 = vpack.c.b16 %v1019, %v1018
        %v1070 = vpack.c.b16 %v1021, %v1020
        %v1071 = vpack.c.b16 %v1023, %v1022
        %v1072 = vpack.c.b16 %v1025, %v1024
        %v1073 = vpack.c.b16 %v1027, %v1026
        %v1074 = vpack.c.b16 %v1029, %v1028
        %v1075 = vpack.c.b16 %v1031, %v1030
        %v1076 = vpack.c.b16 %v1033, %v1032
        %v1077 = vpack.c.b16 %v1035, %v1034
        %v1078 = vpack.c.b16 %v1037, %v1036
        %v1079 = vpack.c.b16 %v1039, %v1038
        %v1080 = vpack.c.b16 %v1041, %v1040
        %v1081 = vpack.c.b16 %v1043, %v1042
        %v1082 = vpack.c.b16 %v1045, %v1044
        %v1083 = vpack.c.b16 %v1047, %v1046
        %v1084 = vpack.c.b16 %v1049, %v1048
        %v1085 = vpack.c.b16 %v1051, %v1050
        %v1086 = vpack.c.b16 %v1053, %v1052
        %v1087 = vpack.c.b16 %v1055, %v1054
        %v1152 = vunpack.c.l.b16 %v896
        %v1153 = vunpack.c.l.b16 %v897
        %v1154 = vunpack.c.l.b16 %v898
        %v1155 = vunpack.c.l.b16 %v899
        %v1156 = vunpack.c.l.b16 %v900
        %v1157 = vunpack.c.l.b16 %v901
        %v1158 = vunpack.c.l.b16 %v902
        %v1159 = vunpack.c.l.b16 %v903
        %v1160 = vunpack.c.l.b16 %v904
        %v1161 = vunpack.c.l.b16 %v905
        %v1162 = vunpack.c.l.b16 %v906
        %v1163 = vunpack.c.l.b16 %v907
        %v1164 = vunpack.c.l.b16 %v908
        %v1165 = vunpack.c.l.b16 %v909
        %v1166 = vunpack.c.l.b16 %v910
        %v1167 = vunpack.c.l.b16 %v911
        %v1168 = vunpack.c.l.b16 %v912
        %v1169 = vunpack.c.l.b16 %v913
        %v1170 = vunpack.c.l.b16 %v914
        %v1171 = vunpack.c.l.b16 %v915
        %v1172 = vunpack.c.l.b16 %v916
        %v1173 = vunpack.c.l.b16 %v917
        %v1174 = vunpack.c.l.b16 %v918
        %v1175 = vunpack.c.l.b16 %v919
        %v1176 = vunpack.c.l.b16 %v920
        %v1177 = vunpack.c.l.b16 %v921
        %v1178 = vunpack.c.l.b16 %v922
        %v1179 = vunpack.c.l.b16 %v923
        %v1180 = vunpack.c.l.b16 %v924
        %v1181 = vunpack.c.l.b16 %v925
        %v1182 = vunpack.c.l.b16 %v926
        %v1183 = vunpack.c.l.b16 %v927
        %v1184 = vpack.c.b16 %v1152, %v1152
        %v1185 = vpack.c.b16 %v1153, %v1153
        %v1186 = vpack.c.b16 %v1154, %v1154
        %v1187 = vpack.c.b16 %v1155, %v1155
        %v1188 = vpack.c.b16 %v1156, %v1156
        %v1189 = vpack.c.b16 %v1157, %v1157
        %v1190 = vpack.c.b16 %v1158, %v1158
        %v1191 = vpack.c.b16 %v1159, %v1159
        %v1192 = vpack.c.b16 %v1160, %v1160
        %v1193 = vpack.c.b16 %v1161, %v1161
        %v1194 = vpack.c.b16 %v1162, %v1162
        %v1195 = vpack.c.b16 %v1163, %v1163
        %v1196 = vpack.c.b16 %v1164, %v1164
        %v1197 = vpack.c.b16 %v1165, %v1165
        %v1198 = vpack.c.b16 %v1166, %v1166
        %v1199 = vpack.c.b16 %v1167, %v1167
        %v1200 = vpack.c.b16 %v1168, %v1168
        %v1201 = vpack.c.b16 %v1169, %v1169
        %v1202 = vpack.c.b16 %v1170, %v1170
        %v1203 = vpack.c.b16 %v1171, %v1171
        %v1204 = vpack.c.b16 %v1172, %v1172
        %v1205 = vpack.c.b16 %v1173, %v1173
        %v1206 = vpack.c.b16 %v1174, %v1174
        %v1207 = vpack.c.b16 %v1175, %v1175
        %v1208 = vpack.c.b16 %v1176, %v1176
        %v1209 = vpack.c.b16 %v1177, %v1177
        %v1210 = vpack.c.b16 %v1178, %v1178
        %v1211 = vpack.c.b16 %v1179, %v1179
        %v1212 = vpack.c.b16 %v1180, %v1180
        %v1213 = vpack.c.b16 %v1181, %v1181
        %v1214 = vpack.c.b16 %v1182, %v1182
        %v1215 = vpack.c.b16 %v1183, %v1183
        %vm1216 = vsmask.f32 7424
        %v1218 = vshrl.u32 %v1056, 16
        %v1220 = vshll.u32 %v1056, 16
        %v1222 = vrot.slane %v1220, 1
        %v1223 = vor.u32 %v1218, %v1222
        %v1225 = vshll.u32 %v1184, 16
        %v1227 = vrot.slane %v1225, 1
        %v1228 = vsel %vm1216, %v1223, %v1227
        %v1230 = vshrl.u32 %v1057, 16
        %v1232 = vshll.u32 %v1057, 16
        %v1234 = vrot.slane %v1232, 1
        %v1235 = vor.u32 %v1230, %v1234
        %v1237 = vshll.u32 %v1185, 16
        %v1239 = vrot.slane %v1237, 1
        %v1240 = vsel %vm1216, %v1235, %v1239
        %v1242 = vshrl.u32 %v1058, 16
        %v1244 = vshll.u32 %v1058, 16
        %v1246 = vrot.slane %v1244, 1
        %v1247 = vor.u32 %v1242, %v1246
        %v1249 = vshll.u32 %v1186, 16
        %v1251 = vrot.slane %v1249, 1
        %v1252 = vsel %vm1216, %v1247, %v1251
        %v1254 = vshrl.u32 %v1059, 16
        %v1256 = vshll.u32 %v1059, 16
        %v1258 = vrot.slane %v1256, 1
        %v1259 = vor.u32 %v1254, %v1258
        %v1261 = vshll.u32 %v1187, 16
        %v1263 = vrot.slane %v1261, 1
        %v1264 = vsel %vm1216, %v1259, %v1263
        %v1266 = vshrl.u32 %v1060, 16
        %v1268 = vshll.u32 %v1060, 16
        %v1270 = vrot.slane %v1268, 1
        %v1271 = vor.u32 %v1266, %v1270
        %v1273 = vshll.u32 %v1188, 16
        %v1275 = vrot.slane %v1273, 1
        %v1276 = vsel %vm1216, %v1271, %v1275
        %v1278 = vshrl.u32 %v1061, 16
        %v1280 = vshll.u32 %v1061, 16
        %v1282 = vrot.slane %v1280, 1
        %v1283 = vor.u32 %v1278, %v1282
        %v1285 = vshll.u32 %v1189, 16
        %v1287 = vrot.slane %v1285, 1
        %v1288 = vsel %vm1216, %v1283, %v1287
        %v1290 = vshrl.u32 %v1062, 16
        %v1292 = vshll.u32 %v1062, 16
        %v1294 = vrot.slane %v1292, 1
        %v1295 = vor.u32 %v1290, %v1294
        %v1297 = vshll.u32 %v1190, 16
        %v1299 = vrot.slane %v1297, 1
        %v1300 = vsel %vm1216, %v1295, %v1299
        %v1302 = vshrl.u32 %v1063, 16
        %v1304 = vshll.u32 %v1063, 16
        %v1306 = vrot.slane %v1304, 1
        %v1307 = vor.u32 %v1302, %v1306
        %v1309 = vshll.u32 %v1191, 16
        %v1311 = vrot.slane %v1309, 1
        %v1312 = vsel %vm1216, %v1307, %v1311
        %v1314 = vshrl.u32 %v1064, 16
        %v1316 = vshll.u32 %v1064, 16
        %v1318 = vrot.slane %v1316, 1
        %v1319 = vor.u32 %v1314, %v1318
        %v1321 = vshll.u32 %v1192, 16
        %v1323 = vrot.slane %v1321, 1
        %v1324 = vsel %vm1216, %v1319, %v1323
        %v1326 = vshrl.u32 %v1065, 16
        %v1328 = vshll.u32 %v1065, 16
        %v1330 = vrot.slane %v1328, 1
        %v1331 = vor.u32 %v1326, %v1330
        %v1333 = vshll.u32 %v1193, 16
        %v1335 = vrot.slane %v1333, 1
        %v1336 = vsel %vm1216, %v1331, %v1335
        %v1338 = vshrl.u32 %v1066, 16
        %v1340 = vshll.u32 %v1066, 16
        %v1342 = vrot.slane %v1340, 1
        %v1343 = vor.u32 %v1338, %v1342
        %v1345 = vshll.u32 %v1194, 16
        %v1347 = vrot.slane %v1345, 1
        %v1348 = vsel %vm1216, %v1343, %v1347
        %v1350 = vshrl.u32 %v1067, 16
        %v1352 = vshll.u32 %v1067, 16
        %v1354 = vrot.slane %v1352, 1
        %v1355 = vor.u32 %v1350, %v1354
        %v1357 = vshll.u32 %v1195, 16
        %v1359 = vrot.slane %v1357, 1
        %v1360 = vsel %vm1216, %v1355, %v1359
        %v1362 = vshrl.u32 %v1068, 16
        %v1364 = vshll.u32 %v1068, 16
        %v1366 = vrot.slane %v1364, 1
        %v1367 = vor.u32 %v1362, %v1366
        %v1369 = vshll.u32 %v1196, 16
        %v1371 = vrot.slane %v1369, 1
        %v1372 = vsel %vm1216, %v1367, %v1371
        %v1374 = vshrl.u32 %v1069, 16
        %v1376 = vshll.u32 %v1069, 16
        %v1378 = vrot.slane %v1376, 1
        %v1379 = vor.u32 %v1374, %v1378
        %v1381 = vshll.u32 %v1197, 16
        %v1383 = vrot.slane %v1381, 1
        %v1384 = vsel %vm1216, %v1379, %v1383
        %v1386 = vshrl.u32 %v1070, 16
        %v1388 = vshll.u32 %v1070, 16
        %v1390 = vrot.slane %v1388, 1
        %v1391 = vor.u32 %v1386, %v1390
        %v1393 = vshll.u32 %v1198, 16
        %v1395 = vrot.slane %v1393, 1
        %v1396 = vsel %vm1216, %v1391, %v1395
        %v1398 = vshrl.u32 %v1071, 16
        %v1400 = vshll.u32 %v1071, 16
        %v1402 = vrot.slane %v1400, 1
        %v1403 = vor.u32 %v1398, %v1402
        %v1405 = vshll.u32 %v1199, 16
        %v1407 = vrot.slane %v1405, 1
        %v1408 = vsel %vm1216, %v1403, %v1407
        %v1410 = vshrl.u32 %v1072, 16
        %v1412 = vshll.u32 %v1072, 16
        %v1414 = vrot.slane %v1412, 1
        %v1415 = vor.u32 %v1410, %v1414
        %v1417 = vshll.u32 %v1200, 16
        %v1419 = vrot.slane %v1417, 1
        %v1420 = vsel %vm1216, %v1415, %v1419
        %v1422 = vshrl.u32 %v1073, 16
        %v1424 = vshll.u32 %v1073, 16
        %v1426 = vrot.slane %v1424, 1
        %v1427 = vor.u32 %v1422, %v1426
        %v1429 = vshll.u32 %v1201, 16
        %v1431 = vrot.slane %v1429, 1
        %v1432 = vsel %vm1216, %v1427, %v1431
        %v1434 = vshrl.u32 %v1074, 16
        %v1436 = vshll.u32 %v1074, 16
        %v1438 = vrot.slane %v1436, 1
        %v1439 = vor.u32 %v1434, %v1438
        %v1441 = vshll.u32 %v1202, 16
        %v1443 = vrot.slane %v1441, 1
        %v1444 = vsel %vm1216, %v1439, %v1443
        %v1446 = vshrl.u32 %v1075, 16
        %v1448 = vshll.u32 %v1075, 16
        %v1450 = vrot.slane %v1448, 1
        %v1451 = vor.u32 %v1446, %v1450
        %v1453 = vshll.u32 %v1203, 16
        %v1455 = vrot.slane %v1453, 1
        %v1456 = vsel %vm1216, %v1451, %v1455
        %v1458 = vshrl.u32 %v1076, 16
        %v1460 = vshll.u32 %v1076, 16
        %v1462 = vrot.slane %v1460, 1
        %v1463 = vor.u32 %v1458, %v1462
        %v1465 = vshll.u32 %v1204, 16
        %v1467 = vrot.slane %v1465, 1
        %v1468 = vsel %vm1216, %v1463, %v1467
        %v1470 = vshrl.u32 %v1077, 16
        %v1472 = vshll.u32 %v1077, 16
        %v1474 = vrot.slane %v1472, 1
        %v1475 = vor.u32 %v1470, %v1474
        %v1477 = vshll.u32 %v1205, 16
        %v1479 = vrot.slane %v1477, 1
        %v1480 = vsel %vm1216, %v1475, %v1479
        %v1482 = vshrl.u32 %v1078, 16
        %v1484 = vshll.u32 %v1078, 16
        %v1486 = vrot.slane %v1484, 1
        %v1487 = vor.u32 %v1482, %v1486
        %v1489 = vshll.u32 %v1206, 16
        %v1491 = vrot.slane %v1489, 1
        %v1492 = vsel %vm1216, %v1487, %v1491
        %v1494 = vshrl.u32 %v1079, 16
        %v1496 = vshll.u32 %v1079, 16
        %v1498 = vrot.slane %v1496, 1
        %v1499 = vor.u32 %v1494, %v1498
        %v1501 = vshll.u32 %v1207, 16
        %v1503 = vrot.slane %v1501, 1
        %v1504 = vsel %vm1216, %v1499, %v1503
        %v1506 = vshrl.u32 %v1080, 16
        %v1508 = vshll.u32 %v1080, 16
        %v1510 = vrot.slane %v1508, 1
        %v1511 = vor.u32 %v1506, %v1510
        %v1513 = vshll.u32 %v1208, 16
        %v1515 = vrot.slane %v1513, 1
        %v1516 = vsel %vm1216, %v1511, %v1515
        %v1518 = vshrl.u32 %v1081, 16
        %v1520 = vshll.u32 %v1081, 16
        %v1522 = vrot.slane %v1520, 1
        %v1523 = vor.u32 %v1518, %v1522
        %v1525 = vshll.u32 %v1209, 16
        %v1527 = vrot.slane %v1525, 1
        %v1528 = vsel %vm1216, %v1523, %v1527
        %v1530 = vshrl.u32 %v1082, 16
        %v1532 = vshll.u32 %v1082, 16
        %v1534 = vrot.slane %v1532, 1
        %v1535 = vor.u32 %v1530, %v1534
        %v1537 = vshll.u32 %v1210, 16
        %v1539 = vrot.slane %v1537, 1
        %v1540 = vsel %vm1216, %v1535, %v1539
        %v1542 = vshrl.u32 %v1083, 16
        %v1544 = vshll.u32 %v1083, 16
        %v1546 = vrot.slane %v1544, 1
        %v1547 = vor.u32 %v1542, %v1546
        %v1549 = vshll.u32 %v1211, 16
        %v1551 = vrot.slane %v1549, 1
        %v1552 = vsel %vm1216, %v1547, %v1551
        %v1554 = vshrl.u32 %v1084, 16
        %v1556 = vshll.u32 %v1084, 16
        %v1558 = vrot.slane %v1556, 1
        %v1559 = vor.u32 %v1554, %v1558
        %v1561 = vshll.u32 %v1212, 16
        %v1563 = vrot.slane %v1561, 1
        %v1564 = vsel %vm1216, %v1559, %v1563
        %v1566 = vshrl.u32 %v1085, 16
        %v1568 = vshll.u32 %v1085, 16
        %v1570 = vrot.slane %v1568, 1
        %v1571 = vor.u32 %v1566, %v1570
        %v1573 = vshll.u32 %v1213, 16
        %v1575 = vrot.slane %v1573, 1
        %v1576 = vsel %vm1216, %v1571, %v1575
        %v1578 = vshrl.u32 %v1086, 16
        %v1580 = vshll.u32 %v1086, 16
        %v1582 = vrot.slane %v1580, 1
        %v1583 = vor.u32 %v1578, %v1582
        %v1585 = vshll.u32 %v1214, 16
        %v1587 = vrot.slane %v1585, 1
        %v1588 = vsel %vm1216, %v1583, %v1587
        %v1590 = vshrl.u32 %v1087, 16
        %v1592 = vshll.u32 %v1087, 16
        %v1594 = vrot.slane %v1592, 1
        %v1595 = vor.u32 %v1590, %v1594
        %v1597 = vshll.u32 %v1215, 16
        %v1599 = vrot.slane %v1597, 1
        %v1600 = vsel %vm1216, %v1595, %v1599
        %vm1633 = vcmask 1046528
        %v1634 = vrot.slane %v1056, 1
        %v1635 = vrot.slane %v1184, 1
        %v1636 = vsel %vm1633, %v1634, %v1635
        %v1637 = vrot.slane %v1057, 1
        %v1638 = vrot.slane %v1185, 1
        %v1639 = vsel %vm1633, %v1637, %v1638
        %v1640 = vrot.slane %v1058, 1
        %v1641 = vrot.slane %v1186, 1
        %v1642 = vsel %vm1633, %v1640, %v1641
        %v1643 = vrot.slane %v1059, 1
        %v1644 = vrot.slane %v1187, 1
        %v1645 = vsel %vm1633, %v1643, %v1644
        %v1646 = vrot.slane %v1060, 1
        %v1647 = vrot.slane %v1188, 1
        %v1648 = vsel %vm1633, %v1646, %v1647
        %v1649 = vrot.slane %v1061, 1
        %v1650 = vrot.slane %v1189, 1
        %v1651 = vsel %vm1633, %v1649, %v1650
        %v1652 = vrot.slane %v1062, 1
        %v1653 = vrot.slane %v1190, 1
        %v1654 = vsel %vm1633, %v1652, %v1653
        %v1655 = vrot.slane %v1063, 1
        %v1656 = vrot.slane %v1191, 1
        %v1657 = vsel %vm1633, %v1655, %v1656
        %v1658 = vrot.slane %v1064, 1
        %v1659 = vrot.slane %v1192, 1
        %v1660 = vsel %vm1633, %v1658, %v1659
        %v1661 = vrot.slane %v1065, 1
        %v1662 = vrot.slane %v1193, 1
        %v1663 = vsel %vm1633, %v1661, %v1662
        %v1664 = vrot.slane %v1066, 1
        %v1665 = vrot.slane %v1194, 1
        %v1666 = vsel %vm1633, %v1664, %v1665
        %v1667 = vrot.slane %v1067, 1
        %v1668 = vrot.slane %v1195, 1
        %v1669 = vsel %vm1633, %v1667, %v1668
        %v1670 = vrot.slane %v1068, 1
        %v1671 = vrot.slane %v1196, 1
        %v1672 = vsel %vm1633, %v1670, %v1671
        %v1673 = vrot.slane %v1069, 1
        %v1674 = vrot.slane %v1197, 1
        %v1675 = vsel %vm1633, %v1673, %v1674
        %v1676 = vrot.slane %v1070, 1
        %v1677 = vrot.slane %v1198, 1
        %v1678 = vsel %vm1633, %v1676, %v1677
        %v1679 = vrot.slane %v1071, 1
        %v1680 = vrot.slane %v1199, 1
        %v1681 = vsel %vm1633, %v1679, %v1680
        %v1682 = vrot.slane %v1072, 1
        %v1683 = vrot.slane %v1200, 1
        %v1684 = vsel %vm1633, %v1682, %v1683
        %v1685 = vrot.slane %v1073, 1
        %v1686 = vrot.slane %v1201, 1
        %v1687 = vsel %vm1633, %v1685, %v1686
        %v1688 = vrot.slane %v1074, 1
        %v1689 = vrot.slane %v1202, 1
        %v1690 = vsel %vm1633, %v1688, %v1689
        %v1691 = vrot.slane %v1075, 1
        %v1692 = vrot.slane %v1203, 1
        %v1693 = vsel %vm1633, %v1691, %v1692
        %v1694 = vrot.slane %v1076, 1
        %v1695 = vrot.slane %v1204, 1
        %v1696 = vsel %vm1633, %v1694, %v1695
        %v1697 = vrot.slane %v1077, 1
        %v1698 = vrot.slane %v1205, 1
        %v1699 = vsel %vm1633, %v1697, %v1698
        %v1700 = vrot.slane %v1078, 1
        %v1701 = vrot.slane %v1206, 1
        %v1702 = vsel %vm1633, %v1700, %v1701
        %v1703 = vrot.slane %v1079, 1
        %v1704 = vrot.slane %v1207, 1
        %v1705 = vsel %vm1633, %v1703, %v1704
        %v1706 = vrot.slane %v1080, 1
        %v1707 = vrot.slane %v1208, 1
        %v1708 = vsel %vm1633, %v1706, %v1707
        %v1709 = vrot.slane %v1081, 1
        %v1710 = vrot.slane %v1209, 1
        %v1711 = vsel %vm1633, %v1709, %v1710
        %v1712 = vrot.slane %v1082, 1
        %v1713 = vrot.slane %v1210, 1
        %v1714 = vsel %vm1633, %v1712, %v1713
        %v1715 = vrot.slane %v1083, 1
        %v1716 = vrot.slane %v1211, 1
        %v1717 = vsel %vm1633, %v1715, %v1716
        %v1718 = vrot.slane %v1084, 1
        %v1719 = vrot.slane %v1212, 1
        %v1720 = vsel %vm1633, %v1718, %v1719
        %v1721 = vrot.slane %v1085, 1
        %v1722 = vrot.slane %v1213, 1
        %v1723 = vsel %vm1633, %v1721, %v1722
        %v1724 = vrot.slane %v1086, 1
        %v1725 = vrot.slane %v1214, 1
        %v1726 = vsel %vm1633, %v1724, %v1725
        %v1727 = vrot.slane %v1087, 1
        %v1728 = vrot.slane %v1215, 1
        %v1729 = vsel %vm1633, %v1727, %v1728
        %v1762 = vld [vmem:[%s392] sm:$0xf]
        %v1763 = vld [vmem:[%s392 + $0x4] sm:$0xf]
        %v1764 = vld [vmem:[%s392 + $0x8] sm:$0xf]
        %v1765 = vld [vmem:[%s392 + $0xc] sm:$0xf]
        %v1766 = vld [vmem:[%s392 + $0x10] sm:$0xf]
        %v1767 = vld [vmem:[%s392 + $0x14] sm:$0xf]
        %v1768 = vld [vmem:[%s392 + $0x18] sm:$0xf]
        %v1769 = vld [vmem:[%s392 + $0x1c] sm:$0xf]
        %v1770 = vld [vmem:[%s392 + $0x20] sm:$0xf]
        %v1771 = vld [vmem:[%s392 + $0x24] sm:$0xf]
        %v1772 = vld [vmem:[%s392 + $0x28] sm:$0xf]
        %v1773 = vld [vmem:[%s392 + $0x2c] sm:$0xf]
        %v1774 = vld [vmem:[%s392 + $0x30] sm:$0xf]
        %v1775 = vld [vmem:[%s392 + $0x34] sm:$0xf]
        %v1776 = vld [vmem:[%s392 + $0x38] sm:$0xf]
        %v1777 = vld [vmem:[%s392 + $0x3c] sm:$0xf]
        %v1778 = vld [vmem:[%s392 + $0x40] sm:$0xf]
        %v1779 = vld [vmem:[%s392 + $0x44] sm:$0xf]
        %v1780 = vld [vmem:[%s392 + $0x48] sm:$0xf]
        %v1781 = vld [vmem:[%s392 + $0x4c] sm:$0xf]
        %v1782 = vld [vmem:[%s392 + $0x50] sm:$0xf]
        %v1783 = vld [vmem:[%s392 + $0x54] sm:$0xf]
        %v1784 = vld [vmem:[%s392 + $0x58] sm:$0xf]
        %v1785 = vld [vmem:[%s392 + $0x5c] sm:$0xf]
        %v1786 = vld [vmem:[%s392 + $0x60] sm:$0xf]
        %v1787 = vld [vmem:[%s392 + $0x64] sm:$0xf]
        %v1788 = vld [vmem:[%s392 + $0x68] sm:$0xf]
        %v1789 = vld [vmem:[%s392 + $0x6c] sm:$0xf]
        %v1790 = vld [vmem:[%s392 + $0x70] sm:$0xf]
        %v1791 = vld [vmem:[%s392 + $0x74] sm:$0xf]
        %v1792 = vld [vmem:[%s392 + $0x78] sm:$0xf]
        %v1793 = vld [vmem:[%s392 + $0x7c] sm:$0xf]
        %v1794 = vld [vmem:[%s392 + $0x80] sm:$0xf]
        %v1795 = vld [vmem:[%s392 + $0x84] sm:$0xf]
        %v1796 = vld [vmem:[%s392 + $0x88] sm:$0xf]
        %v1797 = vld [vmem:[%s392 + $0x8c] sm:$0xf]
        %v1798 = vld [vmem:[%s392 + $0x90] sm:$0xf]
        %v1799 = vld [vmem:[%s392 + $0x94] sm:$0xf]
        %v1800 = vld [vmem:[%s392 + $0x98] sm:$0xf]
        %v1801 = vld [vmem:[%s392 + $0x9c] sm:$0xf]
        %v1802 = vld [vmem:[%s392 + $0xa0] sm:$0xf]
        %v1803 = vld [vmem:[%s392 + $0xa4] sm:$0xf]
        %v1804 = vld [vmem:[%s392 + $0xa8] sm:$0xf]
        %v1805 = vld [vmem:[%s392 + $0xac] sm:$0xf]
        %v1806 = vld [vmem:[%s392 + $0xb0] sm:$0xf]
        %v1807 = vld [vmem:[%s392 + $0xb4] sm:$0xf]
        %v1808 = vld [vmem:[%s392 + $0xb8] sm:$0xf]
        %v1809 = vld [vmem:[%s392 + $0xbc] sm:$0xf]
        %v1810 = vld [vmem:[%s603] sm:$0xff]
        %v1811 = vld [vmem:[%s603 + $0x8] sm:$0xff]
        %v1812 = vld [vmem:[%s603 + $0x10] sm:$0x3]
        %v1813 = vld [vmem:[%s603 + $0x18] sm:$0xff]
        %v1814 = vld [vmem:[%s603 + $0x20] sm:$0xff]
        %v1815 = vld [vmem:[%s603 + $0x28] sm:$0x3]
        %v1816 = vld [vmem:[%s603 + $0x30] sm:$0xff]
        %v1817 = vld [vmem:[%s603 + $0x38] sm:$0xff]
        %v1818 = vld [vmem:[%s603 + $0x40] sm:$0x3]
        %v1819 = vld [vmem:[%s603 + $0x48] sm:$0xff]
        %v1820 = vld [vmem:[%s603 + $0x50] sm:$0xff]
        %v1821 = vld [vmem:[%s603 + $0x58] sm:$0x3]
        %v1822 = vld [vmem:[%s603 + $0x60] sm:$0xff]
        %v1823 = vld [vmem:[%s603 + $0x68] sm:$0xff]
        %v1824 = vld [vmem:[%s603 + $0x70] sm:$0x3]
        %v1825 = vld [vmem:[%s603 + $0x78] sm:$0xff]
        %v1826 = vld [vmem:[%s603 + $0x80] sm:$0xff]
        %v1827 = vld [vmem:[%s603 + $0x88] sm:$0x3]
        %v1828 = vld [vmem:[%s603 + $0x90] sm:$0xff]
        %v1829 = vld [vmem:[%s603 + $0x98] sm:$0xff]
        %v1830 = vld [vmem:[%s603 + $0xa0] sm:$0x3]
        %v1831 = vld [vmem:[%s603 + $0xa8] sm:$0xff]
        %v1832 = vld [vmem:[%s603 + $0xb0] sm:$0xff]
        %v1833 = vld [vmem:[%s603 + $0xb8] sm:$0x3]
        %v1834 = vld [vmem:[%s603 + $0xc0] sm:$0xff]
        %v1835 = vld [vmem:[%s603 + $0xc8] sm:$0xff]
        %v1836 = vld [vmem:[%s603 + $0xd0] sm:$0x3]
        %v1837 = vld [vmem:[%s603 + $0xd8] sm:$0xff]
        %v1838 = vld [vmem:[%s603 + $0xe0] sm:$0xff]
        %v1839 = vld [vmem:[%s603 + $0xe8] sm:$0x3]
        %v1840 = vld [vmem:[%s603 + $0xf0] sm:$0xff]
        %v1841 = vld [vmem:[%s603 + $0xf8] sm:$0xff]
        %v1842 = vld [vmem:[%s603 + $0x100] sm:$0x3]
        %v1843 = vld [vmem:[%s603 + $0x108] sm:$0xff]
        %v1844 = vld [vmem:[%s603 + $0x110] sm:$0xff]
        %v1845 = vld [vmem:[%s603 + $0x118] sm:$0x3]
        %v1846 = vld [vmem:[%s603 + $0x120] sm:$0xff]
        %v1847 = vld [vmem:[%s603 + $0x128] sm:$0xff]
        %v1848 = vld [vmem:[%s603 + $0x130] sm:$0x3]
        %v1849 = vld [vmem:[%s603 + $0x138] sm:$0xff]
        %v1850 = vld [vmem:[%s603 + $0x140] sm:$0xff]
        %v1851 = vld [vmem:[%s603 + $0x148] sm:$0x3]
        %v1852 = vld [vmem:[%s603 + $0x150] sm:$0xff]
        %v1853 = vld [vmem:[%s603 + $0x158] sm:$0xff]
        %v1854 = vld [vmem:[%s603 + $0x160] sm:$0x3]
        %v1855 = vld [vmem:[%s603 + $0x168] sm:$0xff]
        %v1856 = vld [vmem:[%s603 + $0x170] sm:$0xff]
        %v1857 = vld [vmem:[%s603 + $0x178] sm:$0x3]
        %v1858 = vld [vmem:[%s603 + $0x180] sm:$0xff]
        %v1859 = vld [vmem:[%s603 + $0x188] sm:$0xff]
        %v1860 = vld [vmem:[%s603 + $0x190] sm:$0x3]
        %v1861 = vld [vmem:[%s603 + $0x198] sm:$0xff]
        %v1862 = vld [vmem:[%s603 + $0x1a0] sm:$0xff]
        %v1863 = vld [vmem:[%s603 + $0x1a8] sm:$0x3]
        %v1864 = vld [vmem:[%s603 + $0x1b0] sm:$0xff]
        %v1865 = vld [vmem:[%s603 + $0x1b8] sm:$0xff]
        %v1866 = vld [vmem:[%s603 + $0x1c0] sm:$0x3]
        %v1867 = vld [vmem:[%s603 + $0x1c8] sm:$0xff]
        %v1868 = vld [vmem:[%s603 + $0x1d0] sm:$0xff]
        %v1869 = vld [vmem:[%s603 + $0x1d8] sm:$0x3]
        %v1870 = vld [vmem:[%s603 + $0x1e0] sm:$0xff]
        %v1871 = vld [vmem:[%s603 + $0x1e8] sm:$0xff]
        %v1872 = vld [vmem:[%s603 + $0x1f0] sm:$0x3]
        %v1873 = vld [vmem:[%s603 + $0x1f8] sm:$0xff]
        %v1874 = vld [vmem:[%s603 + $0x200] sm:$0xff]
        %v1875 = vld [vmem:[%s603 + $0x208] sm:$0x3]
        %v1876 = vld [vmem:[%s603 + $0x210] sm:$0xff]
        %v1877 = vld [vmem:[%s603 + $0x218] sm:$0xff]
        %v1878 = vld [vmem:[%s603 + $0x220] sm:$0x3]
        %v1879 = vld [vmem:[%s603 + $0x228] sm:$0xff]
        %v1880 = vld [vmem:[%s603 + $0x230] sm:$0xff]
        %v1881 = vld [vmem:[%s603 + $0x238] sm:$0x3]
        %v1882 = vld [vmem:[%s603 + $0x240] sm:$0xff]
        %v1883 = vld [vmem:[%s603 + $0x248] sm:$0xff]
        %v1884 = vld [vmem:[%s603 + $0x250] sm:$0x3]
        %v1885 = vld [vmem:[%s603 + $0x258] sm:$0xff]
        %v1886 = vld [vmem:[%s603 + $0x260] sm:$0xff]
        %v1887 = vld [vmem:[%s603 + $0x268] sm:$0x3]
        %v1888 = vld [vmem:[%s603 + $0x270] sm:$0xff]
        %v1889 = vld [vmem:[%s603 + $0x278] sm:$0xff]
        %v1890 = vld [vmem:[%s603 + $0x280] sm:$0x3]
        %v1891 = vld [vmem:[%s603 + $0x288] sm:$0xff]
        %v1892 = vld [vmem:[%s603 + $0x290] sm:$0xff]
        %v1893 = vld [vmem:[%s603 + $0x298] sm:$0x3]
        %v1894 = vld [vmem:[%s603 + $0x2a0] sm:$0xff]
        %v1895 = vld [vmem:[%s603 + $0x2a8] sm:$0xff]
        %v1896 = vld [vmem:[%s603 + $0x2b0] sm:$0x3]
        %v1897 = vld [vmem:[%s603 + $0x2b8] sm:$0xff]
        %v1898 = vld [vmem:[%s603 + $0x2c0] sm:$0xff]
        %v1899 = vld [vmem:[%s603 + $0x2c8] sm:$0x3]
        %v1900 = vld [vmem:[%s603 + $0x2d0] sm:$0xff]
        %v1901 = vld [vmem:[%s603 + $0x2d8] sm:$0xff]
        %v1902 = vld [vmem:[%s603 + $0x2e0] sm:$0x3]
        %v1903 = vld [vmem:[%s603 + $0x2e8] sm:$0xff]
        %v1904 = vld [vmem:[%s603 + $0x2f0] sm:$0xff]
        %v1905 = vld [vmem:[%s603 + $0x2f8] sm:$0x3]
        %v1906 = vpack.c.bf16 %v1810, %v1810
        %v1907 = vpack.c.bf16 %v1811, %v1811
        %v1908 = vpack.c.bf16 %v1813, %v1813
        %v1909 = vpack.c.bf16 %v1814, %v1814
        %v1910 = vpack.c.bf16 %v1816, %v1816
        %v1911 = vpack.c.bf16 %v1817, %v1817
        %v1912 = vpack.c.bf16 %v1819, %v1819
        %v1913 = vpack.c.bf16 %v1820, %v1820
        %v1914 = vpack.c.bf16 %v1822, %v1822
        %v1915 = vpack.c.bf16 %v1823, %v1823
        %v1916 = vpack.c.bf16 %v1825, %v1825
        %v1917 = vpack.c.bf16 %v1826, %v1826
        %v1918 = vpack.c.bf16 %v1828, %v1828
        %v1919 = vpack.c.bf16 %v1829, %v1829
        %v1920 = vpack.c.bf16 %v1831, %v1831
        %v1921 = vpack.c.bf16 %v1832, %v1832
        %v1922 = vpack.c.bf16 %v1834, %v1834
        %v1923 = vpack.c.bf16 %v1835, %v1835
        %v1924 = vpack.c.bf16 %v1837, %v1837
        %v1925 = vpack.c.bf16 %v1838, %v1838
        %v1926 = vpack.c.bf16 %v1840, %v1840
        %v1927 = vpack.c.bf16 %v1841, %v1841
        %v1928 = vpack.c.bf16 %v1843, %v1843
        %v1929 = vpack.c.bf16 %v1844, %v1844
        %v1930 = vpack.c.bf16 %v1846, %v1846
        %v1931 = vpack.c.bf16 %v1847, %v1847
        %v1932 = vpack.c.bf16 %v1849, %v1849
        %v1933 = vpack.c.bf16 %v1850, %v1850
        %v1934 = vpack.c.bf16 %v1852, %v1852
        %v1935 = vpack.c.bf16 %v1853, %v1853
        %v1936 = vpack.c.bf16 %v1855, %v1855
        %v1937 = vpack.c.bf16 %v1856, %v1856
        %v1938 = vpack.c.bf16 %v1858, %v1858
        %v1939 = vpack.c.bf16 %v1859, %v1859
        %v1940 = vpack.c.bf16 %v1861, %v1861
        %v1941 = vpack.c.bf16 %v1862, %v1862
        %v1942 = vpack.c.bf16 %v1864, %v1864
        %v1943 = vpack.c.bf16 %v1865, %v1865
        %v1944 = vpack.c.bf16 %v1867, %v1867
        %v1945 = vpack.c.bf16 %v1868, %v1868
        %v1946 = vpack.c.bf16 %v1870, %v1870
        %v1947 = vpack.c.bf16 %v1871, %v1871
        %v1948 = vpack.c.bf16 %v1873, %v1873
        %v1949 = vpack.c.bf16 %v1874, %v1874
        %v1950 = vpack.c.bf16 %v1876, %v1876
        %v1951 = vpack.c.bf16 %v1877, %v1877
        %v1952 = vpack.c.bf16 %v1879, %v1879
        %v1953 = vpack.c.bf16 %v1880, %v1880
        %v1954 = vpack.c.bf16 %v1882, %v1882
        %v1955 = vpack.c.bf16 %v1883, %v1883
        %v1956 = vpack.c.bf16 %v1885, %v1885
        %v1957 = vpack.c.bf16 %v1886, %v1886
        %v1958 = vpack.c.bf16 %v1888, %v1888
        %v1959 = vpack.c.bf16 %v1889, %v1889
        %v1960 = vpack.c.bf16 %v1891, %v1891
        %v1961 = vpack.c.bf16 %v1892, %v1892
        %v1962 = vpack.c.bf16 %v1894, %v1894
        %v1963 = vpack.c.bf16 %v1895, %v1895
        %v1964 = vpack.c.bf16 %v1897, %v1897
        %v1965 = vpack.c.bf16 %v1898, %v1898
        %v1966 = vpack.c.bf16 %v1900, %v1900
        %v1967 = vpack.c.bf16 %v1901, %v1901
        %v1968 = vpack.c.bf16 %v1903, %v1903
        %v1969 = vpack.c.bf16 %v1904, %v1904
        %v1970 = vpack.c.bf16 %v1812, %v1812
        %v1971 = vpack.c.bf16 %v1815, %v1815
        %v1972 = vpack.c.bf16 %v1818, %v1818
        %v1973 = vpack.c.bf16 %v1821, %v1821
        %v1974 = vpack.c.bf16 %v1824, %v1824
        %v1975 = vpack.c.bf16 %v1827, %v1827
        %v1976 = vpack.c.bf16 %v1830, %v1830
        %v1977 = vpack.c.bf16 %v1833, %v1833
        %v1978 = vpack.c.bf16 %v1836, %v1836
        %v1979 = vpack.c.bf16 %v1839, %v1839
        %v1980 = vpack.c.bf16 %v1842, %v1842
        %v1981 = vpack.c.bf16 %v1845, %v1845
        %v1982 = vpack.c.bf16 %v1848, %v1848
        %v1983 = vpack.c.bf16 %v1851, %v1851
        %v1984 = vpack.c.bf16 %v1854, %v1854
        %v1985 = vpack.c.bf16 %v1857, %v1857
        %v1986 = vpack.c.bf16 %v1860, %v1860
        %v1987 = vpack.c.bf16 %v1863, %v1863
        %v1988 = vpack.c.bf16 %v1866, %v1866
        %v1989 = vpack.c.bf16 %v1869, %v1869
        %v1990 = vpack.c.bf16 %v1872, %v1872
        %v1991 = vpack.c.bf16 %v1875, %v1875
        %v1992 = vpack.c.bf16 %v1878, %v1878
        %v1993 = vpack.c.bf16 %v1881, %v1881
        %v1994 = vpack.c.bf16 %v1884, %v1884
        %v1995 = vpack.c.bf16 %v1887, %v1887
        %v1996 = vpack.c.bf16 %v1890, %v1890
        %v1997 = vpack.c.bf16 %v1893, %v1893
        %v1998 = vpack.c.bf16 %v1896, %v1896
        %v1999 = vpack.c.bf16 %v1899, %v1899
        %v2000 = vpack.c.bf16 %v1902, %v1902
        %v2001 = vpack.c.bf16 %v1905, %v1905
        %v2066 = vunpack.c.l.b16 %v1906
        %v2067 = vunpack.c.l.b16 %v1907
        %v2068 = vunpack.c.l.b16 %v1908
        %v2069 = vunpack.c.l.b16 %v1909
        %v2070 = vunpack.c.l.b16 %v1910
        %v2071 = vunpack.c.l.b16 %v1911
        %v2072 = vunpack.c.l.b16 %v1912
        %v2073 = vunpack.c.l.b16 %v1913
        %v2074 = vunpack.c.l.b16 %v1914
        %v2075 = vunpack.c.l.b16 %v1915
        %v2076 = vunpack.c.l.b16 %v1916
        %v2077 = vunpack.c.l.b16 %v1917
        %v2078 = vunpack.c.l.b16 %v1918
        %v2079 = vunpack.c.l.b16 %v1919
        %v2080 = vunpack.c.l.b16 %v1920
        %v2081 = vunpack.c.l.b16 %v1921
        %v2082 = vunpack.c.l.b16 %v1922
        %v2083 = vunpack.c.l.b16 %v1923
        %v2084 = vunpack.c.l.b16 %v1924
        %v2085 = vunpack.c.l.b16 %v1925
        %v2086 = vunpack.c.l.b16 %v1926
        %v2087 = vunpack.c.l.b16 %v1927
        %v2088 = vunpack.c.l.b16 %v1928
        %v2089 = vunpack.c.l.b16 %v1929
        %v2090 = vunpack.c.l.b16 %v1930
        %v2091 = vunpack.c.l.b16 %v1931
        %v2092 = vunpack.c.l.b16 %v1932
        %v2093 = vunpack.c.l.b16 %v1933
        %v2094 = vunpack.c.l.b16 %v1934
        %v2095 = vunpack.c.l.b16 %v1935
        %v2096 = vunpack.c.l.b16 %v1936
        %v2097 = vunpack.c.l.b16 %v1937
        %v2098 = vunpack.c.l.b16 %v1938
        %v2099 = vunpack.c.l.b16 %v1939
        %v2100 = vunpack.c.l.b16 %v1940
        %v2101 = vunpack.c.l.b16 %v1941
        %v2102 = vunpack.c.l.b16 %v1942
        %v2103 = vunpack.c.l.b16 %v1943
        %v2104 = vunpack.c.l.b16 %v1944
        %v2105 = vunpack.c.l.b16 %v1945
        %v2106 = vunpack.c.l.b16 %v1946
        %v2107 = vunpack.c.l.b16 %v1947
        %v2108 = vunpack.c.l.b16 %v1948
        %v2109 = vunpack.c.l.b16 %v1949
        %v2110 = vunpack.c.l.b16 %v1950
        %v2111 = vunpack.c.l.b16 %v1951
        %v2112 = vunpack.c.l.b16 %v1952
        %v2113 = vunpack.c.l.b16 %v1953
        %v2114 = vunpack.c.l.b16 %v1954
        %v2115 = vunpack.c.l.b16 %v1955
        %v2116 = vunpack.c.l.b16 %v1956
        %v2117 = vunpack.c.l.b16 %v1957
        %v2118 = vunpack.c.l.b16 %v1958
        %v2119 = vunpack.c.l.b16 %v1959
        %v2120 = vunpack.c.l.b16 %v1960
        %v2121 = vunpack.c.l.b16 %v1961
        %v2122 = vunpack.c.l.b16 %v1962
        %v2123 = vunpack.c.l.b16 %v1963
        %v2124 = vunpack.c.l.b16 %v1964
        %v2125 = vunpack.c.l.b16 %v1965
        %v2126 = vunpack.c.l.b16 %v1966
        %v2127 = vunpack.c.l.b16 %v1967
        %v2128 = vunpack.c.l.b16 %v1968
        %v2129 = vunpack.c.l.b16 %v1969
        %v2130 = vpack.c.b16 %v2067, %v2066
        %v2131 = vpack.c.b16 %v2069, %v2068
        %v2132 = vpack.c.b16 %v2071, %v2070
        %v2133 = vpack.c.b16 %v2073, %v2072
        %v2134 = vpack.c.b16 %v2075, %v2074
        %v2135 = vpack.c.b16 %v2077, %v2076
        %v2136 = vpack.c.b16 %v2079, %v2078
        %v2137 = vpack.c.b16 %v2081, %v2080
        %v2138 = vpack.c.b16 %v2083, %v2082
        %v2139 = vpack.c.b16 %v2085, %v2084
        %v2140 = vpack.c.b16 %v2087, %v2086
        %v2141 = vpack.c.b16 %v2089, %v2088
        %v2142 = vpack.c.b16 %v2091, %v2090
        %v2143 = vpack.c.b16 %v2093, %v2092
        %v2144 = vpack.c.b16 %v2095, %v2094
        %v2145 = vpack.c.b16 %v2097, %v2096
        %v2146 = vpack.c.b16 %v2099, %v2098
        %v2147 = vpack.c.b16 %v2101, %v2100
        %v2148 = vpack.c.b16 %v2103, %v2102
        %v2149 = vpack.c.b16 %v2105, %v2104
        %v2150 = vpack.c.b16 %v2107, %v2106
        %v2151 = vpack.c.b16 %v2109, %v2108
        %v2152 = vpack.c.b16 %v2111, %v2110
        %v2153 = vpack.c.b16 %v2113, %v2112
        %v2154 = vpack.c.b16 %v2115, %v2114
        %v2155 = vpack.c.b16 %v2117, %v2116
        %v2156 = vpack.c.b16 %v2119, %v2118
        %v2157 = vpack.c.b16 %v2121, %v2120
        %v2158 = vpack.c.b16 %v2123, %v2122
        %v2159 = vpack.c.b16 %v2125, %v2124
        %v2160 = vpack.c.b16 %v2127, %v2126
        %v2161 = vpack.c.b16 %v2129, %v2128
        %v2226 = vunpack.c.l.b16 %v1970
        %v2227 = vunpack.c.l.b16 %v1971
        %v2228 = vunpack.c.l.b16 %v1972
        %v2229 = vunpack.c.l.b16 %v1973
        %v2230 = vunpack.c.l.b16 %v1974
        %v2231 = vunpack.c.l.b16 %v1975
        %v2232 = vunpack.c.l.b16 %v1976
        %v2233 = vunpack.c.l.b16 %v1977
        %v2234 = vunpack.c.l.b16 %v1978
        %v2235 = vunpack.c.l.b16 %v1979
        %v2236 = vunpack.c.l.b16 %v1980
        %v2237 = vunpack.c.l.b16 %v1981
        %v2238 = vunpack.c.l.b16 %v1982
        %v2239 = vunpack.c.l.b16 %v1983
        %v2240 = vunpack.c.l.b16 %v1984
        %v2241 = vunpack.c.l.b16 %v1985
        %v2242 = vunpack.c.l.b16 %v1986
        %v2243 = vunpack.c.l.b16 %v1987
        %v2244 = vunpack.c.l.b16 %v1988
        %v2245 = vunpack.c.l.b16 %v1989
        %v2246 = vunpack.c.l.b16 %v1990
        %v2247 = vunpack.c.l.b16 %v1991
        %v2248 = vunpack.c.l.b16 %v1992
        %v2249 = vunpack.c.l.b16 %v1993
        %v2250 = vunpack.c.l.b16 %v1994
        %v2251 = vunpack.c.l.b16 %v1995
        %v2252 = vunpack.c.l.b16 %v1996
        %v2253 = vunpack.c.l.b16 %v1997
        %v2254 = vunpack.c.l.b16 %v1998
        %v2255 = vunpack.c.l.b16 %v1999
        %v2256 = vunpack.c.l.b16 %v2000
        %v2257 = vunpack.c.l.b16 %v2001
        %v2258 = vpack.c.b16 %v2226, %v2226
        %v2259 = vpack.c.b16 %v2227, %v2227
        %v2260 = vpack.c.b16 %v2228, %v2228
        %v2261 = vpack.c.b16 %v2229, %v2229
        %v2262 = vpack.c.b16 %v2230, %v2230
        %v2263 = vpack.c.b16 %v2231, %v2231
        %v2264 = vpack.c.b16 %v2232, %v2232
        %v2265 = vpack.c.b16 %v2233, %v2233
        %v2266 = vpack.c.b16 %v2234, %v2234
        %v2267 = vpack.c.b16 %v2235, %v2235
        %v2268 = vpack.c.b16 %v2236, %v2236
        %v2269 = vpack.c.b16 %v2237, %v2237
        %v2270 = vpack.c.b16 %v2238, %v2238
        %v2271 = vpack.c.b16 %v2239, %v2239
        %v2272 = vpack.c.b16 %v2240, %v2240
        %v2273 = vpack.c.b16 %v2241, %v2241
        %v2274 = vpack.c.b16 %v2242, %v2242
        %v2275 = vpack.c.b16 %v2243, %v2243
        %v2276 = vpack.c.b16 %v2244, %v2244
        %v2277 = vpack.c.b16 %v2245, %v2245
        %v2278 = vpack.c.b16 %v2246, %v2246
        %v2279 = vpack.c.b16 %v2247, %v2247
        %v2280 = vpack.c.b16 %v2248, %v2248
        %v2281 = vpack.c.b16 %v2249, %v2249
        %v2282 = vpack.c.b16 %v2250, %v2250
        %v2283 = vpack.c.b16 %v2251, %v2251
        %v2284 = vpack.c.b16 %v2252, %v2252
        %v2285 = vpack.c.b16 %v2253, %v2253
        %v2286 = vpack.c.b16 %v2254, %v2254
        %v2287 = vpack.c.b16 %v2255, %v2255
        %v2288 = vpack.c.b16 %v2256, %v2256
        %v2289 = vpack.c.b16 %v2257, %v2257
        %v2291 = vshrl.u32 %v2130, 16
        %v2293 = vshll.u32 %v2130, 16
        %v2295 = vrot.slane %v2293, 1
        %v2296 = vor.u32 %v2291, %v2295
        %v2298 = vshll.u32 %v2258, 16
        %v2300 = vrot.slane %v2298, 1
        %v2301 = vsel %vm1216, %v2296, %v2300
        %v2303 = vshrl.u32 %v2131, 16
        %v2305 = vshll.u32 %v2131, 16
        %v2307 = vrot.slane %v2305, 1
        %v2308 = vor.u32 %v2303, %v2307
        %v2310 = vshll.u32 %v2259, 16
        %v2312 = vrot.slane %v2310, 1
        %v2313 = vsel %vm1216, %v2308, %v2312
        %v2315 = vshrl.u32 %v2132, 16
        %v2317 = vshll.u32 %v2132, 16
        %v2319 = vrot.slane %v2317, 1
        %v2320 = vor.u32 %v2315, %v2319
        %v2322 = vshll.u32 %v2260, 16
        %v2324 = vrot.slane %v2322, 1
        %v2325 = vsel %vm1216, %v2320, %v2324
        %v2327 = vshrl.u32 %v2133, 16
        %v2329 = vshll.u32 %v2133, 16
        %v2331 = vrot.slane %v2329, 1
        %v2332 = vor.u32 %v2327, %v2331
        %v2334 = vshll.u32 %v2261, 16
        %v2336 = vrot.slane %v2334, 1
        %v2337 = vsel %vm1216, %v2332, %v2336
        %v2339 = vshrl.u32 %v2134, 16
        %v2341 = vshll.u32 %v2134, 16
        %v2343 = vrot.slane %v2341, 1
        %v2344 = vor.u32 %v2339, %v2343
        %v2346 = vshll.u32 %v2262, 16
        %v2348 = vrot.slane %v2346, 1
        %v2349 = vsel %vm1216, %v2344, %v2348
        %v2351 = vshrl.u32 %v2135, 16
        %v2353 = vshll.u32 %v2135, 16
        %v2355 = vrot.slane %v2353, 1
        %v2356 = vor.u32 %v2351, %v2355
        %v2358 = vshll.u32 %v2263, 16
        %v2360 = vrot.slane %v2358, 1
        %v2361 = vsel %vm1216, %v2356, %v2360
        %v2363 = vshrl.u32 %v2136, 16
        %v2365 = vshll.u32 %v2136, 16
        %v2367 = vrot.slane %v2365, 1
        %v2368 = vor.u32 %v2363, %v2367
        %v2370 = vshll.u32 %v2264, 16
        %v2372 = vrot.slane %v2370, 1
        %v2373 = vsel %vm1216, %v2368, %v2372
        %v2375 = vshrl.u32 %v2137, 16
        %v2377 = vshll.u32 %v2137, 16
        %v2379 = vrot.slane %v2377, 1
        %v2380 = vor.u32 %v2375, %v2379
        %v2382 = vshll.u32 %v2265, 16
        %v2384 = vrot.slane %v2382, 1
        %v2385 = vsel %vm1216, %v2380, %v2384
        %v2387 = vshrl.u32 %v2138, 16
        %v2389 = vshll.u32 %v2138, 16
        %v2391 = vrot.slane %v2389, 1
        %v2392 = vor.u32 %v2387, %v2391
        %v2394 = vshll.u32 %v2266, 16
        %v2396 = vrot.slane %v2394, 1
        %v2397 = vsel %vm1216, %v2392, %v2396
        %v2399 = vshrl.u32 %v2139, 16
        %v2401 = vshll.u32 %v2139, 16
        %v2403 = vrot.slane %v2401, 1
        %v2404 = vor.u32 %v2399, %v2403
        %v2406 = vshll.u32 %v2267, 16
        %v2408 = vrot.slane %v2406, 1
        %v2409 = vsel %vm1216, %v2404, %v2408
        %v2411 = vshrl.u32 %v2140, 16
        %v2413 = vshll.u32 %v2140, 16
        %v2415 = vrot.slane %v2413, 1
        %v2416 = vor.u32 %v2411, %v2415
        %v2418 = vshll.u32 %v2268, 16
        %v2420 = vrot.slane %v2418, 1
        %v2421 = vsel %vm1216, %v2416, %v2420
        %v2423 = vshrl.u32 %v2141, 16
        %v2425 = vshll.u32 %v2141, 16
        %v2427 = vrot.slane %v2425, 1
        %v2428 = vor.u32 %v2423, %v2427
        %v2430 = vshll.u32 %v2269, 16
        %v2432 = vrot.slane %v2430, 1
        %v2433 = vsel %vm1216, %v2428, %v2432
        %v2435 = vshrl.u32 %v2142, 16
        %v2437 = vshll.u32 %v2142, 16
        %v2439 = vrot.slane %v2437, 1
        %v2440 = vor.u32 %v2435, %v2439
        %v2442 = vshll.u32 %v2270, 16
        %v2444 = vrot.slane %v2442, 1
        %v2445 = vsel %vm1216, %v2440, %v2444
        %v2447 = vshrl.u32 %v2143, 16
        %v2449 = vshll.u32 %v2143, 16
        %v2451 = vrot.slane %v2449, 1
        %v2452 = vor.u32 %v2447, %v2451
        %v2454 = vshll.u32 %v2271, 16
        %v2456 = vrot.slane %v2454, 1
        %v2457 = vsel %vm1216, %v2452, %v2456
        %v2459 = vshrl.u32 %v2144, 16
        %v2461 = vshll.u32 %v2144, 16
        %v2463 = vrot.slane %v2461, 1
        %v2464 = vor.u32 %v2459, %v2463
        %v2466 = vshll.u32 %v2272, 16
        %v2468 = vrot.slane %v2466, 1
        %v2469 = vsel %vm1216, %v2464, %v2468
        %v2471 = vshrl.u32 %v2145, 16
        %v2473 = vshll.u32 %v2145, 16
        %v2475 = vrot.slane %v2473, 1
        %v2476 = vor.u32 %v2471, %v2475
        %v2478 = vshll.u32 %v2273, 16
        %v2480 = vrot.slane %v2478, 1
        %v2481 = vsel %vm1216, %v2476, %v2480
        %v2483 = vshrl.u32 %v2146, 16
        %v2485 = vshll.u32 %v2146, 16
        %v2487 = vrot.slane %v2485, 1
        %v2488 = vor.u32 %v2483, %v2487
        %v2490 = vshll.u32 %v2274, 16
        %v2492 = vrot.slane %v2490, 1
        %v2493 = vsel %vm1216, %v2488, %v2492
        %v2495 = vshrl.u32 %v2147, 16
        %v2497 = vshll.u32 %v2147, 16
        %v2499 = vrot.slane %v2497, 1
        %v2500 = vor.u32 %v2495, %v2499
        %v2502 = vshll.u32 %v2275, 16
        %v2504 = vrot.slane %v2502, 1
        %v2505 = vsel %vm1216, %v2500, %v2504
        %v2507 = vshrl.u32 %v2148, 16
        %v2509 = vshll.u32 %v2148, 16
        %v2511 = vrot.slane %v2509, 1
        %v2512 = vor.u32 %v2507, %v2511
        %v2514 = vshll.u32 %v2276, 16
        %v2516 = vrot.slane %v2514, 1
        %v2517 = vsel %vm1216, %v2512, %v2516
        %v2519 = vshrl.u32 %v2149, 16
        %v2521 = vshll.u32 %v2149, 16
        %v2523 = vrot.slane %v2521, 1
        %v2524 = vor.u32 %v2519, %v2523
        %v2526 = vshll.u32 %v2277, 16
        %v2528 = vrot.slane %v2526, 1
        %v2529 = vsel %vm1216, %v2524, %v2528
        %v2531 = vshrl.u32 %v2150, 16
        %v2533 = vshll.u32 %v2150, 16
        %v2535 = vrot.slane %v2533, 1
        %v2536 = vor.u32 %v2531, %v2535
        %v2538 = vshll.u32 %v2278, 16
        %v2540 = vrot.slane %v2538, 1
        %v2541 = vsel %vm1216, %v2536, %v2540
        %v2543 = vshrl.u32 %v2151, 16
        %v2545 = vshll.u32 %v2151, 16
        %v2547 = vrot.slane %v2545, 1
        %v2548 = vor.u32 %v2543, %v2547
        %v2550 = vshll.u32 %v2279, 16
        %v2552 = vrot.slane %v2550, 1
        %v2553 = vsel %vm1216, %v2548, %v2552
        %v2555 = vshrl.u32 %v2152, 16
        %v2557 = vshll.u32 %v2152, 16
        %v2559 = vrot.slane %v2557, 1
        %v2560 = vor.u32 %v2555, %v2559
        %v2562 = vshll.u32 %v2280, 16
        %v2564 = vrot.slane %v2562, 1
        %v2565 = vsel %vm1216, %v2560, %v2564
        %v2567 = vshrl.u32 %v2153, 16
        %v2569 = vshll.u32 %v2153, 16
        %v2571 = vrot.slane %v2569, 1
        %v2572 = vor.u32 %v2567, %v2571
        %v2574 = vshll.u32 %v2281, 16
        %v2576 = vrot.slane %v2574, 1
        %v2577 = vsel %vm1216, %v2572, %v2576
        %v2579 = vshrl.u32 %v2154, 16
        %v2581 = vshll.u32 %v2154, 16
        %v2583 = vrot.slane %v2581, 1
        %v2584 = vor.u32 %v2579, %v2583
        %v2586 = vshll.u32 %v2282, 16
        %v2588 = vrot.slane %v2586, 1
        %v2589 = vsel %vm1216, %v2584, %v2588
        %v2591 = vshrl.u32 %v2155, 16
        %v2593 = vshll.u32 %v2155, 16
        %v2595 = vrot.slane %v2593, 1
        %v2596 = vor.u32 %v2591, %v2595
        %v2598 = vshll.u32 %v2283, 16
        %v2600 = vrot.slane %v2598, 1
        %v2601 = vsel %vm1216, %v2596, %v2600
        %v2603 = vshrl.u32 %v2156, 16
        %v2605 = vshll.u32 %v2156, 16
        %v2607 = vrot.slane %v2605, 1
        %v2608 = vor.u32 %v2603, %v2607
        %v2610 = vshll.u32 %v2284, 16
        %v2612 = vrot.slane %v2610, 1
        %v2613 = vsel %vm1216, %v2608, %v2612
        %v2615 = vshrl.u32 %v2157, 16
        %v2617 = vshll.u32 %v2157, 16
        %v2619 = vrot.slane %v2617, 1
        %v2620 = vor.u32 %v2615, %v2619
        %v2622 = vshll.u32 %v2285, 16
        %v2624 = vrot.slane %v2622, 1
        %v2625 = vsel %vm1216, %v2620, %v2624
        %v2627 = vshrl.u32 %v2158, 16
        %v2629 = vshll.u32 %v2158, 16
        %v2631 = vrot.slane %v2629, 1
        %v2632 = vor.u32 %v2627, %v2631
        %v2634 = vshll.u32 %v2286, 16
        %v2636 = vrot.slane %v2634, 1
        %v2637 = vsel %vm1216, %v2632, %v2636
        %v2639 = vshrl.u32 %v2159, 16
        %v2641 = vshll.u32 %v2159, 16
        %v2643 = vrot.slane %v2641, 1
        %v2644 = vor.u32 %v2639, %v2643
        %v2646 = vshll.u32 %v2287, 16
        %v2648 = vrot.slane %v2646, 1
        %v2649 = vsel %vm1216, %v2644, %v2648
        %v2651 = vshrl.u32 %v2160, 16
        %v2653 = vshll.u32 %v2160, 16
        %v2655 = vrot.slane %v2653, 1
        %v2656 = vor.u32 %v2651, %v2655
        %v2658 = vshll.u32 %v2288, 16
        %v2660 = vrot.slane %v2658, 1
        %v2661 = vsel %vm1216, %v2656, %v2660
        %v2663 = vshrl.u32 %v2161, 16
        %v2665 = vshll.u32 %v2161, 16
        %v2667 = vrot.slane %v2665, 1
        %v2668 = vor.u32 %v2663, %v2667
        %v2670 = vshll.u32 %v2289, 16
        %v2672 = vrot.slane %v2670, 1
        %v2673 = vsel %vm1216, %v2668, %v2672
        %v2706 = vrot.slane %v2130, 1
        %v2707 = vrot.slane %v2258, 1
        %v2708 = vsel %vm1633, %v2706, %v2707
        %v2709 = vrot.slane %v2131, 1
        %v2710 = vrot.slane %v2259, 1
        %v2711 = vsel %vm1633, %v2709, %v2710
        %v2712 = vrot.slane %v2132, 1
        %v2713 = vrot.slane %v2260, 1
        %v2714 = vsel %vm1633, %v2712, %v2713
        %v2715 = vrot.slane %v2133, 1
        %v2716 = vrot.slane %v2261, 1
        %v2717 = vsel %vm1633, %v2715, %v2716
        %v2718 = vrot.slane %v2134, 1
        %v2719 = vrot.slane %v2262, 1
        %v2720 = vsel %vm1633, %v2718, %v2719
        %v2721 = vrot.slane %v2135, 1
        %v2722 = vrot.slane %v2263, 1
        %v2723 = vsel %vm1633, %v2721, %v2722
        %v2724 = vrot.slane %v2136, 1
        %v2725 = vrot.slane %v2264, 1
        %v2726 = vsel %vm1633, %v2724, %v2725
        %v2727 = vrot.slane %v2137, 1
        %v2728 = vrot.slane %v2265, 1
        %v2729 = vsel %vm1633, %v2727, %v2728
        %v2730 = vrot.slane %v2138, 1
        %v2731 = vrot.slane %v2266, 1
        %v2732 = vsel %vm1633, %v2730, %v2731
        %v2733 = vrot.slane %v2139, 1
        %v2734 = vrot.slane %v2267, 1
        %v2735 = vsel %vm1633, %v2733, %v2734
        %v2736 = vrot.slane %v2140, 1
        %v2737 = vrot.slane %v2268, 1
        %v2738 = vsel %vm1633, %v2736, %v2737
        %v2739 = vrot.slane %v2141, 1
        %v2740 = vrot.slane %v2269, 1
        %v2741 = vsel %vm1633, %v2739, %v2740
        %v2742 = vrot.slane %v2142, 1
        %v2743 = vrot.slane %v2270, 1
        %v2744 = vsel %vm1633, %v2742, %v2743
        %v2745 = vrot.slane %v2143, 1
        %v2746 = vrot.slane %v2271, 1
        %v2747 = vsel %vm1633, %v2745, %v2746
        %v2748 = vrot.slane %v2144, 1
        %v2749 = vrot.slane %v2272, 1
        %v2750 = vsel %vm1633, %v2748, %v2749
        %v2751 = vrot.slane %v2145, 1
        %v2752 = vrot.slane %v2273, 1
        %v2753 = vsel %vm1633, %v2751, %v2752
        %v2754 = vrot.slane %v2146, 1
        %v2755 = vrot.slane %v2274, 1
        %v2756 = vsel %vm1633, %v2754, %v2755
        %v2757 = vrot.slane %v2147, 1
        %v2758 = vrot.slane %v2275, 1
        %v2759 = vsel %vm1633, %v2757, %v2758
        %v2760 = vrot.slane %v2148, 1
        %v2761 = vrot.slane %v2276, 1
        %v2762 = vsel %vm1633, %v2760, %v2761
        %v2763 = vrot.slane %v2149, 1
        %v2764 = vrot.slane %v2277, 1
        %v2765 = vsel %vm1633, %v2763, %v2764
        %v2766 = vrot.slane %v2150, 1
        %v2767 = vrot.slane %v2278, 1
        %v2768 = vsel %vm1633, %v2766, %v2767
        %v2769 = vrot.slane %v2151, 1
        %v2770 = vrot.slane %v2279, 1
        %v2771 = vsel %vm1633, %v2769, %v2770
        %v2772 = vrot.slane %v2152, 1
        %v2773 = vrot.slane %v2280, 1
        %v2774 = vsel %vm1633, %v2772, %v2773
        %v2775 = vrot.slane %v2153, 1
        %v2776 = vrot.slane %v2281, 1
        %v2777 = vsel %vm1633, %v2775, %v2776
        %v2778 = vrot.slane %v2154, 1
        %v2779 = vrot.slane %v2282, 1
        %v2780 = vsel %vm1633, %v2778, %v2779
        %v2781 = vrot.slane %v2155, 1
        %v2782 = vrot.slane %v2283, 1
        %v2783 = vsel %vm1633, %v2781, %v2782
        %v2784 = vrot.slane %v2156, 1
        %v2785 = vrot.slane %v2284, 1
        %v2786 = vsel %vm1633, %v2784, %v2785
        %v2787 = vrot.slane %v2157, 1
        %v2788 = vrot.slane %v2285, 1
        %v2789 = vsel %vm1633, %v2787, %v2788
        %v2790 = vrot.slane %v2158, 1
        %v2791 = vrot.slane %v2286, 1
        %v2792 = vsel %vm1633, %v2790, %v2791
        %v2793 = vrot.slane %v2159, 1
        %v2794 = vrot.slane %v2287, 1
        %v2795 = vsel %vm1633, %v2793, %v2794
        %v2796 = vrot.slane %v2160, 1
        %v2797 = vrot.slane %v2288, 1
        %v2798 = vsel %vm1633, %v2796, %v2797
        %v2799 = vrot.slane %v2161, 1
        %v2800 = vrot.slane %v2289, 1
        %v2801 = vsel %vm1633, %v2799, %v2800
        %s2834 = scalar_lea.vmem %s392, 192 [#allocation9]
        %v2835 = vld [vmem:[%s2834] sm:$0xf]
        %v2836 = vld [vmem:[%s2834 + $0x4] sm:$0xf]
        %v2837 = vld [vmem:[%s2834 + $0x8] sm:$0xf]
        %v2838 = vld [vmem:[%s2834 + $0xc] sm:$0xf]
        %v2839 = vld [vmem:[%s2834 + $0x10] sm:$0xf]
        %v2840 = vld [vmem:[%s2834 + $0x14] sm:$0xf]
        %v2841 = vld [vmem:[%s2834 + $0x18] sm:$0xf]
        %v2842 = vld [vmem:[%s2834 + $0x1c] sm:$0xf]
        %v2843 = vld [vmem:[%s2834 + $0x20] sm:$0xf]
        %v2844 = vld [vmem:[%s2834 + $0x24] sm:$0xf]
        %v2845 = vld [vmem:[%s2834 + $0x28] sm:$0xf]
        %v2846 = vld [vmem:[%s2834 + $0x2c] sm:$0xf]
        %v2847 = vld [vmem:[%s2834 + $0x30] sm:$0xf]
        %v2848 = vld [vmem:[%s2834 + $0x34] sm:$0xf]
        %v2849 = vld [vmem:[%s2834 + $0x38] sm:$0xf]
        %v2850 = vld [vmem:[%s2834 + $0x3c] sm:$0xf]
        %v2851 = vld [vmem:[%s2834 + $0x40] sm:$0xf]
        %v2852 = vld [vmem:[%s2834 + $0x44] sm:$0xf]
        %v2853 = vld [vmem:[%s2834 + $0x48] sm:$0xf]
        %v2854 = vld [vmem:[%s2834 + $0x4c] sm:$0xf]
        %v2855 = vld [vmem:[%s2834 + $0x50] sm:$0xf]
        %v2856 = vld [vmem:[%s2834 + $0x54] sm:$0xf]
        %v2857 = vld [vmem:[%s2834 + $0x58] sm:$0xf]
        %v2858 = vld [vmem:[%s2834 + $0x5c] sm:$0xf]
        %v2859 = vld [vmem:[%s2834 + $0x60] sm:$0xf]
        %v2860 = vld [vmem:[%s2834 + $0x64] sm:$0xf]
        %v2861 = vld [vmem:[%s2834 + $0x68] sm:$0xf]
        %v2862 = vld [vmem:[%s2834 + $0x6c] sm:$0xf]
        %v2863 = vld [vmem:[%s2834 + $0x70] sm:$0xf]
        %v2864 = vld [vmem:[%s2834 + $0x74] sm:$0xf]
        %v2865 = vld [vmem:[%s2834 + $0x78] sm:$0xf]
        %v2866 = vld [vmem:[%s2834 + $0x7c] sm:$0xf]
        %v2867 = vld [vmem:[%s2834 + $0x80] sm:$0xf]
        %v2868 = vld [vmem:[%s2834 + $0x84] sm:$0xf]
        %v2869 = vld [vmem:[%s2834 + $0x88] sm:$0xf]
        %v2870 = vld [vmem:[%s2834 + $0x8c] sm:$0xf]
        %v2871 = vld [vmem:[%s2834 + $0x90] sm:$0xf]
        %v2872 = vld [vmem:[%s2834 + $0x94] sm:$0xf]
        %v2873 = vld [vmem:[%s2834 + $0x98] sm:$0xf]
        %v2874 = vld [vmem:[%s2834 + $0x9c] sm:$0xf]
        %v2875 = vld [vmem:[%s2834 + $0xa0] sm:$0xf]
        %v2876 = vld [vmem:[%s2834 + $0xa4] sm:$0xf]
        %v2877 = vld [vmem:[%s2834 + $0xa8] sm:$0xf]
        %v2878 = vld [vmem:[%s2834 + $0xac] sm:$0xf]
        %v2879 = vld [vmem:[%s2834 + $0xb0] sm:$0xf]
        %v2880 = vld [vmem:[%s2834 + $0xb4] sm:$0xf]
        %v2881 = vld [vmem:[%s2834 + $0xb8] sm:$0xf]
        %v2882 = vld [vmem:[%s2834 + $0xbc] sm:$0xf]
        %v2931 = vunpack.c.l.b16 %v2835
        %v2932 = vunpack.c.l.b16 %v2836
        %v2933 = vunpack.c.l.b16 %v2837
        %v2934 = vunpack.c.l.b16 %v2838
        %v2935 = vunpack.c.l.b16 %v2839
        %v2936 = vunpack.c.l.b16 %v2840
        %v2937 = vunpack.c.l.b16 %v2841
        %v2938 = vunpack.c.l.b16 %v2842
        %v2939 = vunpack.c.l.b16 %v2843
        %v2940 = vunpack.c.l.b16 %v2844
        %v2941 = vunpack.c.l.b16 %v2845
        %v2942 = vunpack.c.l.b16 %v2846
        %v2943 = vunpack.c.l.b16 %v2847
        %v2944 = vunpack.c.l.b16 %v2848
        %v2945 = vunpack.c.l.b16 %v2849
        %v2946 = vunpack.c.l.b16 %v2850
        %v2947 = vunpack.c.l.b16 %v2851
        %v2948 = vunpack.c.l.b16 %v2852
        %v2949 = vunpack.c.l.b16 %v2853
        %v2950 = vunpack.c.l.b16 %v2854
        %v2951 = vunpack.c.l.b16 %v2855
        %v2952 = vunpack.c.l.b16 %v2856
        %v2953 = vunpack.c.l.b16 %v2857
        %v2954 = vunpack.c.l.b16 %v2858
        %v2955 = vunpack.c.l.b16 %v2859
        %v2956 = vunpack.c.l.b16 %v2860
        %v2957 = vunpack.c.l.b16 %v2861
        %v2958 = vunpack.c.l.b16 %v2862
        %v2959 = vunpack.c.l.b16 %v2863
        %v2960 = vunpack.c.l.b16 %v2864
        %v2961 = vunpack.c.l.b16 %v2865
        %v2962 = vunpack.c.l.b16 %v2866
        %v2963 = vunpack.c.l.b16 %v2867
        %v2964 = vunpack.c.l.b16 %v2868
        %v2965 = vunpack.c.l.b16 %v2869
        %v2966 = vunpack.c.l.b16 %v2870
        %v2967 = vunpack.c.l.b16 %v2871
        %v2968 = vunpack.c.l.b16 %v2872
        %v2969 = vunpack.c.l.b16 %v2873
        %v2970 = vunpack.c.l.b16 %v2874
        %v2971 = vunpack.c.l.b16 %v2875
        %v2972 = vunpack.c.l.b16 %v2876
        %v2973 = vunpack.c.l.b16 %v2877
        %v2974 = vunpack.c.l.b16 %v2878
        %v2975 = vunpack.c.l.b16 %v2879
        %v2976 = vunpack.c.l.b16 %v2880
        %v2977 = vunpack.c.l.b16 %v2881
        %v2978 = vunpack.c.l.b16 %v2882
        %v2979 = vpack.c.b16 %v2932, %v2931
        %v2980 = vpack.c.b16 %v2934, %v2933
        %v2981 = vpack.c.b16 %v2936, %v2935
        %v2982 = vpack.c.b16 %v2938, %v2937
        %v2983 = vpack.c.b16 %v2940, %v2939
        %v2984 = vpack.c.b16 %v2942, %v2941
        %v2985 = vpack.c.b16 %v2944, %v2943
        %v2986 = vpack.c.b16 %v2946, %v2945
        %v2987 = vpack.c.b16 %v2948, %v2947
        %v2988 = vpack.c.b16 %v2950, %v2949
        %v2989 = vpack.c.b16 %v2952, %v2951
        %v2990 = vpack.c.b16 %v2954, %v2953
        %v2991 = vpack.c.b16 %v2956, %v2955
        %v2992 = vpack.c.b16 %v2958, %v2957
        %v2993 = vpack.c.b16 %v2960, %v2959
        %v2994 = vpack.c.b16 %v2962, %v2961
        %v2995 = vpack.c.b16 %v2964, %v2963
        %v2996 = vpack.c.b16 %v2966, %v2965
        %v2997 = vpack.c.b16 %v2968, %v2967
        %v2998 = vpack.c.b16 %v2970, %v2969
        %v2999 = vpack.c.b16 %v2972, %v2971
        %v3000 = vpack.c.b16 %v2974, %v2973
        %v3001 = vpack.c.b16 %v2976, %v2975
        %v3002 = vpack.c.b16 %v2978, %v2977
        %3027 = vmatpush.bf16.msra.mxu0 %v2986
        %3028 = vmatpush.bf16.msra.mxu0 %v2985
        %3029 = vmatpush.bf16.msra.mxu0 %v2984
        %3030 = vmatpush.bf16.msra.mxu0 %v2983
        %3031 = vmatpush.bf16.msra.mxu0 %v2982
        %3032 = vmatpush.bf16.msra.mxu0 %v2981
        %3033 = vmatpush.bf16.msra.mxu0 %v2980
        %3034 = vmatpush.bf16.msra.mxu0 %v2979
        %3035 = vmatmul.bf16.gmra.mxu0 %v2130
        %v3036 = vpop.f32.mrf.mxu0
        %v3037 = vadd.f32 0.0, %v3036
        %v3038 = vpop.f32.mrf.mxu0
        %v3039 = vadd.f32 0.0, %v3038
        %3040 = vmatmul.bf16.gmra.mxu0 %v2131
        %v3041 = vpop.f32.mrf.mxu0
        %v3042 = vadd.f32 0.0, %v3041
        %v3043 = vpop.f32.mrf.mxu0
        %v3044 = vadd.f32 0.0, %v3043
        %3045 = vmatmul.bf16.gmra.mxu0 %v2132
        %v3046 = vpop.f32.mrf.mxu0
        %v3047 = vadd.f32 0.0, %v3046
        %v3048 = vpop.f32.mrf.mxu0
        %v3049 = vadd.f32 0.0, %v3048
        %3050 = vmatmul.bf16.gmra.mxu0 %v2133
        %v3051 = vpop.f32.mrf.mxu0
        %v3052 = vadd.f32 0.0, %v3051
        %v3053 = vpop.f32.mrf.mxu0
        %v3054 = vadd.f32 0.0, %v3053
        %3055 = vmatmul.bf16.gmra.mxu0 %v2134
        %v3056 = vpop.f32.mrf.mxu0
        %v3057 = vadd.f32 0.0, %v3056
        %v3058 = vpop.f32.mrf.mxu0
        %v3059 = vadd.f32 0.0, %v3058
        %3060 = vmatmul.bf16.gmra.mxu0 %v2135
        %v3061 = vpop.f32.mrf.mxu0
        %v3062 = vadd.f32 0.0, %v3061
        %v3063 = vpop.f32.mrf.mxu0
        %v3064 = vadd.f32 0.0, %v3063
        %3065 = vmatmul.bf16.gmra.mxu0 %v2136
        %v3066 = vpop.f32.mrf.mxu0
        %v3067 = vadd.f32 0.0, %v3066
        %v3068 = vpop.f32.mrf.mxu0
        %v3069 = vadd.f32 0.0, %v3068
        %3070 = vmatmul.bf16.gmra.mxu0 %v2137
        %v3071 = vpop.f32.mrf.mxu0
        %v3072 = vadd.f32 0.0, %v3071
        %v3073 = vpop.f32.mrf.mxu0
        %v3074 = vadd.f32 0.0, %v3073
        %3075 = vmatmul.bf16.gmra.mxu0 %v2138
        %v3076 = vpop.f32.mrf.mxu0
        %v3077 = vadd.f32 0.0, %v3076
        %v3078 = vpop.f32.mrf.mxu0
        %v3079 = vadd.f32 0.0, %v3078
        %3080 = vmatmul.bf16.gmra.mxu0 %v2139
        %v3081 = vpop.f32.mrf.mxu0
        %v3082 = vadd.f32 0.0, %v3081
        %v3083 = vpop.f32.mrf.mxu0
        %v3084 = vadd.f32 0.0, %v3083
        %3085 = vmatmul.bf16.gmra.mxu0 %v2140
        %v3086 = vpop.f32.mrf.mxu0
        %v3087 = vadd.f32 0.0, %v3086
        %v3088 = vpop.f32.mrf.mxu0
        %v3089 = vadd.f32 0.0, %v3088
        %3090 = vmatmul.bf16.gmra.mxu0 %v2141
        %v3091 = vpop.f32.mrf.mxu0
        %v3092 = vadd.f32 0.0, %v3091
        %v3093 = vpop.f32.mrf.mxu0
        %v3094 = vadd.f32 0.0, %v3093
        %3095 = vmatmul.bf16.gmra.mxu0 %v2142
        %v3096 = vpop.f32.mrf.mxu0
        %v3097 = vadd.f32 0.0, %v3096
        %v3098 = vpop.f32.mrf.mxu0
        %v3099 = vadd.f32 0.0, %v3098
        %3100 = vmatmul.bf16.gmra.mxu0 %v2143
        %v3101 = vpop.f32.mrf.mxu0
        %v3102 = vadd.f32 0.0, %v3101
        %v3103 = vpop.f32.mrf.mxu0
        %v3104 = vadd.f32 0.0, %v3103
        %3105 = vmatmul.bf16.gmra.mxu0 %v2144
        %v3106 = vpop.f32.mrf.mxu0
        %v3107 = vadd.f32 0.0, %v3106
        %v3108 = vpop.f32.mrf.mxu0
        %v3109 = vadd.f32 0.0, %v3108
        %3110 = vmatmul.bf16.gmra.mxu0 %v2145
        %v3111 = vpop.f32.mrf.mxu0
        %v3112 = vadd.f32 0.0, %v3111
        %v3113 = vpop.f32.mrf.mxu0
        %v3114 = vadd.f32 0.0, %v3113
        %3115 = vmatmul.bf16.gmra.mxu0 %v2146
        %v3116 = vpop.f32.mrf.mxu0
        %v3117 = vadd.f32 0.0, %v3116
        %v3118 = vpop.f32.mrf.mxu0
        %v3119 = vadd.f32 0.0, %v3118
        %3120 = vmatmul.bf16.gmra.mxu0 %v2147
        %v3121 = vpop.f32.mrf.mxu0
        %v3122 = vadd.f32 0.0, %v3121
        %v3123 = vpop.f32.mrf.mxu0
        %v3124 = vadd.f32 0.0, %v3123
        %3125 = vmatmul.bf16.gmra.mxu0 %v2148
        %v3126 = vpop.f32.mrf.mxu0
        %v3127 = vadd.f32 0.0, %v3126
        %v3128 = vpop.f32.mrf.mxu0
        %v3129 = vadd.f32 0.0, %v3128
        %3130 = vmatmul.bf16.gmra.mxu0 %v2149
        %v3131 = vpop.f32.mrf.mxu0
        %v3132 = vadd.f32 0.0, %v3131
        %v3133 = vpop.f32.mrf.mxu0
        %v3134 = vadd.f32 0.0, %v3133
        %3135 = vmatmul.bf16.gmra.mxu0 %v2150
        %v3136 = vpop.f32.mrf.mxu0
        %v3137 = vadd.f32 0.0, %v3136
        %v3138 = vpop.f32.mrf.mxu0
        %v3139 = vadd.f32 0.0, %v3138
        %3140 = vmatmul.bf16.gmra.mxu0 %v2151
        %v3141 = vpop.f32.mrf.mxu0
        %v3142 = vadd.f32 0.0, %v3141
        %v3143 = vpop.f32.mrf.mxu0
        %v3144 = vadd.f32 0.0, %v3143
        %3145 = vmatmul.bf16.gmra.mxu0 %v2152
        %v3146 = vpop.f32.mrf.mxu0
        %v3147 = vadd.f32 0.0, %v3146
        %v3148 = vpop.f32.mrf.mxu0
        %v3149 = vadd.f32 0.0, %v3148
        %3150 = vmatmul.bf16.gmra.mxu0 %v2153
        %v3151 = vpop.f32.mrf.mxu0
        %v3152 = vadd.f32 0.0, %v3151
        %v3153 = vpop.f32.mrf.mxu0
        %v3154 = vadd.f32 0.0, %v3153
        %3155 = vmatmul.bf16.gmra.mxu0 %v2154
        %v3156 = vpop.f32.mrf.mxu0
        %v3157 = vadd.f32 0.0, %v3156
        %v3158 = vpop.f32.mrf.mxu0
        %v3159 = vadd.f32 0.0, %v3158
        %3160 = vmatmul.bf16.gmra.mxu0 %v2155
        %v3161 = vpop.f32.mrf.mxu0
        %v3162 = vadd.f32 0.0, %v3161
        %v3163 = vpop.f32.mrf.mxu0
        %v3164 = vadd.f32 0.0, %v3163
        %3165 = vmatmul.bf16.gmra.mxu0 %v2156
        %v3166 = vpop.f32.mrf.mxu0
        %v3167 = vadd.f32 0.0, %v3166
        %v3168 = vpop.f32.mrf.mxu0
        %v3169 = vadd.f32 0.0, %v3168
        %3170 = vmatmul.bf16.gmra.mxu0 %v2157
        %v3171 = vpop.f32.mrf.mxu0
        %v3172 = vadd.f32 0.0, %v3171
        %v3173 = vpop.f32.mrf.mxu0
        %v3174 = vadd.f32 0.0, %v3173
        %3175 = vmatmul.bf16.gmra.mxu0 %v2158
        %v3176 = vpop.f32.mrf.mxu0
        %v3177 = vadd.f32 0.0, %v3176
        %v3178 = vpop.f32.mrf.mxu0
        %v3179 = vadd.f32 0.0, %v3178
        %3180 = vmatmul.bf16.gmra.mxu0 %v2159
        %v3181 = vpop.f32.mrf.mxu0
        %v3182 = vadd.f32 0.0, %v3181
        %v3183 = vpop.f32.mrf.mxu0
        %v3184 = vadd.f32 0.0, %v3183
        %3185 = vmatmul.bf16.gmra.mxu0 %v2160
        %v3186 = vpop.f32.mrf.mxu0
        %v3187 = vadd.f32 0.0, %v3186
        %v3188 = vpop.f32.mrf.mxu0
        %v3189 = vadd.f32 0.0, %v3188
        %3190 = vmatmul.bf16.gmra.mxu0 %v2161
        %v3191 = vpop.f32.mrf.mxu0
        %v3192 = vadd.f32 0.0, %v3191
        %v3193 = vpop.f32.mrf.mxu0
        %v3194 = vadd.f32 0.0, %v3193
        %3195 = vdwg.mxu0
        %3196 = vmatpush.bf16.msra.mxu0 %v2994
        %3197 = vmatpush.bf16.msra.mxu0 %v2993
        %3198 = vmatpush.bf16.msra.mxu0 %v2992
        %3199 = vmatpush.bf16.msra.mxu0 %v2991
        %3200 = vmatpush.bf16.msra.mxu0 %v2990
        %3201 = vmatpush.bf16.msra.mxu0 %v2989
        %3202 = vmatpush.bf16.msra.mxu0 %v2988
        %3203 = vmatpush.bf16.msra.mxu0 %v2987
        %3204 = vmatmul.bf16.gmra.mxu0 %v2301
        %v3205 = vpop.f32.mrf.mxu0
        %v3206 = vadd.f32 %v3037, %v3205
        %v3207 = vpop.f32.mrf.mxu0
        %v3208 = vadd.f32 %v3039, %v3207
        %3209 = vmatmul.bf16.gmra.mxu0 %v2313
        %v3210 = vpop.f32.mrf.mxu0
        %v3211 = vadd.f32 %v3042, %v3210
        %v3212 = vpop.f32.mrf.mxu0
        %v3213 = vadd.f32 %v3044, %v3212
        %3214 = vmatmul.bf16.gmra.mxu0 %v2325
        %v3215 = vpop.f32.mrf.mxu0
        %v3216 = vadd.f32 %v3047, %v3215
        %v3217 = vpop.f32.mrf.mxu0
        %v3218 = vadd.f32 %v3049, %v3217
        %3219 = vmatmul.bf16.gmra.mxu0 %v2337
        %v3220 = vpop.f32.mrf.mxu0
        %v3221 = vadd.f32 %v3052, %v3220
        %v3222 = vpop.f32.mrf.mxu0
        %v3223 = vadd.f32 %v3054, %v3222
        %3224 = vmatmul.bf16.gmra.mxu0 %v2349
        %v3225 = vpop.f32.mrf.mxu0
        %v3226 = vadd.f32 %v3057, %v3225
        %v3227 = vpop.f32.mrf.mxu0
        %v3228 = vadd.f32 %v3059, %v3227
        %3229 = vmatmul.bf16.gmra.mxu0 %v2361
        %v3230 = vpop.f32.mrf.mxu0
        %v3231 = vadd.f32 %v3062, %v3230
        %v3232 = vpop.f32.mrf.mxu0
        %v3233 = vadd.f32 %v3064, %v3232
        %3234 = vmatmul.bf16.gmra.mxu0 %v2373
        %v3235 = vpop.f32.mrf.mxu0
        %v3236 = vadd.f32 %v3067, %v3235
        %v3237 = vpop.f32.mrf.mxu0
        %v3238 = vadd.f32 %v3069, %v3237
        %3239 = vmatmul.bf16.gmra.mxu0 %v2385
        %v3240 = vpop.f32.mrf.mxu0
        %v3241 = vadd.f32 %v3072, %v3240
        %v3242 = vpop.f32.mrf.mxu0
        %v3243 = vadd.f32 %v3074, %v3242
        %3244 = vmatmul.bf16.gmra.mxu0 %v2397
        %v3245 = vpop.f32.mrf.mxu0
        %v3246 = vadd.f32 %v3077, %v3245
        %v3247 = vpop.f32.mrf.mxu0
        %v3248 = vadd.f32 %v3079, %v3247
        %3249 = vmatmul.bf16.gmra.mxu0 %v2409
        %v3250 = vpop.f32.mrf.mxu0
        %v3251 = vadd.f32 %v3082, %v3250
        %v3252 = vpop.f32.mrf.mxu0
        %v3253 = vadd.f32 %v3084, %v3252
        %3254 = vmatmul.bf16.gmra.mxu0 %v2421
        %v3255 = vpop.f32.mrf.mxu0
        %v3256 = vadd.f32 %v3087, %v3255
        %v3257 = vpop.f32.mrf.mxu0
        %v3258 = vadd.f32 %v3089, %v3257
        %3259 = vmatmul.bf16.gmra.mxu0 %v2433
        %v3260 = vpop.f32.mrf.mxu0
        %v3261 = vadd.f32 %v3092, %v3260
        %v3262 = vpop.f32.mrf.mxu0
        %v3263 = vadd.f32 %v3094, %v3262
        %3264 = vmatmul.bf16.gmra.mxu0 %v2445
        %v3265 = vpop.f32.mrf.mxu0
        %v3266 = vadd.f32 %v3097, %v3265
        %v3267 = vpop.f32.mrf.mxu0
        %v3268 = vadd.f32 %v3099, %v3267
        %3269 = vmatmul.bf16.gmra.mxu0 %v2457
        %v3270 = vpop.f32.mrf.mxu0
        %v3271 = vadd.f32 %v3102, %v3270
        %v3272 = vpop.f32.mrf.mxu0
        %v3273 = vadd.f32 %v3104, %v3272
        %3274 = vmatmul.bf16.gmra.mxu0 %v2469
        %v3275 = vpop.f32.mrf.mxu0
        %v3276 = vadd.f32 %v3107, %v3275
        %v3277 = vpop.f32.mrf.mxu0
        %v3278 = vadd.f32 %v3109, %v3277
        %3279 = vmatmul.bf16.gmra.mxu0 %v2481
        %v3280 = vpop.f32.mrf.mxu0
        %v3281 = vadd.f32 %v3112, %v3280
        %v3282 = vpop.f32.mrf.mxu0
        %v3283 = vadd.f32 %v3114, %v3282
        %3284 = vmatmul.bf16.gmra.mxu0 %v2493
        %v3285 = vpop.f32.mrf.mxu0
        %v3286 = vadd.f32 %v3117, %v3285
        %v3287 = vpop.f32.mrf.mxu0
        %v3288 = vadd.f32 %v3119, %v3287
        %3289 = vmatmul.bf16.gmra.mxu0 %v2505
        %v3290 = vpop.f32.mrf.mxu0
        %v3291 = vadd.f32 %v3122, %v3290
        %v3292 = vpop.f32.mrf.mxu0
        %v3293 = vadd.f32 %v3124, %v3292
        %3294 = vmatmul.bf16.gmra.mxu0 %v2517
        %v3295 = vpop.f32.mrf.mxu0
        %v3296 = vadd.f32 %v3127, %v3295
        %v3297 = vpop.f32.mrf.mxu0
        %v3298 = vadd.f32 %v3129, %v3297
        %3299 = vmatmul.bf16.gmra.mxu0 %v2529
        %v3300 = vpop.f32.mrf.mxu0
        %v3301 = vadd.f32 %v3132, %v3300
        %v3302 = vpop.f32.mrf.mxu0
        %v3303 = vadd.f32 %v3134, %v3302
        %3304 = vmatmul.bf16.gmra.mxu0 %v2541
        %v3305 = vpop.f32.mrf.mxu0
        %v3306 = vadd.f32 %v3137, %v3305
        %v3307 = vpop.f32.mrf.mxu0
        %v3308 = vadd.f32 %v3139, %v3307
        %3309 = vmatmul.bf16.gmra.mxu0 %v2553
        %v3310 = vpop.f32.mrf.mxu0
        %v3311 = vadd.f32 %v3142, %v3310
        %v3312 = vpop.f32.mrf.mxu0
        %v3313 = vadd.f32 %v3144, %v3312
        %3314 = vmatmul.bf16.gmra.mxu0 %v2565
        %v3315 = vpop.f32.mrf.mxu0
        %v3316 = vadd.f32 %v3147, %v3315
        %v3317 = vpop.f32.mrf.mxu0
        %v3318 = vadd.f32 %v3149, %v3317
        %3319 = vmatmul.bf16.gmra.mxu0 %v2577
        %v3320 = vpop.f32.mrf.mxu0
        %v3321 = vadd.f32 %v3152, %v3320
        %v3322 = vpop.f32.mrf.mxu0
        %v3323 = vadd.f32 %v3154, %v3322
        %3324 = vmatmul.bf16.gmra.mxu0 %v2589
        %v3325 = vpop.f32.mrf.mxu0
        %v3326 = vadd.f32 %v3157, %v3325
        %v3327 = vpop.f32.mrf.mxu0
        %v3328 = vadd.f32 %v3159, %v3327
        %3329 = vmatmul.bf16.gmra.mxu0 %v2601
        %v3330 = vpop.f32.mrf.mxu0
        %v3331 = vadd.f32 %v3162, %v3330
        %v3332 = vpop.f32.mrf.mxu0
        %v3333 = vadd.f32 %v3164, %v3332
        %3334 = vmatmul.bf16.gmra.mxu0 %v2613
        %v3335 = vpop.f32.mrf.mxu0
        %v3336 = vadd.f32 %v3167, %v3335
        %v3337 = vpop.f32.mrf.mxu0
        %v3338 = vadd.f32 %v3169, %v3337
        %3339 = vmatmul.bf16.gmra.mxu0 %v2625
        %v3340 = vpop.f32.mrf.mxu0
        %v3341 = vadd.f32 %v3172, %v3340
        %v3342 = vpop.f32.mrf.mxu0
        %v3343 = vadd.f32 %v3174, %v3342
        %3344 = vmatmul.bf16.gmra.mxu0 %v2637
        %v3345 = vpop.f32.mrf.mxu0
        %v3346 = vadd.f32 %v3177, %v3345
        %v3347 = vpop.f32.mrf.mxu0
        %v3348 = vadd.f32 %v3179, %v3347
        %3349 = vmatmul.bf16.gmra.mxu0 %v2649
        %v3350 = vpop.f32.mrf.mxu0
        %v3351 = vadd.f32 %v3182, %v3350
        %v3352 = vpop.f32.mrf.mxu0
        %v3353 = vadd.f32 %v3184, %v3352
        %3354 = vmatmul.bf16.gmra.mxu0 %v2661
        %v3355 = vpop.f32.mrf.mxu0
        %v3356 = vadd.f32 %v3187, %v3355
        %v3357 = vpop.f32.mrf.mxu0
        %v3358 = vadd.f32 %v3189, %v3357
        %3359 = vmatmul.bf16.gmra.mxu0 %v2673
        %v3360 = vpop.f32.mrf.mxu0
        %v3361 = vadd.f32 %v3192, %v3360
        %v3362 = vpop.f32.mrf.mxu0
        %v3363 = vadd.f32 %v3194, %v3362
        %3364 = vdwg.mxu0
        %3365 = vmatpush.bf16.msra.mxu0 %v3002
        %3366 = vmatpush.bf16.msra.mxu0 %v3001
        %3367 = vmatpush.bf16.msra.mxu0 %v3000
        %3368 = vmatpush.bf16.msra.mxu0 %v2999
        %3369 = vmatpush.bf16.msra.mxu0 %v2998
        %3370 = vmatpush.bf16.msra.mxu0 %v2997
        %3371 = vmatpush.bf16.msra.mxu0 %v2996
        %3372 = vmatpush.bf16.msra.mxu0 %v2995
        %3373 = vmatmul.bf16.gmra.mxu0 %v2708
        %v3374 = vpop.f32.mrf.mxu0
        %v3375 = vadd.f32 %v3206, %v3374
        %v3376 = vpop.f32.mrf.mxu0
        %v3377 = vadd.f32 %v3208, %v3376
        %3378 = vmatmul.bf16.gmra.mxu0 %v2711
        %v3379 = vpop.f32.mrf.mxu0
        %v3380 = vadd.f32 %v3211, %v3379
        %v3381 = vpop.f32.mrf.mxu0
        %v3382 = vadd.f32 %v3213, %v3381
        %3383 = vmatmul.bf16.gmra.mxu0 %v2714
        %v3384 = vpop.f32.mrf.mxu0
        %v3385 = vadd.f32 %v3216, %v3384
        %v3386 = vpop.f32.mrf.mxu0
        %v3387 = vadd.f32 %v3218, %v3386
        %3388 = vmatmul.bf16.gmra.mxu0 %v2717
        %v3389 = vpop.f32.mrf.mxu0
        %v3390 = vadd.f32 %v3221, %v3389
        %v3391 = vpop.f32.mrf.mxu0
        %v3392 = vadd.f32 %v3223, %v3391
        %3393 = vmatmul.bf16.gmra.mxu0 %v2720
        %v3394 = vpop.f32.mrf.mxu0
        %v3395 = vadd.f32 %v3226, %v3394
        %v3396 = vpop.f32.mrf.mxu0
        %v3397 = vadd.f32 %v3228, %v3396
        %3398 = vmatmul.bf16.gmra.mxu0 %v2723
        %v3399 = vpop.f32.mrf.mxu0
        %v3400 = vadd.f32 %v3231, %v3399
        %v3401 = vpop.f32.mrf.mxu0
        %v3402 = vadd.f32 %v3233, %v3401
        %3403 = vmatmul.bf16.gmra.mxu0 %v2726
        %v3404 = vpop.f32.mrf.mxu0
        %v3405 = vadd.f32 %v3236, %v3404
        %v3406 = vpop.f32.mrf.mxu0
        %v3407 = vadd.f32 %v3238, %v3406
        %3408 = vmatmul.bf16.gmra.mxu0 %v2729
        %v3409 = vpop.f32.mrf.mxu0
        %v3410 = vadd.f32 %v3241, %v3409
        %v3411 = vpop.f32.mrf.mxu0
        %v3412 = vadd.f32 %v3243, %v3411
        %3413 = vmatmul.bf16.gmra.mxu0 %v2732
        %v3414 = vpop.f32.mrf.mxu0
        %v3415 = vadd.f32 %v3246, %v3414
        %v3416 = vpop.f32.mrf.mxu0
        %v3417 = vadd.f32 %v3248, %v3416
        %3418 = vmatmul.bf16.gmra.mxu0 %v2735
        %v3419 = vpop.f32.mrf.mxu0
        %v3420 = vadd.f32 %v3251, %v3419
        %v3421 = vpop.f32.mrf.mxu0
        %v3422 = vadd.f32 %v3253, %v3421
        %3423 = vmatmul.bf16.gmra.mxu0 %v2738
        %v3424 = vpop.f32.mrf.mxu0
        %v3425 = vadd.f32 %v3256, %v3424
        %v3426 = vpop.f32.mrf.mxu0
        %v3427 = vadd.f32 %v3258, %v3426
        %3428 = vmatmul.bf16.gmra.mxu0 %v2741
        %v3429 = vpop.f32.mrf.mxu0
        %v3430 = vadd.f32 %v3261, %v3429
        %v3431 = vpop.f32.mrf.mxu0
        %v3432 = vadd.f32 %v3263, %v3431
        %3433 = vmatmul.bf16.gmra.mxu0 %v2744
        %v3434 = vpop.f32.mrf.mxu0
        %v3435 = vadd.f32 %v3266, %v3434
        %v3436 = vpop.f32.mrf.mxu0
        %v3437 = vadd.f32 %v3268, %v3436
        %3438 = vmatmul.bf16.gmra.mxu0 %v2747
        %v3439 = vpop.f32.mrf.mxu0
        %v3440 = vadd.f32 %v3271, %v3439
        %v3441 = vpop.f32.mrf.mxu0
        %v3442 = vadd.f32 %v3273, %v3441
        %3443 = vmatmul.bf16.gmra.mxu0 %v2750
        %v3444 = vpop.f32.mrf.mxu0
        %v3445 = vadd.f32 %v3276, %v3444
        %v3446 = vpop.f32.mrf.mxu0
        %v3447 = vadd.f32 %v3278, %v3446
        %3448 = vmatmul.bf16.gmra.mxu0 %v2753
        %v3449 = vpop.f32.mrf.mxu0
        %v3450 = vadd.f32 %v3281, %v3449
        %v3451 = vpop.f32.mrf.mxu0
        %v3452 = vadd.f32 %v3283, %v3451
        %3453 = vmatmul.bf16.gmra.mxu0 %v2756
        %v3454 = vpop.f32.mrf.mxu0
        %v3455 = vadd.f32 %v3286, %v3454
        %v3456 = vpop.f32.mrf.mxu0
        %v3457 = vadd.f32 %v3288, %v3456
        %3458 = vmatmul.bf16.gmra.mxu0 %v2759
        %v3459 = vpop.f32.mrf.mxu0
        %v3460 = vadd.f32 %v3291, %v3459
        %v3461 = vpop.f32.mrf.mxu0
        %v3462 = vadd.f32 %v3293, %v3461
        %3463 = vmatmul.bf16.gmra.mxu0 %v2762
        %v3464 = vpop.f32.mrf.mxu0
        %v3465 = vadd.f32 %v3296, %v3464
        %v3466 = vpop.f32.mrf.mxu0
        %v3467 = vadd.f32 %v3298, %v3466
        %3468 = vmatmul.bf16.gmra.mxu0 %v2765
        %v3469 = vpop.f32.mrf.mxu0
        %v3470 = vadd.f32 %v3301, %v3469
        %v3471 = vpop.f32.mrf.mxu0
        %v3472 = vadd.f32 %v3303, %v3471
        %3473 = vmatmul.bf16.gmra.mxu0 %v2768
        %v3474 = vpop.f32.mrf.mxu0
        %v3475 = vadd.f32 %v3306, %v3474
        %v3476 = vpop.f32.mrf.mxu0
        %v3477 = vadd.f32 %v3308, %v3476
        %3478 = vmatmul.bf16.gmra.mxu0 %v2771
        %v3479 = vpop.f32.mrf.mxu0
        %v3480 = vadd.f32 %v3311, %v3479
        %v3481 = vpop.f32.mrf.mxu0
        %v3482 = vadd.f32 %v3313, %v3481
        %3483 = vmatmul.bf16.gmra.mxu0 %v2774
        %v3484 = vpop.f32.mrf.mxu0
        %v3485 = vadd.f32 %v3316, %v3484
        %v3486 = vpop.f32.mrf.mxu0
        %v3487 = vadd.f32 %v3318, %v3486
        %3488 = vmatmul.bf16.gmra.mxu0 %v2777
        %v3489 = vpop.f32.mrf.mxu0
        %v3490 = vadd.f32 %v3321, %v3489
        %v3491 = vpop.f32.mrf.mxu0
        %v3492 = vadd.f32 %v3323, %v3491
        %3493 = vmatmul.bf16.gmra.mxu0 %v2780
        %v3494 = vpop.f32.mrf.mxu0
        %v3495 = vadd.f32 %v3326, %v3494
        %v3496 = vpop.f32.mrf.mxu0
        %v3497 = vadd.f32 %v3328, %v3496
        %3498 = vmatmul.bf16.gmra.mxu0 %v2783
        %v3499 = vpop.f32.mrf.mxu0
        %v3500 = vadd.f32 %v3331, %v3499
        %v3501 = vpop.f32.mrf.mxu0
        %v3502 = vadd.f32 %v3333, %v3501
        %3503 = vmatmul.bf16.gmra.mxu0 %v2786
        %v3504 = vpop.f32.mrf.mxu0
        %v3505 = vadd.f32 %v3336, %v3504
        %v3506 = vpop.f32.mrf.mxu0
        %v3507 = vadd.f32 %v3338, %v3506
        %3508 = vmatmul.bf16.gmra.mxu0 %v2789
        %v3509 = vpop.f32.mrf.mxu0
        %v3510 = vadd.f32 %v3341, %v3509
        %v3511 = vpop.f32.mrf.mxu0
        %v3512 = vadd.f32 %v3343, %v3511
        %3513 = vmatmul.bf16.gmra.mxu0 %v2792
        %v3514 = vpop.f32.mrf.mxu0
        %v3515 = vadd.f32 %v3346, %v3514
        %v3516 = vpop.f32.mrf.mxu0
        %v3517 = vadd.f32 %v3348, %v3516
        %3518 = vmatmul.bf16.gmra.mxu0 %v2795
        %v3519 = vpop.f32.mrf.mxu0
        %v3520 = vadd.f32 %v3351, %v3519
        %v3521 = vpop.f32.mrf.mxu0
        %v3522 = vadd.f32 %v3353, %v3521
        %3523 = vmatmul.bf16.gmra.mxu0 %v2798
        %v3524 = vpop.f32.mrf.mxu0
        %v3525 = vadd.f32 %v3356, %v3524
        %v3526 = vpop.f32.mrf.mxu0
        %v3527 = vadd.f32 %v3358, %v3526
        %3528 = vmatmul.bf16.gmra.mxu0 %v2801
        %v3529 = vpop.f32.mrf.mxu0
        %v3530 = vadd.f32 %v3361, %v3529
        %v3531 = vpop.f32.mrf.mxu0
        %v3532 = vadd.f32 %v3363, %v3531
        %3533 = vdwg.mxu0
        %v3582 = vunpack.c.l.b16 %v1762
        %v3583 = vunpack.c.l.b16 %v1763
        %v3584 = vunpack.c.l.b16 %v1764
        %v3585 = vunpack.c.l.b16 %v1765
        %v3586 = vunpack.c.l.b16 %v1766
        %v3587 = vunpack.c.l.b16 %v1767
        %v3588 = vunpack.c.l.b16 %v1768
        %v3589 = vunpack.c.l.b16 %v1769
        %v3590 = vunpack.c.l.b16 %v1770
        %v3591 = vunpack.c.l.b16 %v1771
        %v3592 = vunpack.c.l.b16 %v1772
        %v3593 = vunpack.c.l.b16 %v1773
        %v3594 = vunpack.c.l.b16 %v1774
        %v3595 = vunpack.c.l.b16 %v1775
        %v3596 = vunpack.c.l.b16 %v1776
        %v3597 = vunpack.c.l.b16 %v1777
        %v3598 = vunpack.c.l.b16 %v1778
        %v3599 = vunpack.c.l.b16 %v1779
        %v3600 = vunpack.c.l.b16 %v1780
        %v3601 = vunpack.c.l.b16 %v1781
        %v3602 = vunpack.c.l.b16 %v1782
        %v3603 = vunpack.c.l.b16 %v1783
        %v3604 = vunpack.c.l.b16 %v1784
        %v3605 = vunpack.c.l.b16 %v1785
        %v3606 = vunpack.c.l.b16 %v1786
        %v3607 = vunpack.c.l.b16 %v1787
        %v3608 = vunpack.c.l.b16 %v1788
        %v3609 = vunpack.c.l.b16 %v1789
        %v3610 = vunpack.c.l.b16 %v1790
        %v3611 = vunpack.c.l.b16 %v1791
        %v3612 = vunpack.c.l.b16 %v1792
        %v3613 = vunpack.c.l.b16 %v1793
        %v3614 = vunpack.c.l.b16 %v1794
        %v3615 = vunpack.c.l.b16 %v1795
        %v3616 = vunpack.c.l.b16 %v1796
        %v3617 = vunpack.c.l.b16 %v1797
        %v3618 = vunpack.c.l.b16 %v1798
        %v3619 = vunpack.c.l.b16 %v1799
        %v3620 = vunpack.c.l.b16 %v1800
        %v3621 = vunpack.c.l.b16 %v1801
        %v3622 = vunpack.c.l.b16 %v1802
        %v3623 = vunpack.c.l.b16 %v1803
        %v3624 = vunpack.c.l.b16 %v1804
        %v3625 = vunpack.c.l.b16 %v1805
        %v3626 = vunpack.c.l.b16 %v1806
        %v3627 = vunpack.c.l.b16 %v1807
        %v3628 = vunpack.c.l.b16 %v1808
        %v3629 = vunpack.c.l.b16 %v1809
        %v3630 = vpack.c.b16 %v3583, %v3582
        %v3631 = vpack.c.b16 %v3585, %v3584
        %v3632 = vpack.c.b16 %v3587, %v3586
        %v3633 = vpack.c.b16 %v3589, %v3588
        %v3634 = vpack.c.b16 %v3591, %v3590
        %v3635 = vpack.c.b16 %v3593, %v3592
        %v3636 = vpack.c.b16 %v3595, %v3594
        %v3637 = vpack.c.b16 %v3597, %v3596
        %v3638 = vpack.c.b16 %v3599, %v3598
        %v3639 = vpack.c.b16 %v3601, %v3600
        %v3640 = vpack.c.b16 %v3603, %v3602
        %v3641 = vpack.c.b16 %v3605, %v3604
        %v3642 = vpack.c.b16 %v3607, %v3606
        %v3643 = vpack.c.b16 %v3609, %v3608
        %v3644 = vpack.c.b16 %v3611, %v3610
        %v3645 = vpack.c.b16 %v3613, %v3612
        %v3646 = vpack.c.b16 %v3615, %v3614
        %v3647 = vpack.c.b16 %v3617, %v3616
        %v3648 = vpack.c.b16 %v3619, %v3618
        %v3649 = vpack.c.b16 %v3621, %v3620
        %v3650 = vpack.c.b16 %v3623, %v3622
        %v3651 = vpack.c.b16 %v3625, %v3624
        %v3652 = vpack.c.b16 %v3627, %v3626
        %v3653 = vpack.c.b16 %v3629, %v3628
        %3678 = vmatpush.bf16.msra.mxu0 %v3637
        %3679 = vmatpush.bf16.msra.mxu0 %v3636
        %3680 = vmatpush.bf16.msra.mxu0 %v3635
        %3681 = vmatpush.bf16.msra.mxu0 %v3634
        %3682 = vmatpush.bf16.msra.mxu0 %v3633
        %3683 = vmatpush.bf16.msra.mxu0 %v3632
        %3684 = vmatpush.bf16.msra.mxu0 %v3631
        %3685 = vmatpush.bf16.msra.mxu0 %v3630
        %3686 = vmatmul.bf16.gmra.mxu0 %v1056
        %v3687 = vpop.f32.mrf.mxu0
        %v3688 = vadd.f32 %v3375, %v3687
        %v3689 = vpop.f32.mrf.mxu0
        %v3690 = vadd.f32 %v3377, %v3689
        %3691 = vmatmul.bf16.gmra.mxu0 %v1057
        %v3692 = vpop.f32.mrf.mxu0
        %v3693 = vadd.f32 %v3380, %v3692
        %v3694 = vpop.f32.mrf.mxu0
        %v3695 = vadd.f32 %v3382, %v3694
        %3696 = vmatmul.bf16.gmra.mxu0 %v1058
        %v3697 = vpop.f32.mrf.mxu0
        %v3698 = vadd.f32 %v3385, %v3697
        %v3699 = vpop.f32.mrf.mxu0
        %v3700 = vadd.f32 %v3387, %v3699
        %3701 = vmatmul.bf16.gmra.mxu0 %v1059
        %v3702 = vpop.f32.mrf.mxu0
        %v3703 = vadd.f32 %v3390, %v3702
        %v3704 = vpop.f32.mrf.mxu0
        %v3705 = vadd.f32 %v3392, %v3704
        %3706 = vmatmul.bf16.gmra.mxu0 %v1060
        %v3707 = vpop.f32.mrf.mxu0
        %v3708 = vadd.f32 %v3395, %v3707
        %v3709 = vpop.f32.mrf.mxu0
        %v3710 = vadd.f32 %v3397, %v3709
        %3711 = vmatmul.bf16.gmra.mxu0 %v1061
        %v3712 = vpop.f32.mrf.mxu0
        %v3713 = vadd.f32 %v3400, %v3712
        %v3714 = vpop.f32.mrf.mxu0
        %v3715 = vadd.f32 %v3402, %v3714
        %3716 = vmatmul.bf16.gmra.mxu0 %v1062
        %v3717 = vpop.f32.mrf.mxu0
        %v3718 = vadd.f32 %v3405, %v3717
        %v3719 = vpop.f32.mrf.mxu0
        %v3720 = vadd.f32 %v3407, %v3719
        %3721 = vmatmul.bf16.gmra.mxu0 %v1063
        %v3722 = vpop.f32.mrf.mxu0
        %v3723 = vadd.f32 %v3410, %v3722
        %v3724 = vpop.f32.mrf.mxu0
        %v3725 = vadd.f32 %v3412, %v3724
        %3726 = vmatmul.bf16.gmra.mxu0 %v1064
        %v3727 = vpop.f32.mrf.mxu0
        %v3728 = vadd.f32 %v3415, %v3727
        %v3729 = vpop.f32.mrf.mxu0
        %v3730 = vadd.f32 %v3417, %v3729
        %3731 = vmatmul.bf16.gmra.mxu0 %v1065
        %v3732 = vpop.f32.mrf.mxu0
        %v3733 = vadd.f32 %v3420, %v3732
        %v3734 = vpop.f32.mrf.mxu0
        %v3735 = vadd.f32 %v3422, %v3734
        %3736 = vmatmul.bf16.gmra.mxu0 %v1066
        %v3737 = vpop.f32.mrf.mxu0
        %v3738 = vadd.f32 %v3425, %v3737
        %v3739 = vpop.f32.mrf.mxu0
        %v3740 = vadd.f32 %v3427, %v3739
        %3741 = vmatmul.bf16.gmra.mxu0 %v1067
        %v3742 = vpop.f32.mrf.mxu0
        %v3743 = vadd.f32 %v3430, %v3742
        %v3744 = vpop.f32.mrf.mxu0
        %v3745 = vadd.f32 %v3432, %v3744
        %3746 = vmatmul.bf16.gmra.mxu0 %v1068
        %v3747 = vpop.f32.mrf.mxu0
        %v3748 = vadd.f32 %v3435, %v3747
        %v3749 = vpop.f32.mrf.mxu0
        %v3750 = vadd.f32 %v3437, %v3749
        %3751 = vmatmul.bf16.gmra.mxu0 %v1069
        %v3752 = vpop.f32.mrf.mxu0
        %v3753 = vadd.f32 %v3440, %v3752
        %v3754 = vpop.f32.mrf.mxu0
        %v3755 = vadd.f32 %v3442, %v3754
        %3756 = vmatmul.bf16.gmra.mxu0 %v1070
        %v3757 = vpop.f32.mrf.mxu0
        %v3758 = vadd.f32 %v3445, %v3757
        %v3759 = vpop.f32.mrf.mxu0
        %v3760 = vadd.f32 %v3447, %v3759
        %3761 = vmatmul.bf16.gmra.mxu0 %v1071
        %v3762 = vpop.f32.mrf.mxu0
        %v3763 = vadd.f32 %v3450, %v3762
        %v3764 = vpop.f32.mrf.mxu0
        %v3765 = vadd.f32 %v3452, %v3764
        %3766 = vmatmul.bf16.gmra.mxu0 %v1072
        %v3767 = vpop.f32.mrf.mxu0
        %v3768 = vadd.f32 %v3455, %v3767
        %v3769 = vpop.f32.mrf.mxu0
        %v3770 = vadd.f32 %v3457, %v3769
        %3771 = vmatmul.bf16.gmra.mxu0 %v1073
        %v3772 = vpop.f32.mrf.mxu0
        %v3773 = vadd.f32 %v3460, %v3772
        %v3774 = vpop.f32.mrf.mxu0
        %v3775 = vadd.f32 %v3462, %v3774
        %3776 = vmatmul.bf16.gmra.mxu0 %v1074
        %v3777 = vpop.f32.mrf.mxu0
        %v3778 = vadd.f32 %v3465, %v3777
        %v3779 = vpop.f32.mrf.mxu0
        %v3780 = vadd.f32 %v3467, %v3779
        %3781 = vmatmul.bf16.gmra.mxu0 %v1075
        %v3782 = vpop.f32.mrf.mxu0
        %v3783 = vadd.f32 %v3470, %v3782
        %v3784 = vpop.f32.mrf.mxu0
        %v3785 = vadd.f32 %v3472, %v3784
        %3786 = vmatmul.bf16.gmra.mxu0 %v1076
        %v3787 = vpop.f32.mrf.mxu0
        %v3788 = vadd.f32 %v3475, %v3787
        %v3789 = vpop.f32.mrf.mxu0
        %v3790 = vadd.f32 %v3477, %v3789
        %3791 = vmatmul.bf16.gmra.mxu0 %v1077
        %v3792 = vpop.f32.mrf.mxu0
        %v3793 = vadd.f32 %v3480, %v3792
        %v3794 = vpop.f32.mrf.mxu0
        %v3795 = vadd.f32 %v3482, %v3794
        %3796 = vmatmul.bf16.gmra.mxu0 %v1078
        %v3797 = vpop.f32.mrf.mxu0
        %v3798 = vadd.f32 %v3485, %v3797
        %v3799 = vpop.f32.mrf.mxu0
        %v3800 = vadd.f32 %v3487, %v3799
        %3801 = vmatmul.bf16.gmra.mxu0 %v1079
        %v3802 = vpop.f32.mrf.mxu0
        %v3803 = vadd.f32 %v3490, %v3802
        %v3804 = vpop.f32.mrf.mxu0
        %v3805 = vadd.f32 %v3492, %v3804
        %3806 = vmatmul.bf16.gmra.mxu0 %v1080
        %v3807 = vpop.f32.mrf.mxu0
        %v3808 = vadd.f32 %v3495, %v3807
        %v3809 = vpop.f32.mrf.mxu0
        %v3810 = vadd.f32 %v3497, %v3809
        %3811 = vmatmul.bf16.gmra.mxu0 %v1081
        %v3812 = vpop.f32.mrf.mxu0
        %v3813 = vadd.f32 %v3500, %v3812
        %v3814 = vpop.f32.mrf.mxu0
        %v3815 = vadd.f32 %v3502, %v3814
        %3816 = vmatmul.bf16.gmra.mxu0 %v1082
        %v3817 = vpop.f32.mrf.mxu0
        %v3818 = vadd.f32 %v3505, %v3817
        %v3819 = vpop.f32.mrf.mxu0
        %v3820 = vadd.f32 %v3507, %v3819
        %3821 = vmatmul.bf16.gmra.mxu0 %v1083
        %v3822 = vpop.f32.mrf.mxu0
        %v3823 = vadd.f32 %v3510, %v3822
        %v3824 = vpop.f32.mrf.mxu0
        %v3825 = vadd.f32 %v3512, %v3824
        %3826 = vmatmul.bf16.gmra.mxu0 %v1084
        %v3827 = vpop.f32.mrf.mxu0
        %v3828 = vadd.f32 %v3515, %v3827
        %v3829 = vpop.f32.mrf.mxu0
        %v3830 = vadd.f32 %v3517, %v3829
        %3831 = vmatmul.bf16.gmra.mxu0 %v1085
        %v3832 = vpop.f32.mrf.mxu0
        %v3833 = vadd.f32 %v3520, %v3832
        %v3834 = vpop.f32.mrf.mxu0
        %v3835 = vadd.f32 %v3522, %v3834
        %3836 = vmatmul.bf16.gmra.mxu0 %v1086
        %v3837 = vpop.f32.mrf.mxu0
        %v3838 = vadd.f32 %v3525, %v3837
        %v3839 = vpop.f32.mrf.mxu0
        %v3840 = vadd.f32 %v3527, %v3839
        %3841 = vmatmul.bf16.gmra.mxu0 %v1087
        %v3842 = vpop.f32.mrf.mxu0
        %v3843 = vadd.f32 %v3530, %v3842
        %v3844 = vpop.f32.mrf.mxu0
        %v3845 = vadd.f32 %v3532, %v3844
        %3846 = vdwg.mxu0
        %3847 = vmatpush.bf16.msra.mxu0 %v3645
        %3848 = vmatpush.bf16.msra.mxu0 %v3644
        %3849 = vmatpush.bf16.msra.mxu0 %v3643
        %3850 = vmatpush.bf16.msra.mxu0 %v3642
        %3851 = vmatpush.bf16.msra.mxu0 %v3641
        %3852 = vmatpush.bf16.msra.mxu0 %v3640
        %3853 = vmatpush.bf16.msra.mxu0 %v3639
        %3854 = vmatpush.bf16.msra.mxu0 %v3638
        %3855 = vmatmul.bf16.gmra.mxu0 %v1228
        %v3856 = vpop.f32.mrf.mxu0
        %v3857 = vadd.f32 %v3688, %v3856
        %v3858 = vpop.f32.mrf.mxu0
        %v3859 = vadd.f32 %v3690, %v3858
        %3860 = vmatmul.bf16.gmra.mxu0 %v1240
        %v3861 = vpop.f32.mrf.mxu0
        %v3862 = vadd.f32 %v3693, %v3861
        %v3863 = vpop.f32.mrf.mxu0
        %v3864 = vadd.f32 %v3695, %v3863
        %3865 = vmatmul.bf16.gmra.mxu0 %v1252
        %v3866 = vpop.f32.mrf.mxu0
        %v3867 = vadd.f32 %v3698, %v3866
        %v3868 = vpop.f32.mrf.mxu0
        %v3869 = vadd.f32 %v3700, %v3868
        %3870 = vmatmul.bf16.gmra.mxu0 %v1264
        %v3871 = vpop.f32.mrf.mxu0
        %v3872 = vadd.f32 %v3703, %v3871
        %v3873 = vpop.f32.mrf.mxu0
        %v3874 = vadd.f32 %v3705, %v3873
        %3875 = vmatmul.bf16.gmra.mxu0 %v1276
        %v3876 = vpop.f32.mrf.mxu0
        %v3877 = vadd.f32 %v3708, %v3876
        %v3878 = vpop.f32.mrf.mxu0
        %v3879 = vadd.f32 %v3710, %v3878
        %3880 = vmatmul.bf16.gmra.mxu0 %v1288
        %v3881 = vpop.f32.mrf.mxu0
        %v3882 = vadd.f32 %v3713, %v3881
        %v3883 = vpop.f32.mrf.mxu0
        %v3884 = vadd.f32 %v3715, %v3883
        %3885 = vmatmul.bf16.gmra.mxu0 %v1300
        %v3886 = vpop.f32.mrf.mxu0
        %v3887 = vadd.f32 %v3718, %v3886
        %v3888 = vpop.f32.mrf.mxu0
        %v3889 = vadd.f32 %v3720, %v3888
        %3890 = vmatmul.bf16.gmra.mxu0 %v1312
        %v3891 = vpop.f32.mrf.mxu0
        %v3892 = vadd.f32 %v3723, %v3891
        %v3893 = vpop.f32.mrf.mxu0
        %v3894 = vadd.f32 %v3725, %v3893
        %3895 = vmatmul.bf16.gmra.mxu0 %v1324
        %v3896 = vpop.f32.mrf.mxu0
        %v3897 = vadd.f32 %v3728, %v3896
        %v3898 = vpop.f32.mrf.mxu0
        %v3899 = vadd.f32 %v3730, %v3898
        %3900 = vmatmul.bf16.gmra.mxu0 %v1336
        %v3901 = vpop.f32.mrf.mxu0
        %v3902 = vadd.f32 %v3733, %v3901
        %v3903 = vpop.f32.mrf.mxu0
        %v3904 = vadd.f32 %v3735, %v3903
        %3905 = vmatmul.bf16.gmra.mxu0 %v1348
        %v3906 = vpop.f32.mrf.mxu0
        %v3907 = vadd.f32 %v3738, %v3906
        %v3908 = vpop.f32.mrf.mxu0
        %v3909 = vadd.f32 %v3740, %v3908
        %3910 = vmatmul.bf16.gmra.mxu0 %v1360
        %v3911 = vpop.f32.mrf.mxu0
        %v3912 = vadd.f32 %v3743, %v3911
        %v3913 = vpop.f32.mrf.mxu0
        %v3914 = vadd.f32 %v3745, %v3913
        %3915 = vmatmul.bf16.gmra.mxu0 %v1372
        %v3916 = vpop.f32.mrf.mxu0
        %v3917 = vadd.f32 %v3748, %v3916
        %v3918 = vpop.f32.mrf.mxu0
        %v3919 = vadd.f32 %v3750, %v3918
        %3920 = vmatmul.bf16.gmra.mxu0 %v1384
        %v3921 = vpop.f32.mrf.mxu0
        %v3922 = vadd.f32 %v3753, %v3921
        %v3923 = vpop.f32.mrf.mxu0
        %v3924 = vadd.f32 %v3755, %v3923
        %3925 = vmatmul.bf16.gmra.mxu0 %v1396
        %v3926 = vpop.f32.mrf.mxu0
        %v3927 = vadd.f32 %v3758, %v3926
        %v3928 = vpop.f32.mrf.mxu0
        %v3929 = vadd.f32 %v3760, %v3928
        %3930 = vmatmul.bf16.gmra.mxu0 %v1408
        %v3931 = vpop.f32.mrf.mxu0
        %v3932 = vadd.f32 %v3763, %v3931
        %v3933 = vpop.f32.mrf.mxu0
        %v3934 = vadd.f32 %v3765, %v3933
        %3935 = vmatmul.bf16.gmra.mxu0 %v1420
        %v3936 = vpop.f32.mrf.mxu0
        %v3937 = vadd.f32 %v3768, %v3936
        %v3938 = vpop.f32.mrf.mxu0
        %v3939 = vadd.f32 %v3770, %v3938
        %3940 = vmatmul.bf16.gmra.mxu0 %v1432
        %v3941 = vpop.f32.mrf.mxu0
        %v3942 = vadd.f32 %v3773, %v3941
        %v3943 = vpop.f32.mrf.mxu0
        %v3944 = vadd.f32 %v3775, %v3943
        %3945 = vmatmul.bf16.gmra.mxu0 %v1444
        %v3946 = vpop.f32.mrf.mxu0
        %v3947 = vadd.f32 %v3778, %v3946
        %v3948 = vpop.f32.mrf.mxu0
        %v3949 = vadd.f32 %v3780, %v3948
        %3950 = vmatmul.bf16.gmra.mxu0 %v1456
        %v3951 = vpop.f32.mrf.mxu0
        %v3952 = vadd.f32 %v3783, %v3951
        %v3953 = vpop.f32.mrf.mxu0
        %v3954 = vadd.f32 %v3785, %v3953
        %3955 = vmatmul.bf16.gmra.mxu0 %v1468
        %v3956 = vpop.f32.mrf.mxu0
        %v3957 = vadd.f32 %v3788, %v3956
        %v3958 = vpop.f32.mrf.mxu0
        %v3959 = vadd.f32 %v3790, %v3958
        %3960 = vmatmul.bf16.gmra.mxu0 %v1480
        %v3961 = vpop.f32.mrf.mxu0
        %v3962 = vadd.f32 %v3793, %v3961
        %v3963 = vpop.f32.mrf.mxu0
        %v3964 = vadd.f32 %v3795, %v3963
        %3965 = vmatmul.bf16.gmra.mxu0 %v1492
        %v3966 = vpop.f32.mrf.mxu0
        %v3967 = vadd.f32 %v3798, %v3966
        %v3968 = vpop.f32.mrf.mxu0
        %v3969 = vadd.f32 %v3800, %v3968
        %3970 = vmatmul.bf16.gmra.mxu0 %v1504
        %v3971 = vpop.f32.mrf.mxu0
        %v3972 = vadd.f32 %v3803, %v3971
        %v3973 = vpop.f32.mrf.mxu0
        %v3974 = vadd.f32 %v3805, %v3973
        %3975 = vmatmul.bf16.gmra.mxu0 %v1516
        %v3976 = vpop.f32.mrf.mxu0
        %v3977 = vadd.f32 %v3808, %v3976
        %v3978 = vpop.f32.mrf.mxu0
        %v3979 = vadd.f32 %v3810, %v3978
        %3980 = vmatmul.bf16.gmra.mxu0 %v1528
        %v3981 = vpop.f32.mrf.mxu0
        %v3982 = vadd.f32 %v3813, %v3981
        %v3983 = vpop.f32.mrf.mxu0
        %v3984 = vadd.f32 %v3815, %v3983
        %3985 = vmatmul.bf16.gmra.mxu0 %v1540
        %v3986 = vpop.f32.mrf.mxu0
        %v3987 = vadd.f32 %v3818, %v3986
        %v3988 = vpop.f32.mrf.mxu0
        %v3989 = vadd.f32 %v3820, %v3988
        %3990 = vmatmul.bf16.gmra.mxu0 %v1552
        %v3991 = vpop.f32.mrf.mxu0
        %v3992 = vadd.f32 %v3823, %v3991
        %v3993 = vpop.f32.mrf.mxu0
        %v3994 = vadd.f32 %v3825, %v3993
        %3995 = vmatmul.bf16.gmra.mxu0 %v1564
        %v3996 = vpop.f32.mrf.mxu0
        %v3997 = vadd.f32 %v3828, %v3996
        %v3998 = vpop.f32.mrf.mxu0
        %v3999 = vadd.f32 %v3830, %v3998
        %4000 = vmatmul.bf16.gmra.mxu0 %v1576
        %v4001 = vpop.f32.mrf.mxu0
        %v4002 = vadd.f32 %v3833, %v4001
        %v4003 = vpop.f32.mrf.mxu0
        %v4004 = vadd.f32 %v3835, %v4003
        %4005 = vmatmul.bf16.gmra.mxu0 %v1588
        %v4006 = vpop.f32.mrf.mxu0
        %v4007 = vadd.f32 %v3838, %v4006
        %v4008 = vpop.f32.mrf.mxu0
        %v4009 = vadd.f32 %v3840, %v4008
        %4010 = vmatmul.bf16.gmra.mxu0 %v1600
        %v4011 = vpop.f32.mrf.mxu0
        %v4012 = vadd.f32 %v3843, %v4011
        %v4013 = vpop.f32.mrf.mxu0
        %v4014 = vadd.f32 %v3845, %v4013
        %4015 = vdwg.mxu0
        %4016 = vmatpush.bf16.msra.mxu0 %v3653
        %4017 = vmatpush.bf16.msra.mxu0 %v3652
        %4018 = vmatpush.bf16.msra.mxu0 %v3651
        %4019 = vmatpush.bf16.msra.mxu0 %v3650
        %4020 = vmatpush.bf16.msra.mxu0 %v3649
        %4021 = vmatpush.bf16.msra.mxu0 %v3648
        %4022 = vmatpush.bf16.msra.mxu0 %v3647
        %4023 = vmatpush.bf16.msra.mxu0 %v3646
        %4024 = vmatmul.bf16.gmra.mxu0 %v1636
        %v4025 = vpop.f32.mrf.mxu0
        %v4026 = vadd.f32 %v3857, %v4025
        %v4027 = vpop.f32.mrf.mxu0
        %v4028 = vadd.f32 %v3859, %v4027
        %4029 = vmatmul.bf16.gmra.mxu0 %v1639
        %v4030 = vpop.f32.mrf.mxu0
        %v4031 = vadd.f32 %v3862, %v4030
        %v4032 = vpop.f32.mrf.mxu0
        %v4033 = vadd.f32 %v3864, %v4032
        %4034 = vmatmul.bf16.gmra.mxu0 %v1642
        %v4035 = vpop.f32.mrf.mxu0
        %v4036 = vadd.f32 %v3867, %v4035
        %v4037 = vpop.f32.mrf.mxu0
        %v4038 = vadd.f32 %v3869, %v4037
        %4039 = vmatmul.bf16.gmra.mxu0 %v1645
        %v4040 = vpop.f32.mrf.mxu0
        %v4041 = vadd.f32 %v3872, %v4040
        %v4042 = vpop.f32.mrf.mxu0
        %v4043 = vadd.f32 %v3874, %v4042
        %4044 = vmatmul.bf16.gmra.mxu0 %v1648
        %v4045 = vpop.f32.mrf.mxu0
        %v4046 = vadd.f32 %v3877, %v4045
        %v4047 = vpop.f32.mrf.mxu0
        %v4048 = vadd.f32 %v3879, %v4047
        %4049 = vmatmul.bf16.gmra.mxu0 %v1651
        %v4050 = vpop.f32.mrf.mxu0
        %v4051 = vadd.f32 %v3882, %v4050
        %v4052 = vpop.f32.mrf.mxu0
        %v4053 = vadd.f32 %v3884, %v4052
        %4054 = vmatmul.bf16.gmra.mxu0 %v1654
        %v4055 = vpop.f32.mrf.mxu0
        %v4056 = vadd.f32 %v3887, %v4055
        %v4057 = vpop.f32.mrf.mxu0
        %v4058 = vadd.f32 %v3889, %v4057
        %4059 = vmatmul.bf16.gmra.mxu0 %v1657
        %v4060 = vpop.f32.mrf.mxu0
        %v4061 = vadd.f32 %v3892, %v4060
        %v4062 = vpop.f32.mrf.mxu0
        %v4063 = vadd.f32 %v3894, %v4062
        %4064 = vmatmul.bf16.gmra.mxu0 %v1660
        %v4065 = vpop.f32.mrf.mxu0
        %v4066 = vadd.f32 %v3897, %v4065
        %v4067 = vpop.f32.mrf.mxu0
        %v4068 = vadd.f32 %v3899, %v4067
        %4069 = vmatmul.bf16.gmra.mxu0 %v1663
        %v4070 = vpop.f32.mrf.mxu0
        %v4071 = vadd.f32 %v3902, %v4070
        %v4072 = vpop.f32.mrf.mxu0
        %v4073 = vadd.f32 %v3904, %v4072
        %4074 = vmatmul.bf16.gmra.mxu0 %v1666
        %v4075 = vpop.f32.mrf.mxu0
        %v4076 = vadd.f32 %v3907, %v4075
        %v4077 = vpop.f32.mrf.mxu0
        %v4078 = vadd.f32 %v3909, %v4077
        %4079 = vmatmul.bf16.gmra.mxu0 %v1669
        %v4080 = vpop.f32.mrf.mxu0
        %v4081 = vadd.f32 %v3912, %v4080
        %v4082 = vpop.f32.mrf.mxu0
        %v4083 = vadd.f32 %v3914, %v4082
        %4084 = vmatmul.bf16.gmra.mxu0 %v1672
        %v4085 = vpop.f32.mrf.mxu0
        %v4086 = vadd.f32 %v3917, %v4085
        %v4087 = vpop.f32.mrf.mxu0
        %v4088 = vadd.f32 %v3919, %v4087
        %4089 = vmatmul.bf16.gmra.mxu0 %v1675
        %v4090 = vpop.f32.mrf.mxu0
        %v4091 = vadd.f32 %v3922, %v4090
        %v4092 = vpop.f32.mrf.mxu0
        %v4093 = vadd.f32 %v3924, %v4092
        %4094 = vmatmul.bf16.gmra.mxu0 %v1678
        %v4095 = vpop.f32.mrf.mxu0
        %v4096 = vadd.f32 %v3927, %v4095
        %v4097 = vpop.f32.mrf.mxu0
        %v4098 = vadd.f32 %v3929, %v4097
        %4099 = vmatmul.bf16.gmra.mxu0 %v1681
        %v4100 = vpop.f32.mrf.mxu0
        %v4101 = vadd.f32 %v3932, %v4100
        %v4102 = vpop.f32.mrf.mxu0
        %v4103 = vadd.f32 %v3934, %v4102
        %4104 = vmatmul.bf16.gmra.mxu0 %v1684
        %v4105 = vpop.f32.mrf.mxu0
        %v4106 = vadd.f32 %v3937, %v4105
        %v4107 = vpop.f32.mrf.mxu0
        %v4108 = vadd.f32 %v3939, %v4107
        %4109 = vmatmul.bf16.gmra.mxu0 %v1687
        %v4110 = vpop.f32.mrf.mxu0
        %v4111 = vadd.f32 %v3942, %v4110
        %v4112 = vpop.f32.mrf.mxu0
        %v4113 = vadd.f32 %v3944, %v4112
        %4114 = vmatmul.bf16.gmra.mxu0 %v1690
        %v4115 = vpop.f32.mrf.mxu0
        %v4116 = vadd.f32 %v3947, %v4115
        %v4117 = vpop.f32.mrf.mxu0
        %v4118 = vadd.f32 %v3949, %v4117
        %4119 = vmatmul.bf16.gmra.mxu0 %v1693
        %v4120 = vpop.f32.mrf.mxu0
        %v4121 = vadd.f32 %v3952, %v4120
        %v4122 = vpop.f32.mrf.mxu0
        %v4123 = vadd.f32 %v3954, %v4122
        %4124 = vmatmul.bf16.gmra.mxu0 %v1696
        %v4125 = vpop.f32.mrf.mxu0
        %v4126 = vadd.f32 %v3957, %v4125
        %v4127 = vpop.f32.mrf.mxu0
        %v4128 = vadd.f32 %v3959, %v4127
        %4129 = vmatmul.bf16.gmra.mxu0 %v1699
        %v4130 = vpop.f32.mrf.mxu0
        %v4131 = vadd.f32 %v3962, %v4130
        %v4132 = vpop.f32.mrf.mxu0
        %v4133 = vadd.f32 %v3964, %v4132
        %4134 = vmatmul.bf16.gmra.mxu0 %v1702
        %v4135 = vpop.f32.mrf.mxu0
        %v4136 = vadd.f32 %v3967, %v4135
        %v4137 = vpop.f32.mrf.mxu0
        %v4138 = vadd.f32 %v3969, %v4137
        %4139 = vmatmul.bf16.gmra.mxu0 %v1705
        %v4140 = vpop.f32.mrf.mxu0
        %v4141 = vadd.f32 %v3972, %v4140
        %v4142 = vpop.f32.mrf.mxu0
        %v4143 = vadd.f32 %v3974, %v4142
        %4144 = vmatmul.bf16.gmra.mxu0 %v1708
        %v4145 = vpop.f32.mrf.mxu0
        %v4146 = vadd.f32 %v3977, %v4145
        %v4147 = vpop.f32.mrf.mxu0
        %v4148 = vadd.f32 %v3979, %v4147
        %4149 = vmatmul.bf16.gmra.mxu0 %v1711
        %v4150 = vpop.f32.mrf.mxu0
        %v4151 = vadd.f32 %v3982, %v4150
        %v4152 = vpop.f32.mrf.mxu0
        %v4153 = vadd.f32 %v3984, %v4152
        %4154 = vmatmul.bf16.gmra.mxu0 %v1714
        %v4155 = vpop.f32.mrf.mxu0
        %v4156 = vadd.f32 %v3987, %v4155
        %v4157 = vpop.f32.mrf.mxu0
        %v4158 = vadd.f32 %v3989, %v4157
        %4159 = vmatmul.bf16.gmra.mxu0 %v1717
        %v4160 = vpop.f32.mrf.mxu0
        %v4161 = vadd.f32 %v3992, %v4160
        %v4162 = vpop.f32.mrf.mxu0
        %v4163 = vadd.f32 %v3994, %v4162
        %4164 = vmatmul.bf16.gmra.mxu0 %v1720
        %v4165 = vpop.f32.mrf.mxu0
        %v4166 = vadd.f32 %v3997, %v4165
        %v4167 = vpop.f32.mrf.mxu0
        %v4168 = vadd.f32 %v3999, %v4167
        %4169 = vmatmul.bf16.gmra.mxu0 %v1723
        %v4170 = vpop.f32.mrf.mxu0
        %v4171 = vadd.f32 %v4002, %v4170
        %v4172 = vpop.f32.mrf.mxu0
        %v4173 = vadd.f32 %v4004, %v4172
        %4174 = vmatmul.bf16.gmra.mxu0 %v1726
        %v4175 = vpop.f32.mrf.mxu0
        %v4176 = vadd.f32 %v4007, %v4175
        %v4177 = vpop.f32.mrf.mxu0
        %v4178 = vadd.f32 %v4009, %v4177
        %4179 = vmatmul.bf16.gmra.mxu0 %v1729
        %v4180 = vpop.f32.mrf.mxu0
        %v4181 = vadd.f32 %v4012, %v4180
        %v4182 = vpop.f32.mrf.mxu0
        %v4183 = vadd.f32 %v4014, %v4182
        %4184 = vdwg.mxu0
        %s4185 = scalar_lea.vmem [#allocation2], 48
        %v4186 = vld [vmem:[%s4185] sm:$0xff]
        %v4187 = vld [vmem:[%s4185 + $0x8] sm:$0xff]
        %v4188 = vld [vmem:[%s4185 + $0x10] sm:$0x3]
        %v4189 = vld [vmem:[%s4185 + $0x18] sm:$0xff]
        %v4190 = vld [vmem:[%s4185 + $0x20] sm:$0xff]
        %v4191 = vld [vmem:[%s4185 + $0x28] sm:$0x3]
        %v4192 = vld [vmem:[%s4185 + $0x30] sm:$0xff]
        %v4193 = vld [vmem:[%s4185 + $0x38] sm:$0xff]
        %v4194 = vld [vmem:[%s4185 + $0x40] sm:$0x3]
        %v4195 = vld [vmem:[%s4185 + $0x48] sm:$0xff]
        %v4196 = vld [vmem:[%s4185 + $0x50] sm:$0xff]
        %v4197 = vld [vmem:[%s4185 + $0x58] sm:$0x3]
        %v4198 = vld [vmem:[%s4185 + $0x60] sm:$0xff]
        %v4199 = vld [vmem:[%s4185 + $0x68] sm:$0xff]
        %v4200 = vld [vmem:[%s4185 + $0x70] sm:$0x3]
        %v4201 = vld [vmem:[%s4185 + $0x78] sm:$0xff]
        %v4202 = vld [vmem:[%s4185 + $0x80] sm:$0xff]
        %v4203 = vld [vmem:[%s4185 + $0x88] sm:$0x3]
        %v4204 = vld [vmem:[%s4185 + $0x90] sm:$0xff]
        %v4205 = vld [vmem:[%s4185 + $0x98] sm:$0xff]
        %v4206 = vld [vmem:[%s4185 + $0xa0] sm:$0x3]
        %v4207 = vld [vmem:[%s4185 + $0xa8] sm:$0xff]
        %v4208 = vld [vmem:[%s4185 + $0xb0] sm:$0xff]
        %v4209 = vld [vmem:[%s4185 + $0xb8] sm:$0x3]
        %v4210 = vld [vmem:[%s4185 + $0xc0] sm:$0xff]
        %v4211 = vld [vmem:[%s4185 + $0xc8] sm:$0xff]
        %v4212 = vld [vmem:[%s4185 + $0xd0] sm:$0x3]
        %v4213 = vld [vmem:[%s4185 + $0xd8] sm:$0xff]
        %v4214 = vld [vmem:[%s4185 + $0xe0] sm:$0xff]
        %v4215 = vld [vmem:[%s4185 + $0xe8] sm:$0x3]
        %v4216 = vld [vmem:[%s4185 + $0xf0] sm:$0xff]
        %v4217 = vld [vmem:[%s4185 + $0xf8] sm:$0xff]
        %v4218 = vld [vmem:[%s4185 + $0x100] sm:$0x3]
        %v4219 = vld [vmem:[%s4185 + $0x108] sm:$0xff]
        %v4220 = vld [vmem:[%s4185 + $0x110] sm:$0xff]
        %v4221 = vld [vmem:[%s4185 + $0x118] sm:$0x3]
        %v4222 = vld [vmem:[%s4185 + $0x120] sm:$0xff]
        %v4223 = vld [vmem:[%s4185 + $0x128] sm:$0xff]
        %v4224 = vld [vmem:[%s4185 + $0x130] sm:$0x3]
        %v4225 = vld [vmem:[%s4185 + $0x138] sm:$0xff]
        %v4226 = vld [vmem:[%s4185 + $0x140] sm:$0xff]
        %v4227 = vld [vmem:[%s4185 + $0x148] sm:$0x3]
        %v4228 = vld [vmem:[%s4185 + $0x150] sm:$0xff]
        %v4229 = vld [vmem:[%s4185 + $0x158] sm:$0xff]
        %v4230 = vld [vmem:[%s4185 + $0x160] sm:$0x3]
        %v4231 = vld [vmem:[%s4185 + $0x168] sm:$0xff]
        %v4232 = vld [vmem:[%s4185 + $0x170] sm:$0xff]
        %v4233 = vld [vmem:[%s4185 + $0x178] sm:$0x3]
        %v4234 = vld [vmem:[%s4185 + $0x180] sm:$0xff]
        %v4235 = vld [vmem:[%s4185 + $0x188] sm:$0xff]
        %v4236 = vld [vmem:[%s4185 + $0x190] sm:$0x3]
        %v4237 = vld [vmem:[%s4185 + $0x198] sm:$0xff]
        %v4238 = vld [vmem:[%s4185 + $0x1a0] sm:$0xff]
        %v4239 = vld [vmem:[%s4185 + $0x1a8] sm:$0x3]
        %v4240 = vld [vmem:[%s4185 + $0x1b0] sm:$0xff]
        %v4241 = vld [vmem:[%s4185 + $0x1b8] sm:$0xff]
        %v4242 = vld [vmem:[%s4185 + $0x1c0] sm:$0x3]
        %v4243 = vld [vmem:[%s4185 + $0x1c8] sm:$0xff]
        %v4244 = vld [vmem:[%s4185 + $0x1d0] sm:$0xff]
        %v4245 = vld [vmem:[%s4185 + $0x1d8] sm:$0x3]
        %v4246 = vld [vmem:[%s4185 + $0x1e0] sm:$0xff]
        %v4247 = vld [vmem:[%s4185 + $0x1e8] sm:$0xff]
        %v4248 = vld [vmem:[%s4185 + $0x1f0] sm:$0x3]
        %v4249 = vld [vmem:[%s4185 + $0x1f8] sm:$0xff]
        %v4250 = vld [vmem:[%s4185 + $0x200] sm:$0xff]
        %v4251 = vld [vmem:[%s4185 + $0x208] sm:$0x3]
        %v4252 = vld [vmem:[%s4185 + $0x210] sm:$0xff]
        %v4253 = vld [vmem:[%s4185 + $0x218] sm:$0xff]
        %v4254 = vld [vmem:[%s4185 + $0x220] sm:$0x3]
        %v4255 = vld [vmem:[%s4185 + $0x228] sm:$0xff]
        %v4256 = vld [vmem:[%s4185 + $0x230] sm:$0xff]
        %v4257 = vld [vmem:[%s4185 + $0x238] sm:$0x3]
        %v4258 = vld [vmem:[%s4185 + $0x240] sm:$0xff]
        %v4259 = vld [vmem:[%s4185 + $0x248] sm:$0xff]
        %v4260 = vld [vmem:[%s4185 + $0x250] sm:$0x3]
        %v4261 = vld [vmem:[%s4185 + $0x258] sm:$0xff]
        %v4262 = vld [vmem:[%s4185 + $0x260] sm:$0xff]
        %v4263 = vld [vmem:[%s4185 + $0x268] sm:$0x3]
        %v4264 = vld [vmem:[%s4185 + $0x270] sm:$0xff]
        %v4265 = vld [vmem:[%s4185 + $0x278] sm:$0xff]
        %v4266 = vld [vmem:[%s4185 + $0x280] sm:$0x3]
        %v4267 = vld [vmem:[%s4185 + $0x288] sm:$0xff]
        %v4268 = vld [vmem:[%s4185 + $0x290] sm:$0xff]
        %v4269 = vld [vmem:[%s4185 + $0x298] sm:$0x3]
        %v4270 = vld [vmem:[%s4185 + $0x2a0] sm:$0xff]
        %v4271 = vld [vmem:[%s4185 + $0x2a8] sm:$0xff]
        %v4272 = vld [vmem:[%s4185 + $0x2b0] sm:$0x3]
        %v4273 = vld [vmem:[%s4185 + $0x2b8] sm:$0xff]
        %v4274 = vld [vmem:[%s4185 + $0x2c0] sm:$0xff]
        %v4275 = vld [vmem:[%s4185 + $0x2c8] sm:$0x3]
        %v4276 = vld [vmem:[%s4185 + $0x2d0] sm:$0xff]
        %v4277 = vld [vmem:[%s4185 + $0x2d8] sm:$0xff]
        %v4278 = vld [vmem:[%s4185 + $0x2e0] sm:$0x3]
        %v4279 = vld [vmem:[%s4185 + $0x2e8] sm:$0xff]
        %v4280 = vld [vmem:[%s4185 + $0x2f0] sm:$0xff]
        %v4281 = vld [vmem:[%s4185 + $0x2f8] sm:$0x3]
        %v4282 = vpack.c.bf16 %v4186, %v4186
        %v4283 = vpack.c.bf16 %v4187, %v4187
        %v4284 = vpack.c.bf16 %v4189, %v4189
        %v4285 = vpack.c.bf16 %v4190, %v4190
        %v4286 = vpack.c.bf16 %v4192, %v4192
        %v4287 = vpack.c.bf16 %v4193, %v4193
        %v4288 = vpack.c.bf16 %v4195, %v4195
        %v4289 = vpack.c.bf16 %v4196, %v4196
        %v4290 = vpack.c.bf16 %v4198, %v4198
        %v4291 = vpack.c.bf16 %v4199, %v4199
        %v4292 = vpack.c.bf16 %v4201, %v4201
        %v4293 = vpack.c.bf16 %v4202, %v4202
        %v4294 = vpack.c.bf16 %v4204, %v4204
        %v4295 = vpack.c.bf16 %v4205, %v4205
        %v4296 = vpack.c.bf16 %v4207, %v4207
        %v4297 = vpack.c.bf16 %v4208, %v4208
        %v4298 = vpack.c.bf16 %v4210, %v4210
        %v4299 = vpack.c.bf16 %v4211, %v4211
        %v4300 = vpack.c.bf16 %v4213, %v4213
        %v4301 = vpack.c.bf16 %v4214, %v4214
        %v4302 = vpack.c.bf16 %v4216, %v4216
        %v4303 = vpack.c.bf16 %v4217, %v4217
        %v4304 = vpack.c.bf16 %v4219, %v4219
        %v4305 = vpack.c.bf16 %v4220, %v4220
        %v4306 = vpack.c.bf16 %v4222, %v4222
        %v4307 = vpack.c.bf16 %v4223, %v4223
        %v4308 = vpack.c.bf16 %v4225, %v4225
        %v4309 = vpack.c.bf16 %v4226, %v4226
        %v4310 = vpack.c.bf16 %v4228, %v4228
        %v4311 = vpack.c.bf16 %v4229, %v4229
        %v4312 = vpack.c.bf16 %v4231, %v4231
        %v4313 = vpack.c.bf16 %v4232, %v4232
        %v4314 = vpack.c.bf16 %v4234, %v4234
        %v4315 = vpack.c.bf16 %v4235, %v4235
        %v4316 = vpack.c.bf16 %v4237, %v4237
        %v4317 = vpack.c.bf16 %v4238, %v4238
        %v4318 = vpack.c.bf16 %v4240, %v4240
        %v4319 = vpack.c.bf16 %v4241, %v4241
        %v4320 = vpack.c.bf16 %v4243, %v4243
        %v4321 = vpack.c.bf16 %v4244, %v4244
        %v4322 = vpack.c.bf16 %v4246, %v4246
        %v4323 = vpack.c.bf16 %v4247, %v4247
        %v4324 = vpack.c.bf16 %v4249, %v4249
        %v4325 = vpack.c.bf16 %v4250, %v4250
        %v4326 = vpack.c.bf16 %v4252, %v4252
        %v4327 = vpack.c.bf16 %v4253, %v4253
        %v4328 = vpack.c.bf16 %v4255, %v4255
        %v4329 = vpack.c.bf16 %v4256, %v4256
        %v4330 = vpack.c.bf16 %v4258, %v4258
        %v4331 = vpack.c.bf16 %v4259, %v4259
        %v4332 = vpack.c.bf16 %v4261, %v4261
        %v4333 = vpack.c.bf16 %v4262, %v4262
        %v4334 = vpack.c.bf16 %v4264, %v4264
        %v4335 = vpack.c.bf16 %v4265, %v4265
        %v4336 = vpack.c.bf16 %v4267, %v4267
        %v4337 = vpack.c.bf16 %v4268, %v4268
        %v4338 = vpack.c.bf16 %v4270, %v4270
        %v4339 = vpack.c.bf16 %v4271, %v4271
        %v4340 = vpack.c.bf16 %v4273, %v4273
        %v4341 = vpack.c.bf16 %v4274, %v4274
        %v4342 = vpack.c.bf16 %v4276, %v4276
        %v4343 = vpack.c.bf16 %v4277, %v4277
        %v4344 = vpack.c.bf16 %v4279, %v4279
        %v4345 = vpack.c.bf16 %v4280, %v4280
        %v4346 = vpack.c.bf16 %v4188, %v4188
        %v4347 = vpack.c.bf16 %v4191, %v4191
        %v4348 = vpack.c.bf16 %v4194, %v4194
        %v4349 = vpack.c.bf16 %v4197, %v4197
        %v4350 = vpack.c.bf16 %v4200, %v4200
        %v4351 = vpack.c.bf16 %v4203, %v4203
        %v4352 = vpack.c.bf16 %v4206, %v4206
        %v4353 = vpack.c.bf16 %v4209, %v4209
        %v4354 = vpack.c.bf16 %v4212, %v4212
        %v4355 = vpack.c.bf16 %v4215, %v4215
        %v4356 = vpack.c.bf16 %v4218, %v4218
        %v4357 = vpack.c.bf16 %v4221, %v4221
        %v4358 = vpack.c.bf16 %v4224, %v4224
        %v4359 = vpack.c.bf16 %v4227, %v4227
        %v4360 = vpack.c.bf16 %v4230, %v4230
        %v4361 = vpack.c.bf16 %v4233, %v4233
        %v4362 = vpack.c.bf16 %v4236, %v4236
        %v4363 = vpack.c.bf16 %v4239, %v4239
        %v4364 = vpack.c.bf16 %v4242, %v4242
        %v4365 = vpack.c.bf16 %v4245, %v4245
        %v4366 = vpack.c.bf16 %v4248, %v4248
        %v4367 = vpack.c.bf16 %v4251, %v4251
        %v4368 = vpack.c.bf16 %v4254, %v4254
        %v4369 = vpack.c.bf16 %v4257, %v4257
        %v4370 = vpack.c.bf16 %v4260, %v4260
        %v4371 = vpack.c.bf16 %v4263, %v4263
        %v4372 = vpack.c.bf16 %v4266, %v4266
        %v4373 = vpack.c.bf16 %v4269, %v4269
        %v4374 = vpack.c.bf16 %v4272, %v4272
        %v4375 = vpack.c.bf16 %v4275, %v4275
        %v4376 = vpack.c.bf16 %v4278, %v4278
        %v4377 = vpack.c.bf16 %v4281, %v4281
        %v4442 = vunpack.c.l.b16 %v4282
        %v4443 = vunpack.c.l.b16 %v4283
        %v4444 = vunpack.c.l.b16 %v4284
        %v4445 = vunpack.c.l.b16 %v4285
        %v4446 = vunpack.c.l.b16 %v4286
        %v4447 = vunpack.c.l.b16 %v4287
        %v4448 = vunpack.c.l.b16 %v4288
        %v4449 = vunpack.c.l.b16 %v4289
        %v4450 = vunpack.c.l.b16 %v4290
        %v4451 = vunpack.c.l.b16 %v4291
        %v4452 = vunpack.c.l.b16 %v4292
        %v4453 = vunpack.c.l.b16 %v4293
        %v4454 = vunpack.c.l.b16 %v4294
        %v4455 = vunpack.c.l.b16 %v4295
        %v4456 = vunpack.c.l.b16 %v4296
        %v4457 = vunpack.c.l.b16 %v4297
        %v4458 = vunpack.c.l.b16 %v4298
        %v4459 = vunpack.c.l.b16 %v4299
        %v4460 = vunpack.c.l.b16 %v4300
        %v4461 = vunpack.c.l.b16 %v4301
        %v4462 = vunpack.c.l.b16 %v4302
        %v4463 = vunpack.c.l.b16 %v4303
        %v4464 = vunpack.c.l.b16 %v4304
        %v4465 = vunpack.c.l.b16 %v4305
        %v4466 = vunpack.c.l.b16 %v4306
        %v4467 = vunpack.c.l.b16 %v4307
        %v4468 = vunpack.c.l.b16 %v4308
        %v4469 = vunpack.c.l.b16 %v4309
        %v4470 = vunpack.c.l.b16 %v4310
        %v4471 = vunpack.c.l.b16 %v4311
        %v4472 = vunpack.c.l.b16 %v4312
        %v4473 = vunpack.c.l.b16 %v4313
        %v4474 = vunpack.c.l.b16 %v4314
        %v4475 = vunpack.c.l.b16 %v4315
        %v4476 = vunpack.c.l.b16 %v4316
        %v4477 = vunpack.c.l.b16 %v4317
        %v4478 = vunpack.c.l.b16 %v4318
        %v4479 = vunpack.c.l.b16 %v4319
        %v4480 = vunpack.c.l.b16 %v4320
        %v4481 = vunpack.c.l.b16 %v4321
        %v4482 = vunpack.c.l.b16 %v4322
        %v4483 = vunpack.c.l.b16 %v4323
        %v4484 = vunpack.c.l.b16 %v4324
        %v4485 = vunpack.c.l.b16 %v4325
        %v4486 = vunpack.c.l.b16 %v4326
        %v4487 = vunpack.c.l.b16 %v4327
        %v4488 = vunpack.c.l.b16 %v4328
        %v4489 = vunpack.c.l.b16 %v4329
        %v4490 = vunpack.c.l.b16 %v4330
        %v4491 = vunpack.c.l.b16 %v4331
        %v4492 = vunpack.c.l.b16 %v4332
        %v4493 = vunpack.c.l.b16 %v4333
        %v4494 = vunpack.c.l.b16 %v4334
        %v4495 = vunpack.c.l.b16 %v4335
        %v4496 = vunpack.c.l.b16 %v4336
        %v4497 = vunpack.c.l.b16 %v4337
        %v4498 = vunpack.c.l.b16 %v4338
        %v4499 = vunpack.c.l.b16 %v4339
        %v4500 = vunpack.c.l.b16 %v4340
        %v4501 = vunpack.c.l.b16 %v4341
        %v4502 = vunpack.c.l.b16 %v4342
        %v4503 = vunpack.c.l.b16 %v4343
        %v4504 = vunpack.c.l.b16 %v4344
        %v4505 = vunpack.c.l.b16 %v4345
        %v4506 = vpack.c.b16 %v4443, %v4442
        %v4507 = vpack.c.b16 %v4445, %v4444
        %v4508 = vpack.c.b16 %v4447, %v4446
        %v4509 = vpack.c.b16 %v4449, %v4448
        %v4510 = vpack.c.b16 %v4451, %v4450
        %v4511 = vpack.c.b16 %v4453, %v4452
        %v4512 = vpack.c.b16 %v4455, %v4454
        %v4513 = vpack.c.b16 %v4457, %v4456
        %v4514 = vpack.c.b16 %v4459, %v4458
        %v4515 = vpack.c.b16 %v4461, %v4460
        %v4516 = vpack.c.b16 %v4463, %v4462
        %v4517 = vpack.c.b16 %v4465, %v4464
        %v4518 = vpack.c.b16 %v4467, %v4466
        %v4519 = vpack.c.b16 %v4469, %v4468
        %v4520 = vpack.c.b16 %v4471, %v4470
        %v4521 = vpack.c.b16 %v4473, %v4472
        %v4522 = vpack.c.b16 %v4475, %v4474
        %v4523 = vpack.c.b16 %v4477, %v4476
        %v4524 = vpack.c.b16 %v4479, %v4478
        %v4525 = vpack.c.b16 %v4481, %v4480
        %v4526 = vpack.c.b16 %v4483, %v4482
        %v4527 = vpack.c.b16 %v4485, %v4484
        %v4528 = vpack.c.b16 %v4487, %v4486
        %v4529 = vpack.c.b16 %v4489, %v4488
        %v4530 = vpack.c.b16 %v4491, %v4490
        %v4531 = vpack.c.b16 %v4493, %v4492
        %v4532 = vpack.c.b16 %v4495, %v4494
        %v4533 = vpack.c.b16 %v4497, %v4496
        %v4534 = vpack.c.b16 %v4499, %v4498
        %v4535 = vpack.c.b16 %v4501, %v4500
        %v4536 = vpack.c.b16 %v4503, %v4502
        %v4537 = vpack.c.b16 %v4505, %v4504
        %v4602 = vunpack.c.l.b16 %v4346
        %v4603 = vunpack.c.l.b16 %v4347
        %v4604 = vunpack.c.l.b16 %v4348
        %v4605 = vunpack.c.l.b16 %v4349
        %v4606 = vunpack.c.l.b16 %v4350
        %v4607 = vunpack.c.l.b16 %v4351
        %v4608 = vunpack.c.l.b16 %v4352
        %v4609 = vunpack.c.l.b16 %v4353
        %v4610 = vunpack.c.l.b16 %v4354
        %v4611 = vunpack.c.l.b16 %v4355
        %v4612 = vunpack.c.l.b16 %v4356
        %v4613 = vunpack.c.l.b16 %v4357
        %v4614 = vunpack.c.l.b16 %v4358
        %v4615 = vunpack.c.l.b16 %v4359
        %v4616 = vunpack.c.l.b16 %v4360
        %v4617 = vunpack.c.l.b16 %v4361
        %v4618 = vunpack.c.l.b16 %v4362
        %v4619 = vunpack.c.l.b16 %v4363
        %v4620 = vunpack.c.l.b16 %v4364
        %v4621 = vunpack.c.l.b16 %v4365
        %v4622 = vunpack.c.l.b16 %v4366
        %v4623 = vunpack.c.l.b16 %v4367
        %v4624 = vunpack.c.l.b16 %v4368
        %v4625 = vunpack.c.l.b16 %v4369
        %v4626 = vunpack.c.l.b16 %v4370
        %v4627 = vunpack.c.l.b16 %v4371
        %v4628 = vunpack.c.l.b16 %v4372
        %v4629 = vunpack.c.l.b16 %v4373
        %v4630 = vunpack.c.l.b16 %v4374
        %v4631 = vunpack.c.l.b16 %v4375
        %v4632 = vunpack.c.l.b16 %v4376
        %v4633 = vunpack.c.l.b16 %v4377
        %v4634 = vpack.c.b16 %v4602, %v4602
        %v4635 = vpack.c.b16 %v4603, %v4603
        %v4636 = vpack.c.b16 %v4604, %v4604
        %v4637 = vpack.c.b16 %v4605, %v4605
        %v4638 = vpack.c.b16 %v4606, %v4606
        %v4639 = vpack.c.b16 %v4607, %v4607
        %v4640 = vpack.c.b16 %v4608, %v4608
        %v4641 = vpack.c.b16 %v4609, %v4609
        %v4642 = vpack.c.b16 %v4610, %v4610
        %v4643 = vpack.c.b16 %v4611, %v4611
        %v4644 = vpack.c.b16 %v4612, %v4612
        %v4645 = vpack.c.b16 %v4613, %v4613
        %v4646 = vpack.c.b16 %v4614, %v4614
        %v4647 = vpack.c.b16 %v4615, %v4615
        %v4648 = vpack.c.b16 %v4616, %v4616
        %v4649 = vpack.c.b16 %v4617, %v4617
        %v4650 = vpack.c.b16 %v4618, %v4618
        %v4651 = vpack.c.b16 %v4619, %v4619
        %v4652 = vpack.c.b16 %v4620, %v4620
        %v4653 = vpack.c.b16 %v4621, %v4621
        %v4654 = vpack.c.b16 %v4622, %v4622
        %v4655 = vpack.c.b16 %v4623, %v4623
        %v4656 = vpack.c.b16 %v4624, %v4624
        %v4657 = vpack.c.b16 %v4625, %v4625
        %v4658 = vpack.c.b16 %v4626, %v4626
        %v4659 = vpack.c.b16 %v4627, %v4627
        %v4660 = vpack.c.b16 %v4628, %v4628
        %v4661 = vpack.c.b16 %v4629, %v4629
        %v4662 = vpack.c.b16 %v4630, %v4630
        %v4663 = vpack.c.b16 %v4631, %v4631
        %v4664 = vpack.c.b16 %v4632, %v4632
        %v4665 = vpack.c.b16 %v4633, %v4633
        %v4667 = vshrl.u32 %v4506, 16
        %v4669 = vshll.u32 %v4506, 16
        %v4671 = vrot.slane %v4669, 1
        %v4672 = vor.u32 %v4667, %v4671
        %v4674 = vshll.u32 %v4634, 16
        %v4676 = vrot.slane %v4674, 1
        %v4677 = vsel %vm1216, %v4672, %v4676
        %v4679 = vshrl.u32 %v4507, 16
        %v4681 = vshll.u32 %v4507, 16
        %v4683 = vrot.slane %v4681, 1
        %v4684 = vor.u32 %v4679, %v4683
        %v4686 = vshll.u32 %v4635, 16
        %v4688 = vrot.slane %v4686, 1
        %v4689 = vsel %vm1216, %v4684, %v4688
        %v4691 = vshrl.u32 %v4508, 16
        %v4693 = vshll.u32 %v4508, 16
        %v4695 = vrot.slane %v4693, 1
        %v4696 = vor.u32 %v4691, %v4695
        %v4698 = vshll.u32 %v4636, 16
        %v4700 = vrot.slane %v4698, 1
        %v4701 = vsel %vm1216, %v4696, %v4700
        %v4703 = vshrl.u32 %v4509, 16
        %v4705 = vshll.u32 %v4509, 16
        %v4707 = vrot.slane %v4705, 1
        %v4708 = vor.u32 %v4703, %v4707
        %v4710 = vshll.u32 %v4637, 16
        %v4712 = vrot.slane %v4710, 1
        %v4713 = vsel %vm1216, %v4708, %v4712
        %v4715 = vshrl.u32 %v4510, 16
        %v4717 = vshll.u32 %v4510, 16
        %v4719 = vrot.slane %v4717, 1
        %v4720 = vor.u32 %v4715, %v4719
        %v4722 = vshll.u32 %v4638, 16
        %v4724 = vrot.slane %v4722, 1
        %v4725 = vsel %vm1216, %v4720, %v4724
        %v4727 = vshrl.u32 %v4511, 16
        %v4729 = vshll.u32 %v4511, 16
        %v4731 = vrot.slane %v4729, 1
        %v4732 = vor.u32 %v4727, %v4731
        %v4734 = vshll.u32 %v4639, 16
        %v4736 = vrot.slane %v4734, 1
        %v4737 = vsel %vm1216, %v4732, %v4736
        %v4739 = vshrl.u32 %v4512, 16
        %v4741 = vshll.u32 %v4512, 16
        %v4743 = vrot.slane %v4741, 1
        %v4744 = vor.u32 %v4739, %v4743
        %v4746 = vshll.u32 %v4640, 16
        %v4748 = vrot.slane %v4746, 1
        %v4749 = vsel %vm1216, %v4744, %v4748
        %v4751 = vshrl.u32 %v4513, 16
        %v4753 = vshll.u32 %v4513, 16
        %v4755 = vrot.slane %v4753, 1
        %v4756 = vor.u32 %v4751, %v4755
        %v4758 = vshll.u32 %v4641, 16
        %v4760 = vrot.slane %v4758, 1
        %v4761 = vsel %vm1216, %v4756, %v4760
        %v4763 = vshrl.u32 %v4514, 16
        %v4765 = vshll.u32 %v4514, 16
        %v4767 = vrot.slane %v4765, 1
        %v4768 = vor.u32 %v4763, %v4767
        %v4770 = vshll.u32 %v4642, 16
        %v4772 = vrot.slane %v4770, 1
        %v4773 = vsel %vm1216, %v4768, %v4772
        %v4775 = vshrl.u32 %v4515, 16
        %v4777 = vshll.u32 %v4515, 16
        %v4779 = vrot.slane %v4777, 1
        %v4780 = vor.u32 %v4775, %v4779
        %v4782 = vshll.u32 %v4643, 16
        %v4784 = vrot.slane %v4782, 1
        %v4785 = vsel %vm1216, %v4780, %v4784
        %v4787 = vshrl.u32 %v4516, 16
        %v4789 = vshll.u32 %v4516, 16
        %v4791 = vrot.slane %v4789, 1
        %v4792 = vor.u32 %v4787, %v4791
        %v4794 = vshll.u32 %v4644, 16
        %v4796 = vrot.slane %v4794, 1
        %v4797 = vsel %vm1216, %v4792, %v4796
        %v4799 = vshrl.u32 %v4517, 16
        %v4801 = vshll.u32 %v4517, 16
        %v4803 = vrot.slane %v4801, 1
        %v4804 = vor.u32 %v4799, %v4803
        %v4806 = vshll.u32 %v4645, 16
        %v4808 = vrot.slane %v4806, 1
        %v4809 = vsel %vm1216, %v4804, %v4808
        %v4811 = vshrl.u32 %v4518, 16
        %v4813 = vshll.u32 %v4518, 16
        %v4815 = vrot.slane %v4813, 1
        %v4816 = vor.u32 %v4811, %v4815
        %v4818 = vshll.u32 %v4646, 16
        %v4820 = vrot.slane %v4818, 1
        %v4821 = vsel %vm1216, %v4816, %v4820
        %v4823 = vshrl.u32 %v4519, 16
        %v4825 = vshll.u32 %v4519, 16
        %v4827 = vrot.slane %v4825, 1
        %v4828 = vor.u32 %v4823, %v4827
        %v4830 = vshll.u32 %v4647, 16
        %v4832 = vrot.slane %v4830, 1
        %v4833 = vsel %vm1216, %v4828, %v4832
        %v4835 = vshrl.u32 %v4520, 16
        %v4837 = vshll.u32 %v4520, 16
        %v4839 = vrot.slane %v4837, 1
        %v4840 = vor.u32 %v4835, %v4839
        %v4842 = vshll.u32 %v4648, 16
        %v4844 = vrot.slane %v4842, 1
        %v4845 = vsel %vm1216, %v4840, %v4844
        %v4847 = vshrl.u32 %v4521, 16
        %v4849 = vshll.u32 %v4521, 16
        %v4851 = vrot.slane %v4849, 1
        %v4852 = vor.u32 %v4847, %v4851
        %v4854 = vshll.u32 %v4649, 16
        %v4856 = vrot.slane %v4854, 1
        %v4857 = vsel %vm1216, %v4852, %v4856
        %v4859 = vshrl.u32 %v4522, 16
        %v4861 = vshll.u32 %v4522, 16
        %v4863 = vrot.slane %v4861, 1
        %v4864 = vor.u32 %v4859, %v4863
        %v4866 = vshll.u32 %v4650, 16
        %v4868 = vrot.slane %v4866, 1
        %v4869 = vsel %vm1216, %v4864, %v4868
        %v4871 = vshrl.u32 %v4523, 16
        %v4873 = vshll.u32 %v4523, 16
        %v4875 = vrot.slane %v4873, 1
        %v4876 = vor.u32 %v4871, %v4875
        %v4878 = vshll.u32 %v4651, 16
        %v4880 = vrot.slane %v4878, 1
        %v4881 = vsel %vm1216, %v4876, %v4880
        %v4883 = vshrl.u32 %v4524, 16
        %v4885 = vshll.u32 %v4524, 16
        %v4887 = vrot.slane %v4885, 1
        %v4888 = vor.u32 %v4883, %v4887
        %v4890 = vshll.u32 %v4652, 16
        %v4892 = vrot.slane %v4890, 1
        %v4893 = vsel %vm1216, %v4888, %v4892
        %v4895 = vshrl.u32 %v4525, 16
        %v4897 = vshll.u32 %v4525, 16
        %v4899 = vrot.slane %v4897, 1
        %v4900 = vor.u32 %v4895, %v4899
        %v4902 = vshll.u32 %v4653, 16
        %v4904 = vrot.slane %v4902, 1
        %v4905 = vsel %vm1216, %v4900, %v4904
        %v4907 = vshrl.u32 %v4526, 16
        %v4909 = vshll.u32 %v4526, 16
        %v4911 = vrot.slane %v4909, 1
        %v4912 = vor.u32 %v4907, %v4911
        %v4914 = vshll.u32 %v4654, 16
        %v4916 = vrot.slane %v4914, 1
        %v4917 = vsel %vm1216, %v4912, %v4916
        %v4919 = vshrl.u32 %v4527, 16
        %v4921 = vshll.u32 %v4527, 16
        %v4923 = vrot.slane %v4921, 1
        %v4924 = vor.u32 %v4919, %v4923
        %v4926 = vshll.u32 %v4655, 16
        %v4928 = vrot.slane %v4926, 1
        %v4929 = vsel %vm1216, %v4924, %v4928
        %v4931 = vshrl.u32 %v4528, 16
        %v4933 = vshll.u32 %v4528, 16
        %v4935 = vrot.slane %v4933, 1
        %v4936 = vor.u32 %v4931, %v4935
        %v4938 = vshll.u32 %v4656, 16
        %v4940 = vrot.slane %v4938, 1
        %v4941 = vsel %vm1216, %v4936, %v4940
        %v4943 = vshrl.u32 %v4529, 16
        %v4945 = vshll.u32 %v4529, 16
        %v4947 = vrot.slane %v4945, 1
        %v4948 = vor.u32 %v4943, %v4947
        %v4950 = vshll.u32 %v4657, 16
        %v4952 = vrot.slane %v4950, 1
        %v4953 = vsel %vm1216, %v4948, %v4952
        %v4955 = vshrl.u32 %v4530, 16
        %v4957 = vshll.u32 %v4530, 16
        %v4959 = vrot.slane %v4957, 1
        %v4960 = vor.u32 %v4955, %v4959
        %v4962 = vshll.u32 %v4658, 16
        %v4964 = vrot.slane %v4962, 1
        %v4965 = vsel %vm1216, %v4960, %v4964
        %v4967 = vshrl.u32 %v4531, 16
        %v4969 = vshll.u32 %v4531, 16
        %v4971 = vrot.slane %v4969, 1
        %v4972 = vor.u32 %v4967, %v4971
        %v4974 = vshll.u32 %v4659, 16
        %v4976 = vrot.slane %v4974, 1
        %v4977 = vsel %vm1216, %v4972, %v4976
        %v4979 = vshrl.u32 %v4532, 16
        %v4981 = vshll.u32 %v4532, 16
        %v4983 = vrot.slane %v4981, 1
        %v4984 = vor.u32 %v4979, %v4983
        %v4986 = vshll.u32 %v4660, 16
        %v4988 = vrot.slane %v4986, 1
        %v4989 = vsel %vm1216, %v4984, %v4988
        %v4991 = vshrl.u32 %v4533, 16
        %v4993 = vshll.u32 %v4533, 16
        %v4995 = vrot.slane %v4993, 1
        %v4996 = vor.u32 %v4991, %v4995
        %v4998 = vshll.u32 %v4661, 16
        %v5000 = vrot.slane %v4998, 1
        %v5001 = vsel %vm1216, %v4996, %v5000
        %v5003 = vshrl.u32 %v4534, 16
        %v5005 = vshll.u32 %v4534, 16
        %v5007 = vrot.slane %v5005, 1
        %v5008 = vor.u32 %v5003, %v5007
        %v5010 = vshll.u32 %v4662, 16
        %v5012 = vrot.slane %v5010, 1
        %v5013 = vsel %vm1216, %v5008, %v5012
        %v5015 = vshrl.u32 %v4535, 16
        %v5017 = vshll.u32 %v4535, 16
        %v5019 = vrot.slane %v5017, 1
        %v5020 = vor.u32 %v5015, %v5019
        %v5022 = vshll.u32 %v4663, 16
        %v5024 = vrot.slane %v5022, 1
        %v5025 = vsel %vm1216, %v5020, %v5024
        %v5027 = vshrl.u32 %v4536, 16
        %v5029 = vshll.u32 %v4536, 16
        %v5031 = vrot.slane %v5029, 1
        %v5032 = vor.u32 %v5027, %v5031
        %v5034 = vshll.u32 %v4664, 16
        %v5036 = vrot.slane %v5034, 1
        %v5037 = vsel %vm1216, %v5032, %v5036
        %v5039 = vshrl.u32 %v4537, 16
        %v5041 = vshll.u32 %v4537, 16
        %v5043 = vrot.slane %v5041, 1
        %v5044 = vor.u32 %v5039, %v5043
        %v5046 = vshll.u32 %v4665, 16
        %v5048 = vrot.slane %v5046, 1
        %v5049 = vsel %vm1216, %v5044, %v5048
        %v5082 = vrot.slane %v4506, 1
        %v5083 = vrot.slane %v4634, 1
        %v5084 = vsel %vm1633, %v5082, %v5083
        %v5085 = vrot.slane %v4507, 1
        %v5086 = vrot.slane %v4635, 1
        %v5087 = vsel %vm1633, %v5085, %v5086
        %v5088 = vrot.slane %v4508, 1
        %v5089 = vrot.slane %v4636, 1
        %v5090 = vsel %vm1633, %v5088, %v5089
        %v5091 = vrot.slane %v4509, 1
        %v5092 = vrot.slane %v4637, 1
        %v5093 = vsel %vm1633, %v5091, %v5092
        %v5094 = vrot.slane %v4510, 1
        %v5095 = vrot.slane %v4638, 1
        %v5096 = vsel %vm1633, %v5094, %v5095
        %v5097 = vrot.slane %v4511, 1
        %v5098 = vrot.slane %v4639, 1
        %v5099 = vsel %vm1633, %v5097, %v5098
        %v5100 = vrot.slane %v4512, 1
        %v5101 = vrot.slane %v4640, 1
        %v5102 = vsel %vm1633, %v5100, %v5101
        %v5103 = vrot.slane %v4513, 1
        %v5104 = vrot.slane %v4641, 1
        %v5105 = vsel %vm1633, %v5103, %v5104
        %v5106 = vrot.slane %v4514, 1
        %v5107 = vrot.slane %v4642, 1
        %v5108 = vsel %vm1633, %v5106, %v5107
        %v5109 = vrot.slane %v4515, 1
        %v5110 = vrot.slane %v4643, 1
        %v5111 = vsel %vm1633, %v5109, %v5110
        %v5112 = vrot.slane %v4516, 1
        %v5113 = vrot.slane %v4644, 1
        %v5114 = vsel %vm1633, %v5112, %v5113
        %v5115 = vrot.slane %v4517, 1
        %v5116 = vrot.slane %v4645, 1
        %v5117 = vsel %vm1633, %v5115, %v5116
        %v5118 = vrot.slane %v4518, 1
        %v5119 = vrot.slane %v4646, 1
        %v5120 = vsel %vm1633, %v5118, %v5119
        %v5121 = vrot.slane %v4519, 1
        %v5122 = vrot.slane %v4647, 1
        %v5123 = vsel %vm1633, %v5121, %v5122
        %v5124 = vrot.slane %v4520, 1
        %v5125 = vrot.slane %v4648, 1
        %v5126 = vsel %vm1633, %v5124, %v5125
        %v5127 = vrot.slane %v4521, 1
        %v5128 = vrot.slane %v4649, 1
        %v5129 = vsel %vm1633, %v5127, %v5128
        %v5130 = vrot.slane %v4522, 1
        %v5131 = vrot.slane %v4650, 1
        %v5132 = vsel %vm1633, %v5130, %v5131
        %v5133 = vrot.slane %v4523, 1
        %v5134 = vrot.slane %v4651, 1
        %v5135 = vsel %vm1633, %v5133, %v5134
        %v5136 = vrot.slane %v4524, 1
        %v5137 = vrot.slane %v4652, 1
        %v5138 = vsel %vm1633, %v5136, %v5137
        %v5139 = vrot.slane %v4525, 1
        %v5140 = vrot.slane %v4653, 1
        %v5141 = vsel %vm1633, %v5139, %v5140
        %v5142 = vrot.slane %v4526, 1
        %v5143 = vrot.slane %v4654, 1
        %v5144 = vsel %vm1633, %v5142, %v5143
        %v5145 = vrot.slane %v4527, 1
        %v5146 = vrot.slane %v4655, 1
        %v5147 = vsel %vm1633, %v5145, %v5146
        %v5148 = vrot.slane %v4528, 1
        %v5149 = vrot.slane %v4656, 1
        %v5150 = vsel %vm1633, %v5148, %v5149
        %v5151 = vrot.slane %v4529, 1
        %v5152 = vrot.slane %v4657, 1
        %v5153 = vsel %vm1633, %v5151, %v5152
        %v5154 = vrot.slane %v4530, 1
        %v5155 = vrot.slane %v4658, 1
        %v5156 = vsel %vm1633, %v5154, %v5155
        %v5157 = vrot.slane %v4531, 1
        %v5158 = vrot.slane %v4659, 1
        %v5159 = vsel %vm1633, %v5157, %v5158
        %v5160 = vrot.slane %v4532, 1
        %v5161 = vrot.slane %v4660, 1
        %v5162 = vsel %vm1633, %v5160, %v5161
        %v5163 = vrot.slane %v4533, 1
        %v5164 = vrot.slane %v4661, 1
        %v5165 = vsel %vm1633, %v5163, %v5164
        %v5166 = vrot.slane %v4534, 1
        %v5167 = vrot.slane %v4662, 1
        %v5168 = vsel %vm1633, %v5166, %v5167
        %v5169 = vrot.slane %v4535, 1
        %v5170 = vrot.slane %v4663, 1
        %v5171 = vsel %vm1633, %v5169, %v5170
        %v5172 = vrot.slane %v4536, 1
        %v5173 = vrot.slane %v4664, 1
        %v5174 = vsel %vm1633, %v5172, %v5173
        %v5175 = vrot.slane %v4537, 1
        %v5176 = vrot.slane %v4665, 1
        %v5177 = vsel %vm1633, %v5175, %v5176
        %s5210 = scalar_lea.vmem %s392, 384 [#allocation9]
        %v5211 = vld [vmem:[%s5210] sm:$0xf]
        %v5212 = vld [vmem:[%s5210 + $0x4] sm:$0xf]
        %v5213 = vld [vmem:[%s5210 + $0x8] sm:$0xf]
        %v5214 = vld [vmem:[%s5210 + $0xc] sm:$0xf]
        %v5215 = vld [vmem:[%s5210 + $0x10] sm:$0xf]
        %v5216 = vld [vmem:[%s5210 + $0x14] sm:$0xf]
        %v5217 = vld [vmem:[%s5210 + $0x18] sm:$0xf]
        %v5218 = vld [vmem:[%s5210 + $0x1c] sm:$0xf]
        %v5219 = vld [vmem:[%s5210 + $0x20] sm:$0xf]
        %v5220 = vld [vmem:[%s5210 + $0x24] sm:$0xf]
        %v5221 = vld [vmem:[%s5210 + $0x28] sm:$0xf]
        %v5222 = vld [vmem:[%s5210 + $0x2c] sm:$0xf]
        %v5223 = vld [vmem:[%s5210 + $0x30] sm:$0xf]
        %v5224 = vld [vmem:[%s5210 + $0x34] sm:$0xf]
        %v5225 = vld [vmem:[%s5210 + $0x38] sm:$0xf]
        %v5226 = vld [vmem:[%s5210 + $0x3c] sm:$0xf]
        %v5227 = vld [vmem:[%s5210 + $0x40] sm:$0xf]
        %v5228 = vld [vmem:[%s5210 + $0x44] sm:$0xf]
        %v5229 = vld [vmem:[%s5210 + $0x48] sm:$0xf]
        %v5230 = vld [vmem:[%s5210 + $0x4c] sm:$0xf]
        %v5231 = vld [vmem:[%s5210 + $0x50] sm:$0xf]
        %v5232 = vld [vmem:[%s5210 + $0x54] sm:$0xf]
        %v5233 = vld [vmem:[%s5210 + $0x58] sm:$0xf]
        %v5234 = vld [vmem:[%s5210 + $0x5c] sm:$0xf]
        %v5235 = vld [vmem:[%s5210 + $0x60] sm:$0xf]
        %v5236 = vld [vmem:[%s5210 + $0x64] sm:$0xf]
        %v5237 = vld [vmem:[%s5210 + $0x68] sm:$0xf]
        %v5238 = vld [vmem:[%s5210 + $0x6c] sm:$0xf]
        %v5239 = vld [vmem:[%s5210 + $0x70] sm:$0xf]
        %v5240 = vld [vmem:[%s5210 + $0x74] sm:$0xf]
        %v5241 = vld [vmem:[%s5210 + $0x78] sm:$0xf]
        %v5242 = vld [vmem:[%s5210 + $0x7c] sm:$0xf]
        %v5243 = vld [vmem:[%s5210 + $0x80] sm:$0xf]
        %v5244 = vld [vmem:[%s5210 + $0x84] sm:$0xf]
        %v5245 = vld [vmem:[%s5210 + $0x88] sm:$0xf]
        %v5246 = vld [vmem:[%s5210 + $0x8c] sm:$0xf]
        %v5247 = vld [vmem:[%s5210 + $0x90] sm:$0xf]
        %v5248 = vld [vmem:[%s5210 + $0x94] sm:$0xf]
        %v5249 = vld [vmem:[%s5210 + $0x98] sm:$0xf]
        %v5250 = vld [vmem:[%s5210 + $0x9c] sm:$0xf]
        %v5251 = vld [vmem:[%s5210 + $0xa0] sm:$0xf]
        %v5252 = vld [vmem:[%s5210 + $0xa4] sm:$0xf]
        %v5253 = vld [vmem:[%s5210 + $0xa8] sm:$0xf]
        %v5254 = vld [vmem:[%s5210 + $0xac] sm:$0xf]
        %v5255 = vld [vmem:[%s5210 + $0xb0] sm:$0xf]
        %v5256 = vld [vmem:[%s5210 + $0xb4] sm:$0xf]
        %v5257 = vld [vmem:[%s5210 + $0xb8] sm:$0xf]
        %v5258 = vld [vmem:[%s5210 + $0xbc] sm:$0xf]
        %v5307 = vunpack.c.l.b16 %v5211
        %v5308 = vunpack.c.l.b16 %v5212
        %v5309 = vunpack.c.l.b16 %v5213
        %v5310 = vunpack.c.l.b16 %v5214
        %v5311 = vunpack.c.l.b16 %v5215
        %v5312 = vunpack.c.l.b16 %v5216
        %v5313 = vunpack.c.l.b16 %v5217
        %v5314 = vunpack.c.l.b16 %v5218
        %v5315 = vunpack.c.l.b16 %v5219
        %v5316 = vunpack.c.l.b16 %v5220
        %v5317 = vunpack.c.l.b16 %v5221
        %v5318 = vunpack.c.l.b16 %v5222
        %v5319 = vunpack.c.l.b16 %v5223
        %v5320 = vunpack.c.l.b16 %v5224
        %v5321 = vunpack.c.l.b16 %v5225
        %v5322 = vunpack.c.l.b16 %v5226
        %v5323 = vunpack.c.l.b16 %v5227
        %v5324 = vunpack.c.l.b16 %v5228
        %v5325 = vunpack.c.l.b16 %v5229
        %v5326 = vunpack.c.l.b16 %v5230
        %v5327 = vunpack.c.l.b16 %v5231
        %v5328 = vunpack.c.l.b16 %v5232
        %v5329 = vunpack.c.l.b16 %v5233
        %v5330 = vunpack.c.l.b16 %v5234
        %v5331 = vunpack.c.l.b16 %v5235
        %v5332 = vunpack.c.l.b16 %v5236
        %v5333 = vunpack.c.l.b16 %v5237
        %v5334 = vunpack.c.l.b16 %v5238
        %v5335 = vunpack.c.l.b16 %v5239
        %v5336 = vunpack.c.l.b16 %v5240
        %v5337 = vunpack.c.l.b16 %v5241
        %v5338 = vunpack.c.l.b16 %v5242
        %v5339 = vunpack.c.l.b16 %v5243
        %v5340 = vunpack.c.l.b16 %v5244
        %v5341 = vunpack.c.l.b16 %v5245
        %v5342 = vunpack.c.l.b16 %v5246
        %v5343 = vunpack.c.l.b16 %v5247
        %v5344 = vunpack.c.l.b16 %v5248
        %v5345 = vunpack.c.l.b16 %v5249
        %v5346 = vunpack.c.l.b16 %v5250
        %v5347 = vunpack.c.l.b16 %v5251
        %v5348 = vunpack.c.l.b16 %v5252
        %v5349 = vunpack.c.l.b16 %v5253
        %v5350 = vunpack.c.l.b16 %v5254
        %v5351 = vunpack.c.l.b16 %v5255
        %v5352 = vunpack.c.l.b16 %v5256
        %v5353 = vunpack.c.l.b16 %v5257
        %v5354 = vunpack.c.l.b16 %v5258
        %v5355 = vpack.c.b16 %v5308, %v5307
        %v5356 = vpack.c.b16 %v5310, %v5309
        %v5357 = vpack.c.b16 %v5312, %v5311
        %v5358 = vpack.c.b16 %v5314, %v5313
        %v5359 = vpack.c.b16 %v5316, %v5315
        %v5360 = vpack.c.b16 %v5318, %v5317
        %v5361 = vpack.c.b16 %v5320, %v5319
        %v5362 = vpack.c.b16 %v5322, %v5321
        %v5363 = vpack.c.b16 %v5324, %v5323
        %v5364 = vpack.c.b16 %v5326, %v5325
        %v5365 = vpack.c.b16 %v5328, %v5327
        %v5366 = vpack.c.b16 %v5330, %v5329
        %v5367 = vpack.c.b16 %v5332, %v5331
        %v5368 = vpack.c.b16 %v5334, %v5333
        %v5369 = vpack.c.b16 %v5336, %v5335
        %v5370 = vpack.c.b16 %v5338, %v5337
        %v5371 = vpack.c.b16 %v5340, %v5339
        %v5372 = vpack.c.b16 %v5342, %v5341
        %v5373 = vpack.c.b16 %v5344, %v5343
        %v5374 = vpack.c.b16 %v5346, %v5345
        %v5375 = vpack.c.b16 %v5348, %v5347
        %v5376 = vpack.c.b16 %v5350, %v5349
        %v5377 = vpack.c.b16 %v5352, %v5351
        %v5378 = vpack.c.b16 %v5354, %v5353
        %5403 = vmatpush.bf16.msra.mxu0 %v5362
        %5404 = vmatpush.bf16.msra.mxu0 %v5361
        %5405 = vmatpush.bf16.msra.mxu0 %v5360
        %5406 = vmatpush.bf16.msra.mxu0 %v5359
        %5407 = vmatpush.bf16.msra.mxu0 %v5358
        %5408 = vmatpush.bf16.msra.mxu0 %v5357
        %5409 = vmatpush.bf16.msra.mxu0 %v5356
        %5410 = vmatpush.bf16.msra.mxu0 %v5355
        %5411 = vmatmul.bf16.gmra.mxu0 %v4506
        %v5412 = vpop.f32.mrf.mxu0
        %v5413 = vadd.f32 0.0, %v5412
        %v5414 = vpop.f32.mrf.mxu0
        %v5415 = vadd.f32 0.0, %v5414
        %5416 = vmatmul.bf16.gmra.mxu0 %v4507
        %v5417 = vpop.f32.mrf.mxu0
        %v5418 = vadd.f32 0.0, %v5417
        %v5419 = vpop.f32.mrf.mxu0
        %v5420 = vadd.f32 0.0, %v5419
        %5421 = vmatmul.bf16.gmra.mxu0 %v4508
        %v5422 = vpop.f32.mrf.mxu0
        %v5423 = vadd.f32 0.0, %v5422
        %v5424 = vpop.f32.mrf.mxu0
        %v5425 = vadd.f32 0.0, %v5424
        %5426 = vmatmul.bf16.gmra.mxu0 %v4509
        %v5427 = vpop.f32.mrf.mxu0
        %v5428 = vadd.f32 0.0, %v5427
        %v5429 = vpop.f32.mrf.mxu0
        %v5430 = vadd.f32 0.0, %v5429
        %5431 = vmatmul.bf16.gmra.mxu0 %v4510
        %v5432 = vpop.f32.mrf.mxu0
        %v5433 = vadd.f32 0.0, %v5432
        %v5434 = vpop.f32.mrf.mxu0
        %v5435 = vadd.f32 0.0, %v5434
        %5436 = vmatmul.bf16.gmra.mxu0 %v4511
        %v5437 = vpop.f32.mrf.mxu0
        %v5438 = vadd.f32 0.0, %v5437
        %v5439 = vpop.f32.mrf.mxu0
        %v5440 = vadd.f32 0.0, %v5439
        %5441 = vmatmul.bf16.gmra.mxu0 %v4512
        %v5442 = vpop.f32.mrf.mxu0
        %v5443 = vadd.f32 0.0, %v5442
        %v5444 = vpop.f32.mrf.mxu0
        %v5445 = vadd.f32 0.0, %v5444
        %5446 = vmatmul.bf16.gmra.mxu0 %v4513
        %v5447 = vpop.f32.mrf.mxu0
        %v5448 = vadd.f32 0.0, %v5447
        %v5449 = vpop.f32.mrf.mxu0
        %v5450 = vadd.f32 0.0, %v5449
        %5451 = vmatmul.bf16.gmra.mxu0 %v4514
        %v5452 = vpop.f32.mrf.mxu0
        %v5453 = vadd.f32 0.0, %v5452
        %v5454 = vpop.f32.mrf.mxu0
        %v5455 = vadd.f32 0.0, %v5454
        %5456 = vmatmul.bf16.gmra.mxu0 %v4515
        %v5457 = vpop.f32.mrf.mxu0
        %v5458 = vadd.f32 0.0, %v5457
        %v5459 = vpop.f32.mrf.mxu0
        %v5460 = vadd.f32 0.0, %v5459
        %5461 = vmatmul.bf16.gmra.mxu0 %v4516
        %v5462 = vpop.f32.mrf.mxu0
        %v5463 = vadd.f32 0.0, %v5462
        %v5464 = vpop.f32.mrf.mxu0
        %v5465 = vadd.f32 0.0, %v5464
        %5466 = vmatmul.bf16.gmra.mxu0 %v4517
        %v5467 = vpop.f32.mrf.mxu0
        %v5468 = vadd.f32 0.0, %v5467
        %v5469 = vpop.f32.mrf.mxu0
        %v5470 = vadd.f32 0.0, %v5469
        %5471 = vmatmul.bf16.gmra.mxu0 %v4518
        %v5472 = vpop.f32.mrf.mxu0
        %v5473 = vadd.f32 0.0, %v5472
        %v5474 = vpop.f32.mrf.mxu0
        %v5475 = vadd.f32 0.0, %v5474
        %5476 = vmatmul.bf16.gmra.mxu0 %v4519
        %v5477 = vpop.f32.mrf.mxu0
        %v5478 = vadd.f32 0.0, %v5477
        %v5479 = vpop.f32.mrf.mxu0
        %v5480 = vadd.f32 0.0, %v5479
        %5481 = vmatmul.bf16.gmra.mxu0 %v4520
        %v5482 = vpop.f32.mrf.mxu0
        %v5483 = vadd.f32 0.0, %v5482
        %v5484 = vpop.f32.mrf.mxu0
        %v5485 = vadd.f32 0.0, %v5484
        %5486 = vmatmul.bf16.gmra.mxu0 %v4521
        %v5487 = vpop.f32.mrf.mxu0
        %v5488 = vadd.f32 0.0, %v5487
        %v5489 = vpop.f32.mrf.mxu0
        %v5490 = vadd.f32 0.0, %v5489
        %5491 = vmatmul.bf16.gmra.mxu0 %v4522
        %v5492 = vpop.f32.mrf.mxu0
        %v5493 = vadd.f32 0.0, %v5492
        %v5494 = vpop.f32.mrf.mxu0
        %v5495 = vadd.f32 0.0, %v5494
        %5496 = vmatmul.bf16.gmra.mxu0 %v4523
        %v5497 = vpop.f32.mrf.mxu0
        %v5498 = vadd.f32 0.0, %v5497
        %v5499 = vpop.f32.mrf.mxu0
        %v5500 = vadd.f32 0.0, %v5499
        %5501 = vmatmul.bf16.gmra.mxu0 %v4524
        %v5502 = vpop.f32.mrf.mxu0
        %v5503 = vadd.f32 0.0, %v5502
        %v5504 = vpop.f32.mrf.mxu0
        %v5505 = vadd.f32 0.0, %v5504
        %5506 = vmatmul.bf16.gmra.mxu0 %v4525
        %v5507 = vpop.f32.mrf.mxu0
        %v5508 = vadd.f32 0.0, %v5507
        %v5509 = vpop.f32.mrf.mxu0
        %v5510 = vadd.f32 0.0, %v5509
        %5511 = vmatmul.bf16.gmra.mxu0 %v4526
        %v5512 = vpop.f32.mrf.mxu0
        %v5513 = vadd.f32 0.0, %v5512
        %v5514 = vpop.f32.mrf.mxu0
        %v5515 = vadd.f32 0.0, %v5514
        %5516 = vmatmul.bf16.gmra.mxu0 %v4527
        %v5517 = vpop.f32.mrf.mxu0
        %v5518 = vadd.f32 0.0, %v5517
        %v5519 = vpop.f32.mrf.mxu0
        %v5520 = vadd.f32 0.0, %v5519
        %5521 = vmatmul.bf16.gmra.mxu0 %v4528
        %v5522 = vpop.f32.mrf.mxu0
        %v5523 = vadd.f32 0.0, %v5522
        %v5524 = vpop.f32.mrf.mxu0
        %v5525 = vadd.f32 0.0, %v5524
        %5526 = vmatmul.bf16.gmra.mxu0 %v4529
        %v5527 = vpop.f32.mrf.mxu0
        %v5528 = vadd.f32 0.0, %v5527
        %v5529 = vpop.f32.mrf.mxu0
        %v5530 = vadd.f32 0.0, %v5529
        %5531 = vmatmul.bf16.gmra.mxu0 %v4530
        %v5532 = vpop.f32.mrf.mxu0
        %v5533 = vadd.f32 0.0, %v5532
        %v5534 = vpop.f32.mrf.mxu0
        %v5535 = vadd.f32 0.0, %v5534
        %5536 = vmatmul.bf16.gmra.mxu0 %v4531
        %v5537 = vpop.f32.mrf.mxu0
        %v5538 = vadd.f32 0.0, %v5537
        %v5539 = vpop.f32.mrf.mxu0
        %v5540 = vadd.f32 0.0, %v5539
        %5541 = vmatmul.bf16.gmra.mxu0 %v4532
        %v5542 = vpop.f32.mrf.mxu0
        %v5543 = vadd.f32 0.0, %v5542
        %v5544 = vpop.f32.mrf.mxu0
        %v5545 = vadd.f32 0.0, %v5544
        %5546 = vmatmul.bf16.gmra.mxu0 %v4533
        %v5547 = vpop.f32.mrf.mxu0
        %v5548 = vadd.f32 0.0, %v5547
        %v5549 = vpop.f32.mrf.mxu0
        %v5550 = vadd.f32 0.0, %v5549
        %5551 = vmatmul.bf16.gmra.mxu0 %v4534
        %v5552 = vpop.f32.mrf.mxu0
        %v5553 = vadd.f32 0.0, %v5552
        %v5554 = vpop.f32.mrf.mxu0
        %v5555 = vadd.f32 0.0, %v5554
        %5556 = vmatmul.bf16.gmra.mxu0 %v4535
        %v5557 = vpop.f32.mrf.mxu0
        %v5558 = vadd.f32 0.0, %v5557
        %v5559 = vpop.f32.mrf.mxu0
        %v5560 = vadd.f32 0.0, %v5559
        %5561 = vmatmul.bf16.gmra.mxu0 %v4536
        %v5562 = vpop.f32.mrf.mxu0
        %v5563 = vadd.f32 0.0, %v5562
        %v5564 = vpop.f32.mrf.mxu0
        %v5565 = vadd.f32 0.0, %v5564
        %5566 = vmatmul.bf16.gmra.mxu0 %v4537
        %v5567 = vpop.f32.mrf.mxu0
        %v5568 = vadd.f32 0.0, %v5567
        %v5569 = vpop.f32.mrf.mxu0
        %v5570 = vadd.f32 0.0, %v5569
        %5571 = vdwg.mxu0
        %5572 = vmatpush.bf16.msra.mxu0 %v5370
        %5573 = vmatpush.bf16.msra.mxu0 %v5369
        %5574 = vmatpush.bf16.msra.mxu0 %v5368
        %5575 = vmatpush.bf16.msra.mxu0 %v5367
        %5576 = vmatpush.bf16.msra.mxu0 %v5366
        %5577 = vmatpush.bf16.msra.mxu0 %v5365
        %5578 = vmatpush.bf16.msra.mxu0 %v5364
        %5579 = vmatpush.bf16.msra.mxu0 %v5363
        %5580 = vmatmul.bf16.gmra.mxu0 %v4677
        %v5581 = vpop.f32.mrf.mxu0
        %v5582 = vadd.f32 %v5413, %v5581
        %v5583 = vpop.f32.mrf.mxu0
        %v5584 = vadd.f32 %v5415, %v5583
        %5585 = vmatmul.bf16.gmra.mxu0 %v4689
        %v5586 = vpop.f32.mrf.mxu0
        %v5587 = vadd.f32 %v5418, %v5586
        %v5588 = vpop.f32.mrf.mxu0
        %v5589 = vadd.f32 %v5420, %v5588
        %5590 = vmatmul.bf16.gmra.mxu0 %v4701
        %v5591 = vpop.f32.mrf.mxu0
        %v5592 = vadd.f32 %v5423, %v5591
        %v5593 = vpop.f32.mrf.mxu0
        %v5594 = vadd.f32 %v5425, %v5593
        %5595 = vmatmul.bf16.gmra.mxu0 %v4713
        %v5596 = vpop.f32.mrf.mxu0
        %v5597 = vadd.f32 %v5428, %v5596
        %v5598 = vpop.f32.mrf.mxu0
        %v5599 = vadd.f32 %v5430, %v5598
        %5600 = vmatmul.bf16.gmra.mxu0 %v4725
        %v5601 = vpop.f32.mrf.mxu0
        %v5602 = vadd.f32 %v5433, %v5601
        %v5603 = vpop.f32.mrf.mxu0
        %v5604 = vadd.f32 %v5435, %v5603
        %5605 = vmatmul.bf16.gmra.mxu0 %v4737
        %v5606 = vpop.f32.mrf.mxu0
        %v5607 = vadd.f32 %v5438, %v5606
        %v5608 = vpop.f32.mrf.mxu0
        %v5609 = vadd.f32 %v5440, %v5608
        %5610 = vmatmul.bf16.gmra.mxu0 %v4749
        %v5611 = vpop.f32.mrf.mxu0
        %v5612 = vadd.f32 %v5443, %v5611
        %v5613 = vpop.f32.mrf.mxu0
        %v5614 = vadd.f32 %v5445, %v5613
        %5615 = vmatmul.bf16.gmra.mxu0 %v4761
        %v5616 = vpop.f32.mrf.mxu0
        %v5617 = vadd.f32 %v5448, %v5616
        %v5618 = vpop.f32.mrf.mxu0
        %v5619 = vadd.f32 %v5450, %v5618
        %5620 = vmatmul.bf16.gmra.mxu0 %v4773
        %v5621 = vpop.f32.mrf.mxu0
        %v5622 = vadd.f32 %v5453, %v5621
        %v5623 = vpop.f32.mrf.mxu0
        %v5624 = vadd.f32 %v5455, %v5623
        %5625 = vmatmul.bf16.gmra.mxu0 %v4785
        %v5626 = vpop.f32.mrf.mxu0
        %v5627 = vadd.f32 %v5458, %v5626
        %v5628 = vpop.f32.mrf.mxu0
        %v5629 = vadd.f32 %v5460, %v5628
        %5630 = vmatmul.bf16.gmra.mxu0 %v4797
        %v5631 = vpop.f32.mrf.mxu0
        %v5632 = vadd.f32 %v5463, %v5631
        %v5633 = vpop.f32.mrf.mxu0
        %v5634 = vadd.f32 %v5465, %v5633
        %5635 = vmatmul.bf16.gmra.mxu0 %v4809
        %v5636 = vpop.f32.mrf.mxu0
        %v5637 = vadd.f32 %v5468, %v5636
        %v5638 = vpop.f32.mrf.mxu0
        %v5639 = vadd.f32 %v5470, %v5638
        %5640 = vmatmul.bf16.gmra.mxu0 %v4821
        %v5641 = vpop.f32.mrf.mxu0
        %v5642 = vadd.f32 %v5473, %v5641
        %v5643 = vpop.f32.mrf.mxu0
        %v5644 = vadd.f32 %v5475, %v5643
        %5645 = vmatmul.bf16.gmra.mxu0 %v4833
        %v5646 = vpop.f32.mrf.mxu0
        %v5647 = vadd.f32 %v5478, %v5646
        %v5648 = vpop.f32.mrf.mxu0
        %v5649 = vadd.f32 %v5480, %v5648
        %5650 = vmatmul.bf16.gmra.mxu0 %v4845
        %v5651 = vpop.f32.mrf.mxu0
        %v5652 = vadd.f32 %v5483, %v5651
        %v5653 = vpop.f32.mrf.mxu0
        %v5654 = vadd.f32 %v5485, %v5653
        %5655 = vmatmul.bf16.gmra.mxu0 %v4857
        %v5656 = vpop.f32.mrf.mxu0
        %v5657 = vadd.f32 %v5488, %v5656
        %v5658 = vpop.f32.mrf.mxu0
        %v5659 = vadd.f32 %v5490, %v5658
        %5660 = vmatmul.bf16.gmra.mxu0 %v4869
        %v5661 = vpop.f32.mrf.mxu0
        %v5662 = vadd.f32 %v5493, %v5661
        %v5663 = vpop.f32.mrf.mxu0
        %v5664 = vadd.f32 %v5495, %v5663
        %5665 = vmatmul.bf16.gmra.mxu0 %v4881
        %v5666 = vpop.f32.mrf.mxu0
        %v5667 = vadd.f32 %v5498, %v5666
        %v5668 = vpop.f32.mrf.mxu0
        %v5669 = vadd.f32 %v5500, %v5668
        %5670 = vmatmul.bf16.gmra.mxu0 %v4893
        %v5671 = vpop.f32.mrf.mxu0
        %v5672 = vadd.f32 %v5503, %v5671
        %v5673 = vpop.f32.mrf.mxu0
        %v5674 = vadd.f32 %v5505, %v5673
        %5675 = vmatmul.bf16.gmra.mxu0 %v4905
        %v5676 = vpop.f32.mrf.mxu0
        %v5677 = vadd.f32 %v5508, %v5676
        %v5678 = vpop.f32.mrf.mxu0
        %v5679 = vadd.f32 %v5510, %v5678
        %5680 = vmatmul.bf16.gmra.mxu0 %v4917
        %v5681 = vpop.f32.mrf.mxu0
        %v5682 = vadd.f32 %v5513, %v5681
        %v5683 = vpop.f32.mrf.mxu0
        %v5684 = vadd.f32 %v5515, %v5683
        %5685 = vmatmul.bf16.gmra.mxu0 %v4929
        %v5686 = vpop.f32.mrf.mxu0
        %v5687 = vadd.f32 %v5518, %v5686
        %v5688 = vpop.f32.mrf.mxu0
        %v5689 = vadd.f32 %v5520, %v5688
        %5690 = vmatmul.bf16.gmra.mxu0 %v4941
        %v5691 = vpop.f32.mrf.mxu0
        %v5692 = vadd.f32 %v5523, %v5691
        %v5693 = vpop.f32.mrf.mxu0
        %v5694 = vadd.f32 %v5525, %v5693
        %5695 = vmatmul.bf16.gmra.mxu0 %v4953
        %v5696 = vpop.f32.mrf.mxu0
        %v5697 = vadd.f32 %v5528, %v5696
        %v5698 = vpop.f32.mrf.mxu0
        %v5699 = vadd.f32 %v5530, %v5698
        %5700 = vmatmul.bf16.gmra.mxu0 %v4965
        %v5701 = vpop.f32.mrf.mxu0
        %v5702 = vadd.f32 %v5533, %v5701
        %v5703 = vpop.f32.mrf.mxu0
        %v5704 = vadd.f32 %v5535, %v5703
        %5705 = vmatmul.bf16.gmra.mxu0 %v4977
        %v5706 = vpop.f32.mrf.mxu0
        %v5707 = vadd.f32 %v5538, %v5706
        %v5708 = vpop.f32.mrf.mxu0
        %v5709 = vadd.f32 %v5540, %v5708
        %5710 = vmatmul.bf16.gmra.mxu0 %v4989
        %v5711 = vpop.f32.mrf.mxu0
        %v5712 = vadd.f32 %v5543, %v5711
        %v5713 = vpop.f32.mrf.mxu0
        %v5714 = vadd.f32 %v5545, %v5713
        %5715 = vmatmul.bf16.gmra.mxu0 %v5001
        %v5716 = vpop.f32.mrf.mxu0
        %v5717 = vadd.f32 %v5548, %v5716
        %v5718 = vpop.f32.mrf.mxu0
        %v5719 = vadd.f32 %v5550, %v5718
        %5720 = vmatmul.bf16.gmra.mxu0 %v5013
        %v5721 = vpop.f32.mrf.mxu0
        %v5722 = vadd.f32 %v5553, %v5721
        %v5723 = vpop.f32.mrf.mxu0
        %v5724 = vadd.f32 %v5555, %v5723
        %5725 = vmatmul.bf16.gmra.mxu0 %v5025
        %v5726 = vpop.f32.mrf.mxu0
        %v5727 = vadd.f32 %v5558, %v5726
        %v5728 = vpop.f32.mrf.mxu0
        %v5729 = vadd.f32 %v5560, %v5728
        %5730 = vmatmul.bf16.gmra.mxu0 %v5037
        %v5731 = vpop.f32.mrf.mxu0
        %v5732 = vadd.f32 %v5563, %v5731
        %v5733 = vpop.f32.mrf.mxu0
        %v5734 = vadd.f32 %v5565, %v5733
        %5735 = vmatmul.bf16.gmra.mxu0 %v5049
        %v5736 = vpop.f32.mrf.mxu0
        %v5737 = vadd.f32 %v5568, %v5736
        %v5738 = vpop.f32.mrf.mxu0
        %v5739 = vadd.f32 %v5570, %v5738
        %5740 = vdwg.mxu0
        %5741 = vmatpush.bf16.msra.mxu0 %v5378
        %5742 = vmatpush.bf16.msra.mxu0 %v5377
        %5743 = vmatpush.bf16.msra.mxu0 %v5376
        %5744 = vmatpush.bf16.msra.mxu0 %v5375
        %5745 = vmatpush.bf16.msra.mxu0 %v5374
        %5746 = vmatpush.bf16.msra.mxu0 %v5373
        %5747 = vmatpush.bf16.msra.mxu0 %v5372
        %5748 = vmatpush.bf16.msra.mxu0 %v5371
        %5749 = vmatmul.bf16.gmra.mxu0 %v5084
        %v5750 = vpop.f32.mrf.mxu0
        %v5751 = vadd.f32 %v5582, %v5750
        %v5752 = vpop.f32.mrf.mxu0
        %v5753 = vadd.f32 %v5584, %v5752
        %5754 = vmatmul.bf16.gmra.mxu0 %v5087
        %v5755 = vpop.f32.mrf.mxu0
        %v5756 = vadd.f32 %v5587, %v5755
        %v5757 = vpop.f32.mrf.mxu0
        %v5758 = vadd.f32 %v5589, %v5757
        %5759 = vmatmul.bf16.gmra.mxu0 %v5090
        %v5760 = vpop.f32.mrf.mxu0
        %v5761 = vadd.f32 %v5592, %v5760
        %v5762 = vpop.f32.mrf.mxu0
        %v5763 = vadd.f32 %v5594, %v5762
        %5764 = vmatmul.bf16.gmra.mxu0 %v5093
        %v5765 = vpop.f32.mrf.mxu0
        %v5766 = vadd.f32 %v5597, %v5765
        %v5767 = vpop.f32.mrf.mxu0
        %v5768 = vadd.f32 %v5599, %v5767
        %5769 = vmatmul.bf16.gmra.mxu0 %v5096
        %v5770 = vpop.f32.mrf.mxu0
        %v5771 = vadd.f32 %v5602, %v5770
        %v5772 = vpop.f32.mrf.mxu0
        %v5773 = vadd.f32 %v5604, %v5772
        %5774 = vmatmul.bf16.gmra.mxu0 %v5099
        %v5775 = vpop.f32.mrf.mxu0
        %v5776 = vadd.f32 %v5607, %v5775
        %v5777 = vpop.f32.mrf.mxu0
        %v5778 = vadd.f32 %v5609, %v5777
        %5779 = vmatmul.bf16.gmra.mxu0 %v5102
        %v5780 = vpop.f32.mrf.mxu0
        %v5781 = vadd.f32 %v5612, %v5780
        %v5782 = vpop.f32.mrf.mxu0
        %v5783 = vadd.f32 %v5614, %v5782
        %5784 = vmatmul.bf16.gmra.mxu0 %v5105
        %v5785 = vpop.f32.mrf.mxu0
        %v5786 = vadd.f32 %v5617, %v5785
        %v5787 = vpop.f32.mrf.mxu0
        %v5788 = vadd.f32 %v5619, %v5787
        %5789 = vmatmul.bf16.gmra.mxu0 %v5108
        %v5790 = vpop.f32.mrf.mxu0
        %v5791 = vadd.f32 %v5622, %v5790
        %v5792 = vpop.f32.mrf.mxu0
        %v5793 = vadd.f32 %v5624, %v5792
        %5794 = vmatmul.bf16.gmra.mxu0 %v5111
        %v5795 = vpop.f32.mrf.mxu0
        %v5796 = vadd.f32 %v5627, %v5795
        %v5797 = vpop.f32.mrf.mxu0
        %v5798 = vadd.f32 %v5629, %v5797
        %5799 = vmatmul.bf16.gmra.mxu0 %v5114
        %v5800 = vpop.f32.mrf.mxu0
        %v5801 = vadd.f32 %v5632, %v5800
        %v5802 = vpop.f32.mrf.mxu0
        %v5803 = vadd.f32 %v5634, %v5802
        %5804 = vmatmul.bf16.gmra.mxu0 %v5117
        %v5805 = vpop.f32.mrf.mxu0
        %v5806 = vadd.f32 %v5637, %v5805
        %v5807 = vpop.f32.mrf.mxu0
        %v5808 = vadd.f32 %v5639, %v5807
        %5809 = vmatmul.bf16.gmra.mxu0 %v5120
        %v5810 = vpop.f32.mrf.mxu0
        %v5811 = vadd.f32 %v5642, %v5810
        %v5812 = vpop.f32.mrf.mxu0
        %v5813 = vadd.f32 %v5644, %v5812
        %5814 = vmatmul.bf16.gmra.mxu0 %v5123
        %v5815 = vpop.f32.mrf.mxu0
        %v5816 = vadd.f32 %v5647, %v5815
        %v5817 = vpop.f32.mrf.mxu0
        %v5818 = vadd.f32 %v5649, %v5817
        %5819 = vmatmul.bf16.gmra.mxu0 %v5126
        %v5820 = vpop.f32.mrf.mxu0
        %v5821 = vadd.f32 %v5652, %v5820
        %v5822 = vpop.f32.mrf.mxu0
        %v5823 = vadd.f32 %v5654, %v5822
        %5824 = vmatmul.bf16.gmra.mxu0 %v5129
        %v5825 = vpop.f32.mrf.mxu0
        %v5826 = vadd.f32 %v5657, %v5825
        %v5827 = vpop.f32.mrf.mxu0
        %v5828 = vadd.f32 %v5659, %v5827
        %5829 = vmatmul.bf16.gmra.mxu0 %v5132
        %v5830 = vpop.f32.mrf.mxu0
        %v5831 = vadd.f32 %v5662, %v5830
        %v5832 = vpop.f32.mrf.mxu0
        %v5833 = vadd.f32 %v5664, %v5832
        %5834 = vmatmul.bf16.gmra.mxu0 %v5135
        %v5835 = vpop.f32.mrf.mxu0
        %v5836 = vadd.f32 %v5667, %v5835
        %v5837 = vpop.f32.mrf.mxu0
        %v5838 = vadd.f32 %v5669, %v5837
        %5839 = vmatmul.bf16.gmra.mxu0 %v5138
        %v5840 = vpop.f32.mrf.mxu0
        %v5841 = vadd.f32 %v5672, %v5840
        %v5842 = vpop.f32.mrf.mxu0
        %v5843 = vadd.f32 %v5674, %v5842
        %5844 = vmatmul.bf16.gmra.mxu0 %v5141
        %v5845 = vpop.f32.mrf.mxu0
        %v5846 = vadd.f32 %v5677, %v5845
        %v5847 = vpop.f32.mrf.mxu0
        %v5848 = vadd.f32 %v5679, %v5847
        %5849 = vmatmul.bf16.gmra.mxu0 %v5144
        %v5850 = vpop.f32.mrf.mxu0
        %v5851 = vadd.f32 %v5682, %v5850
        %v5852 = vpop.f32.mrf.mxu0
        %v5853 = vadd.f32 %v5684, %v5852
        %5854 = vmatmul.bf16.gmra.mxu0 %v5147
        %v5855 = vpop.f32.mrf.mxu0
        %v5856 = vadd.f32 %v5687, %v5855
        %v5857 = vpop.f32.mrf.mxu0
        %v5858 = vadd.f32 %v5689, %v5857
        %5859 = vmatmul.bf16.gmra.mxu0 %v5150
        %v5860 = vpop.f32.mrf.mxu0
        %v5861 = vadd.f32 %v5692, %v5860
        %v5862 = vpop.f32.mrf.mxu0
        %v5863 = vadd.f32 %v5694, %v5862
        %5864 = vmatmul.bf16.gmra.mxu0 %v5153
        %v5865 = vpop.f32.mrf.mxu0
        %v5866 = vadd.f32 %v5697, %v5865
        %v5867 = vpop.f32.mrf.mxu0
        %v5868 = vadd.f32 %v5699, %v5867
        %5869 = vmatmul.bf16.gmra.mxu0 %v5156
        %v5870 = vpop.f32.mrf.mxu0
        %v5871 = vadd.f32 %v5702, %v5870
        %v5872 = vpop.f32.mrf.mxu0
        %v5873 = vadd.f32 %v5704, %v5872
        %5874 = vmatmul.bf16.gmra.mxu0 %v5159
        %v5875 = vpop.f32.mrf.mxu0
        %v5876 = vadd.f32 %v5707, %v5875
        %v5877 = vpop.f32.mrf.mxu0
        %v5878 = vadd.f32 %v5709, %v5877
        %5879 = vmatmul.bf16.gmra.mxu0 %v5162
        %v5880 = vpop.f32.mrf.mxu0
        %v5881 = vadd.f32 %v5712, %v5880
        %v5882 = vpop.f32.mrf.mxu0
        %v5883 = vadd.f32 %v5714, %v5882
        %5884 = vmatmul.bf16.gmra.mxu0 %v5165
        %v5885 = vpop.f32.mrf.mxu0
        %v5886 = vadd.f32 %v5717, %v5885
        %v5887 = vpop.f32.mrf.mxu0
        %v5888 = vadd.f32 %v5719, %v5887
        %5889 = vmatmul.bf16.gmra.mxu0 %v5168
        %v5890 = vpop.f32.mrf.mxu0
        %v5891 = vadd.f32 %v5722, %v5890
        %v5892 = vpop.f32.mrf.mxu0
        %v5893 = vadd.f32 %v5724, %v5892
        %5894 = vmatmul.bf16.gmra.mxu0 %v5171
        %v5895 = vpop.f32.mrf.mxu0
        %v5896 = vadd.f32 %v5727, %v5895
        %v5897 = vpop.f32.mrf.mxu0
        %v5898 = vadd.f32 %v5729, %v5897
        %5899 = vmatmul.bf16.gmra.mxu0 %v5174
        %v5900 = vpop.f32.mrf.mxu0
        %v5901 = vadd.f32 %v5732, %v5900
        %v5902 = vpop.f32.mrf.mxu0
        %v5903 = vadd.f32 %v5734, %v5902
        %5904 = vmatmul.bf16.gmra.mxu0 %v5177
        %v5905 = vpop.f32.mrf.mxu0
        %v5906 = vadd.f32 %v5737, %v5905
        %v5907 = vpop.f32.mrf.mxu0
        %v5908 = vadd.f32 %v5739, %v5907
        %5909 = vdwg.mxu0
        %v5910 = vadd.f32 %v4026, %v5751
        %v5911 = vadd.f32 %v4028, %v5753
        %v5912 = vadd.f32 %v4031, %v5756
        %v5913 = vadd.f32 %v4033, %v5758
        %v5914 = vadd.f32 %v4036, %v5761
        %v5915 = vadd.f32 %v4038, %v5763
        %v5916 = vadd.f32 %v4041, %v5766
        %v5917 = vadd.f32 %v4043, %v5768
        %v5918 = vadd.f32 %v4046, %v5771
        %v5919 = vadd.f32 %v4048, %v5773
        %v5920 = vadd.f32 %v4051, %v5776
        %v5921 = vadd.f32 %v4053, %v5778
        %v5922 = vadd.f32 %v4056, %v5781
        %v5923 = vadd.f32 %v4058, %v5783
        %v5924 = vadd.f32 %v4061, %v5786
        %v5925 = vadd.f32 %v4063, %v5788
        %v5926 = vadd.f32 %v4066, %v5791
        %v5927 = vadd.f32 %v4068, %v5793
        %v5928 = vadd.f32 %v4071, %v5796
        %v5929 = vadd.f32 %v4073, %v5798
        %v5930 = vadd.f32 %v4076, %v5801
        %v5931 = vadd.f32 %v4078, %v5803
        %v5932 = vadd.f32 %v4081, %v5806
        %v5933 = vadd.f32 %v4083, %v5808
        %v5934 = vadd.f32 %v4086, %v5811
        %v5935 = vadd.f32 %v4088, %v5813
        %v5936 = vadd.f32 %v4091, %v5816
        %v5937 = vadd.f32 %v4093, %v5818
        %v5938 = vadd.f32 %v4096, %v5821
        %v5939 = vadd.f32 %v4098, %v5823
        %v5940 = vadd.f32 %v4101, %v5826
        %v5941 = vadd.f32 %v4103, %v5828
        %v5942 = vadd.f32 %v4106, %v5831
        %v5943 = vadd.f32 %v4108, %v5833
        %v5944 = vadd.f32 %v4111, %v5836
        %v5945 = vadd.f32 %v4113, %v5838
        %v5946 = vadd.f32 %v4116, %v5841
        %v5947 = vadd.f32 %v4118, %v5843
        %v5948 = vadd.f32 %v4121, %v5846
        %v5949 = vadd.f32 %v4123, %v5848
        %v5950 = vadd.f32 %v4126, %v5851
        %v5951 = vadd.f32 %v4128, %v5853
        %v5952 = vadd.f32 %v4131, %v5856
        %v5953 = vadd.f32 %v4133, %v5858
        %v5954 = vadd.f32 %v4136, %v5861
        %v5955 = vadd.f32 %v4138, %v5863
        %v5956 = vadd.f32 %v4141, %v5866
        %v5957 = vadd.f32 %v4143, %v5868
        %v5958 = vadd.f32 %v4146, %v5871
        %v5959 = vadd.f32 %v4148, %v5873
        %v5960 = vadd.f32 %v4151, %v5876
        %v5961 = vadd.f32 %v4153, %v5878
        %v5962 = vadd.f32 %v4156, %v5881
        %v5963 = vadd.f32 %v4158, %v5883
        %v5964 = vadd.f32 %v4161, %v5886
        %v5965 = vadd.f32 %v4163, %v5888
        %v5966 = vadd.f32 %v4166, %v5891
        %v5967 = vadd.f32 %v4168, %v5893
        %v5968 = vadd.f32 %v4171, %v5896
        %v5969 = vadd.f32 %v4173, %v5898
        %v5970 = vadd.f32 %v4176, %v5901
        %v5971 = vadd.f32 %v4178, %v5903
        %v5972 = vadd.f32 %v4181, %v5906
        %v5973 = vadd.f32 %v4183, %v5908
        %v5974 = vld [vmem:[%s449] sm:$0x1]
        %v5976 = vperm.slane %v5974, 0
        %v5978 = vadd.f32 %v5910, %v5976
        %v5979 = vadd.f32 %v5911, %v5976
        %v5980 = vadd.f32 %v5912, %v5976
        %v5981 = vadd.f32 %v5913, %v5976
        %v5982 = vadd.f32 %v5914, %v5976
        %v5983 = vadd.f32 %v5915, %v5976
        %v5984 = vadd.f32 %v5916, %v5976
        %v5985 = vadd.f32 %v5917, %v5976
        %v5986 = vadd.f32 %v5918, %v5976
        %v5987 = vadd.f32 %v5919, %v5976
        %v5988 = vadd.f32 %v5920, %v5976
        %v5989 = vadd.f32 %v5921, %v5976
        %v5990 = vadd.f32 %v5922, %v5976
        %v5991 = vadd.f32 %v5923, %v5976
        %v5992 = vadd.f32 %v5924, %v5976
        %v5993 = vadd.f32 %v5925, %v5976
        %v5994 = vadd.f32 %v5926, %v5976
        %v5995 = vadd.f32 %v5927, %v5976
        %v5996 = vadd.f32 %v5928, %v5976
        %v5997 = vadd.f32 %v5929, %v5976
        %v5998 = vadd.f32 %v5930, %v5976
        %v5999 = vadd.f32 %v5931, %v5976
        %v6000 = vadd.f32 %v5932, %v5976
        %v6001 = vadd.f32 %v5933, %v5976
        %v6002 = vadd.f32 %v5934, %v5976
        %v6003 = vadd.f32 %v5935, %v5976
        %v6004 = vadd.f32 %v5936, %v5976
        %v6005 = vadd.f32 %v5937, %v5976
        %v6006 = vadd.f32 %v5938, %v5976
        %v6007 = vadd.f32 %v5939, %v5976
        %v6008 = vadd.f32 %v5940, %v5976
        %v6009 = vadd.f32 %v5941, %v5976
        %v6010 = vadd.f32 %v5942, %v5976
        %v6011 = vadd.f32 %v5943, %v5976
        %v6012 = vadd.f32 %v5944, %v5976
        %v6013 = vadd.f32 %v5945, %v5976
        %v6014 = vadd.f32 %v5946, %v5976
        %v6015 = vadd.f32 %v5947, %v5976
        %v6016 = vadd.f32 %v5948, %v5976
        %v6017 = vadd.f32 %v5949, %v5976
        %v6018 = vadd.f32 %v5950, %v5976
        %v6019 = vadd.f32 %v5951, %v5976
        %v6020 = vadd.f32 %v5952, %v5976
        %v6021 = vadd.f32 %v5953, %v5976
        %v6022 = vadd.f32 %v5954, %v5976
        %v6023 = vadd.f32 %v5955, %v5976
        %v6024 = vadd.f32 %v5956, %v5976
        %v6025 = vadd.f32 %v5957, %v5976
        %v6026 = vadd.f32 %v5958, %v5976
        %v6027 = vadd.f32 %v5959, %v5976
        %v6028 = vadd.f32 %v5960, %v5976
        %v6029 = vadd.f32 %v5961, %v5976
        %v6030 = vadd.f32 %v5962, %v5976
        %v6031 = vadd.f32 %v5963, %v5976
        %v6032 = vadd.f32 %v5964, %v5976
        %v6033 = vadd.f32 %v5965, %v5976
        %v6034 = vadd.f32 %v5966, %v5976
        %v6035 = vadd.f32 %v5967, %v5976
        %v6036 = vadd.f32 %v5968, %v5976
        %v6037 = vadd.f32 %v5969, %v5976
        %v6038 = vadd.f32 %v5970, %v5976
        %v6039 = vadd.f32 %v5971, %v5976
        %v6040 = vadd.f32 %v5972, %v5976
        %v6041 = vadd.f32 %v5973, %v5976
        %v6042 = vpack.c.bf16 %v5978, %v5978
        %v6043 = vpack.c.bf16 %v5979, %v5979
        %v6044 = vpack.c.bf16 %v5980, %v5980
        %v6045 = vpack.c.bf16 %v5981, %v5981
        %v6046 = vpack.c.bf16 %v5982, %v5982
        %v6047 = vpack.c.bf16 %v5983, %v5983
        %v6048 = vpack.c.bf16 %v5984, %v5984
        %v6049 = vpack.c.bf16 %v5985, %v5985
        %v6050 = vpack.c.bf16 %v5986, %v5986
        %v6051 = vpack.c.bf16 %v5987, %v5987
        %v6052 = vpack.c.bf16 %v5988, %v5988
        %v6053 = vpack.c.bf16 %v5989, %v5989
        %v6054 = vpack.c.bf16 %v5990, %v5990
        %v6055 = vpack.c.bf16 %v5991, %v5991
        %v6056 = vpack.c.bf16 %v5992, %v5992
        %v6057 = vpack.c.bf16 %v5993, %v5993
        %v6058 = vpack.c.bf16 %v5994, %v5994
        %v6059 = vpack.c.bf16 %v5995, %v5995
        %v6060 = vpack.c.bf16 %v5996, %v5996
        %v6061 = vpack.c.bf16 %v5997, %v5997
        %v6062 = vpack.c.bf16 %v5998, %v5998
        %v6063 = vpack.c.bf16 %v5999, %v5999
        %v6064 = vpack.c.bf16 %v6000, %v6000
        %v6065 = vpack.c.bf16 %v6001, %v6001
        %v6066 = vpack.c.bf16 %v6002, %v6002
        %v6067 = vpack.c.bf16 %v6003, %v6003
        %v6068 = vpack.c.bf16 %v6004, %v6004
        %v6069 = vpack.c.bf16 %v6005, %v6005
        %v6070 = vpack.c.bf16 %v6006, %v6006
        %v6071 = vpack.c.bf16 %v6007, %v6007
        %v6072 = vpack.c.bf16 %v6008, %v6008
        %v6073 = vpack.c.bf16 %v6009, %v6009
        %v6074 = vpack.c.bf16 %v6010, %v6010
        %v6075 = vpack.c.bf16 %v6011, %v6011
        %v6076 = vpack.c.bf16 %v6012, %v6012
        %v6077 = vpack.c.bf16 %v6013, %v6013
        %v6078 = vpack.c.bf16 %v6014, %v6014
        %v6079 = vpack.c.bf16 %v6015, %v6015
        %v6080 = vpack.c.bf16 %v6016, %v6016
        %v6081 = vpack.c.bf16 %v6017, %v6017
        %v6082 = vpack.c.bf16 %v6018, %v6018
        %v6083 = vpack.c.bf16 %v6019, %v6019
        %v6084 = vpack.c.bf16 %v6020, %v6020
        %v6085 = vpack.c.bf16 %v6021, %v6021
        %v6086 = vpack.c.bf16 %v6022, %v6022
        %v6087 = vpack.c.bf16 %v6023, %v6023
        %v6088 = vpack.c.bf16 %v6024, %v6024
        %v6089 = vpack.c.bf16 %v6025, %v6025
        %v6090 = vpack.c.bf16 %v6026, %v6026
        %v6091 = vpack.c.bf16 %v6027, %v6027
        %v6092 = vpack.c.bf16 %v6028, %v6028
        %v6093 = vpack.c.bf16 %v6029, %v6029
        %v6094 = vpack.c.bf16 %v6030, %v6030
        %v6095 = vpack.c.bf16 %v6031, %v6031
        %v6096 = vpack.c.bf16 %v6032, %v6032
        %v6097 = vpack.c.bf16 %v6033, %v6033
        %v6098 = vpack.c.bf16 %v6034, %v6034
        %v6099 = vpack.c.bf16 %v6035, %v6035
        %v6100 = vpack.c.bf16 %v6036, %v6036
        %v6101 = vpack.c.bf16 %v6037, %v6037
        %v6102 = vpack.c.bf16 %v6038, %v6038
        %v6103 = vpack.c.bf16 %v6039, %v6039
        %v6104 = vpack.c.bf16 %v6040, %v6040
        %v6105 = vpack.c.bf16 %v6041, %v6041
        %6106 = vst [vmem:[%s437] sm:$0xf] %v6042
        %6107 = vst [vmem:[%s437 + $0x4] sm:$0xf] %v6043
        %6108 = vst [vmem:[%s437 + $0x8] sm:$0xf] %v6044
        %6109 = vst [vmem:[%s437 + $0xc] sm:$0xf] %v6045
        %6110 = vst [vmem:[%s437 + $0x10] sm:$0xf] %v6046
        %6111 = vst [vmem:[%s437 + $0x14] sm:$0xf] %v6047
        %6112 = vst [vmem:[%s437 + $0x18] sm:$0xf] %v6048
        %6113 = vst [vmem:[%s437 + $0x1c] sm:$0xf] %v6049
        %6114 = vst [vmem:[%s437 + $0x20] sm:$0xf] %v6050
        %6115 = vst [vmem:[%s437 + $0x24] sm:$0xf] %v6051
        %6116 = vst [vmem:[%s437 + $0x28] sm:$0xf] %v6052
        %6117 = vst [vmem:[%s437 + $0x2c] sm:$0xf] %v6053
        %6118 = vst [vmem:[%s437 + $0x30] sm:$0xf] %v6054
        %6119 = vst [vmem:[%s437 + $0x34] sm:$0xf] %v6055
        %6120 = vst [vmem:[%s437 + $0x38] sm:$0xf] %v6056
        %6121 = vst [vmem:[%s437 + $0x3c] sm:$0xf] %v6057
        %6122 = vst [vmem:[%s437 + $0x40] sm:$0xf] %v6058
        %6123 = vst [vmem:[%s437 + $0x44] sm:$0xf] %v6059
        %6124 = vst [vmem:[%s437 + $0x48] sm:$0xf] %v6060
        %6125 = vst [vmem:[%s437 + $0x4c] sm:$0xf] %v6061
        %6126 = vst [vmem:[%s437 + $0x50] sm:$0xf] %v6062
        %6127 = vst [vmem:[%s437 + $0x54] sm:$0xf] %v6063
        %6128 = vst [vmem:[%s437 + $0x58] sm:$0xf] %v6064
        %6129 = vst [vmem:[%s437 + $0x5c] sm:$0xf] %v6065
        %6130 = vst [vmem:[%s437 + $0x60] sm:$0xf] %v6066
        %6131 = vst [vmem:[%s437 + $0x64] sm:$0xf] %v6067
        %6132 = vst [vmem:[%s437 + $0x68] sm:$0xf] %v6068
        %6133 = vst [vmem:[%s437 + $0x6c] sm:$0xf] %v6069
        %6134 = vst [vmem:[%s437 + $0x70] sm:$0xf] %v6070
        %6135 = vst [vmem:[%s437 + $0x74] sm:$0xf] %v6071
        %6136 = vst [vmem:[%s437 + $0x78] sm:$0xf] %v6072
        %6137 = vst [vmem:[%s437 + $0x7c] sm:$0xf] %v6073
        %6138 = vst [vmem:[%s437 + $0x80] sm:$0xf] %v6074
        %6139 = vst [vmem:[%s437 + $0x84] sm:$0xf] %v6075
        %6140 = vst [vmem:[%s437 + $0x88] sm:$0xf] %v6076
        %6141 = vst [vmem:[%s437 + $0x8c] sm:$0xf] %v6077
        %6142 = vst [vmem:[%s437 + $0x90] sm:$0xf] %v6078
        %6143 = vst [vmem:[%s437 + $0x94] sm:$0xf] %v6079
        %6144 = vst [vmem:[%s437 + $0x98] sm:$0xf] %v6080
        %6145 = vst [vmem:[%s437 + $0x9c] sm:$0xf] %v6081
        %6146 = vst [vmem:[%s437 + $0xa0] sm:$0xf] %v6082
        %6147 = vst [vmem:[%s437 + $0xa4] sm:$0xf] %v6083
        %6148 = vst [vmem:[%s437 + $0xa8] sm:$0xf] %v6084
        %6149 = vst [vmem:[%s437 + $0xac] sm:$0xf] %v6085
        %6150 = vst [vmem:[%s437 + $0xb0] sm:$0xf] %v6086
        %6151 = vst [vmem:[%s437 + $0xb4] sm:$0xf] %v6087
        %6152 = vst [vmem:[%s437 + $0xb8] sm:$0xf] %v6088
        %6153 = vst [vmem:[%s437 + $0xbc] sm:$0xf] %v6089
        %6154 = vst [vmem:[%s437 + $0xc0] sm:$0xf] %v6090
        %6155 = vst [vmem:[%s437 + $0xc4] sm:$0xf] %v6091
        %6156 = vst [vmem:[%s437 + $0xc8] sm:$0xf] %v6092
        %6157 = vst [vmem:[%s437 + $0xcc] sm:$0xf] %v6093
        %6158 = vst [vmem:[%s437 + $0xd0] sm:$0xf] %v6094
        %6159 = vst [vmem:[%s437 + $0xd4] sm:$0xf] %v6095
        %6160 = vst [vmem:[%s437 + $0xd8] sm:$0xf] %v6096
        %6161 = vst [vmem:[%s437 + $0xdc] sm:$0xf] %v6097
        %6162 = vst [vmem:[%s437 + $0xe0] sm:$0xf] %v6098
        %6163 = vst [vmem:[%s437 + $0xe4] sm:$0xf] %v6099
        %6164 = vst [vmem:[%s437 + $0xe8] sm:$0xf] %v6100
        %6165 = vst [vmem:[%s437 + $0xec] sm:$0xf] %v6101
        %6166 = vst [vmem:[%s437 + $0xf0] sm:$0xf] %v6102
        %6167 = vst [vmem:[%s437 + $0xf4] sm:$0xf] %v6103
        %6168 = vst [vmem:[%s437 + $0xf8] sm:$0xf] %v6104
        %6169 = vst [vmem:[%s437 + $0xfc] sm:$0xf] %v6105
        %s6170 = sand.u32 %s211, 1
        %s6171 = scalar_lea.sflag [#allocation5], %s6170
        %s6172 = sand.u32 %s211, 1
        %s6173 = smul.addr %s6172, 256
        %s6174 = scalar_lea.vmem [#allocation11], %s6173
        // Predicated region
        $region57: #{tpu_custom_call.1} parent=39 // pred_check
          %p6175 = pneg %p221
        $region58: #{tpu_custom_call.1} parent=39 // pred_check_branch
          %6177 = sbr.rel (%p6175) target = $region60
        $region59: #{tpu_custom_call.1} parent=39 // pred_region
          %s6178 = smul.u32 32, %s34
          %6180 = vsyncadd %s6171, 0
          %s6181 = smul.addr %s6178, 4
          %s6182 = sadd.s32 %s35, %s6181
          %s6183 = smul.addr %s33, 256
          %s6184 = sadd.s32 %s6182, %s6183
          %s6185 = smul.addr %s6184, 4
          %s6186 = scalar_lea.hbm %s5, %s6185
          %s6187 = sshll.u32 %s6174, 4
          %s6188 = int_to_ptr.vmem [resolvable:$true] %s6187
          %s6189 = sshll.u32 %s6186, 4
          %s6190 = int_to_ptr.hbm [resolvable:$true] %s6189
          %6195 = dma.vmem_to_hbm [thread:$0]  %s6188, 4096, %s6190, %s6171, 64, 128, 4
        $region60: #{tpu_custom_call.1} parent=39 // pred_fallthru
          _
      $region40: #{tpu_custom_call.1} parent=5 // pred_fallthru
        _
      %p6196 = scmp.le.s32.totalorder 2, %s23
      // Predicated region
      $region61: #{tpu_custom_call.1} parent=5 // pred_check
        %p6197 = pneg %p6196
      $region62: #{tpu_custom_call.1} parent=5 // pred_check_branch
        %6199 = sbr.rel (%p6197) target = $region64
      $region63: #{tpu_custom_call.1} parent=5 // pred_region
        %s6200 = ssub.s32 %s23, 2
        // Predicated region
        $region65: #{tpu_custom_call.1} parent=63 // pred_check
          %p6201 = pneg %p227
        $region66: #{tpu_custom_call.1} parent=63 // pred_check_branch
          %6203 = sbr.rel (%p6201) target = $region68
        $region67: #{tpu_custom_call.1} parent=63 // pred_region
          %s6204 = sand.u32 %s212, 1
          %s6205 = scalar_lea.sflag [#allocation5], %s6204
          %s6206 = sand.u32 %s212, 1
          %s6207 = smul.addr %s6206, 256
          %s6208 = scalar_lea.vmem [#allocation11], %s6207
          %6210 = dma.done %s6205, 4096
        $region68: #{tpu_custom_call.1} parent=63 // pred_fallthru
          _
      $region64: #{tpu_custom_call.1} parent=5 // pred_fallthru
        _
    $region6: #{tpu_custom_call.1} parent=1 // loop_footer
      %s27 = sadd.s32 1, %s23
    $region7: #{tpu_custom_call.1} parent=1 // loop_footer_branch
      %22 = sbr.rel target = $region3
    $region8: #{tpu_custom_call.1} parent=1 // loop_exit
      _
    %6211 = vsyncpa [#allocation4], 1
    %s6212 = scalar_lea.sflag [#allocation4], 1
    %6213 = vsyncpa %s6212, 1
    %6214 = vsyncpa [#allocation7], 1
    %s6215 = scalar_lea.sflag [#allocation7], 1
    %6216 = vsyncpa %s6215, 1
    %6217 = vsyncpa [#allocation10], 1
    %s6218 = scalar_lea.sflag [#allocation10], 1
    %6219 = vsyncpa %s6218, 1
    %6220 = vsyncpa [#allocation5], 1
    %s6221 = scalar_lea.sflag [#allocation5], 1
    %6222 = vsyncpa %s6221, 1

</llo_original>
